<compile_context>
chip_gen: v5e
topology: v5e:2x2
jax: 0.10.0
libtpu: 0.0.40
codegen_flags: <defaults>
</compile_context>

<pallas_src>
import functools

import jax
import jax.numpy as jnp
from jax.experimental import pallas as pl
from jax.experimental.pallas import tpu as pltpu

FEATURES = 16
IN_DIM = 84 * 84          # 7056
ENC_OUT = 2 * FEATURES    # 32


def _round_up(n, m):
    return ((n + m - 1) // m) * m


def _cdiv(a, b):
    return -(-a // b)


def _tpu_defaults():
    """Per-generation tiling/VMEM defaults, chosen once at import time."""
    try:
        kind = jax.devices()[0].device_kind.lower()
    except Exception:  # pragma: no cover - defensive
        kind = ""
    if "v5" in kind:
        # 128 MiB VMEM, single TC, no bf16 VPU/EUP -> keep sigmoid in f32.
        return dict(tb_max=512, vmem_bytes=80 << 20, min_tiles=1, bf16_act=False)
    if "v6" in kind:
        # 128 MiB VMEM, single TC, bf16 EUP available.
        return dict(tb_max=512, vmem_bytes=80 << 20, min_tiles=1, bf16_act=True)
    # v7x (or unknown -> conservative): 64 MiB VMEM, 2 TCs per chip.
    return dict(tb_max=256, vmem_bytes=48 << 20, min_tiles=2, bf16_act=True)


_HW = _tpu_defaults()


def _choose_tiling(B, tb_max, min_tiles, align=16):
    """Balanced batch tiles, 16-row aligned (bf16-safe) to minimize padding."""
    n_tiles = _cdiv(B, tb_max)
    if B > align:                      # only force multi-tile when splitting helps
        n_tiles = max(n_tiles, min_tiles)
    if n_tiles <= 1:
        return B, B                    # single full-batch tile, no padding needed
    tb = min(_round_up(_cdiv(B, n_tiles), align), _round_up(tb_max, align))
    b_pad = _round_up(B, tb)
    return tb, b_pad


def _vae_kernel(x_ref, w_enc_ref, b_enc_ref, eps_ref, w_dec_ref, b_dec_ref,
                lat_ref, recon_ref, *, bf16_act):
    # Encoder: single fused Linear(7056 -> 32) + ReLU. bf16 MXU, f32 accumulate.
    x = x_ref[...].astype(jnp.bfloat16)                              # [TB, 7056]
    h = jnp.dot(x, w_enc_ref[...], preferred_element_type=jnp.float32)
    h = jnp.maximum(h + b_enc_ref[...], 0.0)                         # [TB, 32]

    mu = h[:, :FEATURES]                                             # [TB, 16]
    log_var = h[:, FEATURES:]                                        # [TB, 16]

    # Reparameterize (f32).
    eps = eps_ref[...].astype(jnp.float32)
    z = mu + eps * jnp.exp(0.5 * log_var)                            # [TB, 16]

    # Decoder: Linear(16 -> 7056) + sigmoid.
    logits = jnp.dot(z.astype(jnp.bfloat16), w_dec_ref[...],
                     preferred_element_type=jnp.float32) + b_dec_ref[...]
    if bf16_act:
        recon = jax.nn.sigmoid(logits.astype(jnp.bfloat16))          # bf16 EUP
    else:
        recon = jax.nn.sigmoid(logits)                               # f32 (v5e)
    recon_ref[...] = recon.astype(recon_ref.dtype)                   # bf16 out

    # Pack the three tiny latent outputs into one output buffer / one DMA.
    lat_ref[0] = z
    lat_ref[1] = mu
    lat_ref[2] = log_var


def prepare_params(w_enc, b_enc, w_dec, b_dec):
    """One-time parameter plumbing; call ONCE, not per forward.

    w_enc: [2*features, 7056], b_enc: [2*features],
    w_dec: [7056, features],   b_dec: [7056].
    """
    w_enc_t = jnp.transpose(w_enc).astype(jnp.bfloat16)          # [7056, 32]
    b_enc2 = b_enc.reshape(1, ENC_OUT).astype(jnp.float32)       # [1, 32]
    w_dec_t = jnp.transpose(w_dec).astype(jnp.bfloat16)          # [16, 7056]
    b_dec2 = b_dec.reshape(1, IN_DIM).astype(jnp.float32)        # [1, 7056]
    return (w_enc_t, b_enc2, w_dec_t, b_dec2)


@functools.partial(jax.jit,
                   static_argnames=("tb_max", "vmem_bytes", "min_tiles", "bf16_act"))
def linear1_vae_forward(x, eps, params, *,
                        tb_max=_HW["tb_max"],
                        vmem_bytes=_HW["vmem_bytes"],
                        min_tiles=_HW["min_tiles"],
                        bf16_act=_HW["bf16_act"]):
    """x: [B, 7056] (bf16 preferred, f32 accepted), eps: [B, features],
    params: prepare_params(...).  Returns (z, recon[bf16], mu, log_var)."""
    w_enc_t, b_enc2, w_dec_t, b_dec2 = params
    B = x.shape[0]

    tb, b_pad = _choose_tiling(B, tb_max, min_tiles)
    if b_pad != B:
        x = jnp.pad(x, ((0, b_pad - B), (0, 0)))
        eps = jnp.pad(eps, ((0, b_pad - B), (0, 0)))

    grid = (b_pad // tb,)
    kernel = functools.partial(_vae_kernel, bf16_act=bf16_act)

    lat, recon = pl.pallas_call(
        kernel,
        out_shape=(
            jax.ShapeDtypeStruct((3, b_pad, FEATURES), jnp.float32),   # z|mu|logvar
            jax.ShapeDtypeStruct((b_pad, IN_DIM), jnp.bfloat16),       # recon (bf16)
        ),
        grid_spec=pltpu.PrefetchScalarGridSpec(
            num_scalar_prefetch=0,
            grid=grid,
            in_specs=[
                pl.BlockSpec((tb, IN_DIM), lambda i: (i, 0)),          # x tile
                pl.BlockSpec((IN_DIM, ENC_OUT), lambda i: (0, 0)),     # enc W (resident)
                pl.BlockSpec((1, ENC_OUT), lambda i: (0, 0)),          # enc b
                pl.BlockSpec((tb, FEATURES), lambda i: (i, 0)),        # eps tile
                pl.BlockSpec((FEATURES, IN_DIM), lambda i: (0, 0)),    # dec W (resident)
                pl.BlockSpec((1, IN_DIM), lambda i: (0, 0)),           # dec b
            ],
            out_specs=[
                pl.BlockSpec((3, tb, FEATURES), lambda i: (0, i, 0)),
                pl.BlockSpec((tb, IN_DIM), lambda i: (i, 0)),
            ],
        ),
        compiler_params=pltpu.CompilerParams(
            dimension_semantics=("parallel",),
            vmem_limit_bytes=vmem_bytes,
        ),
    )(x, w_enc_t, b_enc2, eps, w_dec_t, b_dec2)

    if b_pad != B:
        lat = lat[:, :B]
        recon = recon[:B]
    z, mu, log_var = lat[0], lat[1], lat[2]
    return z, recon, mu, log_var


def _reference(x, w_enc, b_enc, w_dec, b_dec, eps):
    h = jax.nn.relu(x @ w_enc.T + b_enc)
    mu, lv = h[:, :FEATURES], h[:, FEATURES:]
    z = mu + eps * jnp.exp(0.5 * lv)
    recon = jax.nn.sigmoid(z @ w_dec.T + b_dec)
    return z, recon, mu, lv


if __name__ == "__main__":
    key = jax.random.PRNGKey(0)
    k_we, k_be, k_wd, k_bd = jax.random.split(key, 4)

    # PyTorch Linear default init: U(-1/sqrt(fan_in), 1/sqrt(fan_in)).
    enc_bound = 1.0 / jnp.sqrt(jnp.float32(IN_DIM))
    dec_bound = 1.0 / jnp.sqrt(jnp.float32(FEATURES))
    w_enc = jax.random.uniform(k_we, (ENC_OUT, IN_DIM), jnp.float32,
                               -enc_bound, enc_bound)
    b_enc = jax.random.uniform(k_be, (ENC_OUT,), jnp.float32,
                               -enc_bound, enc_bound)
    w_dec = jax.random.uniform(k_wd, (IN_DIM, FEATURES), jnp.float32,
                               -dec_bound, dec_bound)
    b_dec = jax.random.uniform(k_bd, (IN_DIM,), jnp.float32,
                               -dec_bound, dec_bound)

    # One-time parameter prep (transpose + bf16 cast) — not paid per forward.
    params = prepare_params(w_enc, b_enc, w_dec, b_dec)

    def check(B, **overrides):
        kx, keps = jax.random.split(jax.random.fold_in(key, B), 2)
        # Producer-side bf16 frames (Pong pixels in [0,1]) -> halved input DMA.
        x = jax.random.uniform(kx, (B, IN_DIM), jnp.float32).astype(jnp.bfloat16)
        eps = jax.random.normal(keps, (B, FEATURES), jnp.float32)
        z, recon, mu, lv = jax.block_until_ready(
            linear1_vae_forward(x, eps, params, **overrides))
        x_f32 = x.astype(jnp.float32)
        z_r, recon_r, mu_r, lv_r = _reference(x_f32, w_enc, b_enc, w_dec, b_dec, eps)
        assert z.shape == (B, FEATURES) and recon.shape == (B, IN_DIM)
        # bf16 weights/activations -> relaxed tolerances vs the f32 reference.
        assert jnp.allclose(mu, mu_r, rtol=2e-2, atol=2e-2)
        assert jnp.allclose(lv, lv_r, rtol=2e-2, atol=2e-2)
        assert jnp.allclose(z, z_r, rtol=2e-2, atol=2e-2)
        assert jnp.allclose(recon.astype(jnp.float32), recon_r, rtol=3e-2, atol=3e-2)

    check(B=4)                          # single tile, no batch padding
    check(B=24, tb_max=16, min_tiles=2)  # multi-step grid + batch padding path

    print("KERNEL_OK")
</pallas_src>

<mosaic_0001>
module attributes {stable_mosaic.version = 11 : i64} {
  func.func @_vae_kernel(%arg0: i32, %arg1: memref<4x7056xbf16, #tpu.memory_space<vmem>>, %arg2: memref<7056x32xbf16, #tpu.memory_space<vmem>>, %arg3: memref<1x32xf32, #tpu.memory_space<vmem>>, %arg4: memref<4x16xf32, #tpu.memory_space<vmem>>, %arg5: memref<16x7056xbf16, #tpu.memory_space<vmem>>, %arg6: memref<1x7056xf32, #tpu.memory_space<vmem>>, %arg7: memref<3x4x16xf32, #tpu.memory_space<vmem>>, %arg8: memref<4x7056xbf16, #tpu.memory_space<vmem>>) attributes {dimension_semantics = [#tpu.dimension_semantics<parallel>], iteration_bounds = array<i64: 1>, scalar_prefetch = 0 : i64, scratch_operands = 0 : i64, tpu.core_type = #tpu.core_type<tc>, window_params = [{transform_indices = @transform_0, window_bounds = array<i64: 4, 7056>}, {pipeline_mode = #tpu.pipeline_mode<synchronous>, transform_indices = @transform_1, window_bounds = array<i64: 7056, 32>}, {pipeline_mode = #tpu.pipeline_mode<synchronous>, transform_indices = @transform_2, window_bounds = array<i64: 1, 32>}, {transform_indices = @transform_3, window_bounds = array<i64: 4, 16>}, {pipeline_mode = #tpu.pipeline_mode<synchronous>, transform_indices = @transform_4, window_bounds = array<i64: 16, 7056>}, {pipeline_mode = #tpu.pipeline_mode<synchronous>, transform_indices = @transform_5, window_bounds = array<i64: 1, 7056>}, {transform_indices = @transform_6, window_bounds = array<i64: 3, 4, 16>}, {transform_indices = @transform_7, window_bounds = array<i64: 4, 7056>}]} {
    %c0 = arith.constant 0 : index
    %c0_0 = arith.constant 0 : index
    %0 = vector.load %arg1[%c0, %c0_0] : memref<4x7056xbf16, #tpu.memory_space<vmem>>, vector<4x7056xbf16>
    %c0_1 = arith.constant 0 : index
    %c0_2 = arith.constant 0 : index
    %1 = vector.load %arg2[%c0_1, %c0_2] : memref<7056x32xbf16, #tpu.memory_space<vmem>>, vector<7056x32xbf16>
    %cst = arith.constant dense<0.000000e+00> : vector<4x32xf32>
    %2 = tpu.matmul %0, %1, %cst {dimension_numbers = #tpu.dot_dimension_numbers<[1], [0], [0], [1], [0, 0, 1, 1], [], []>} : vector<4x7056xbf16>, vector<7056x32xbf16>, vector<4x32xf32> -> vector<4x32xf32>
    %c0_3 = arith.constant 0 : index
    %c0_4 = arith.constant 0 : index
    %3 = vector.load %arg3[%c0_3, %c0_4] : memref<1x32xf32, #tpu.memory_space<vmem>>, vector<1x32xf32>
    %4 = vector.broadcast %3 : vector<1x32xf32> to vector<4x32xf32>
    %5 = arith.addf %2, %4 : vector<4x32xf32>
    %cst_5 = arith.constant 0.000000e+00 : f32
    %6 = vector.broadcast %cst_5 : f32 to vector<4x32xf32>
    %7 = arith.maximumf %5, %6 : vector<4x32xf32>
    %8 = vector.extract_strided_slice %7 {offsets = [0, 0], sizes = [4, 16], strides = [1, 1]} : vector<4x32xf32> to vector<4x16xf32>
    %9 = vector.extract_strided_slice %7 {offsets = [0, 16], sizes = [4, 16], strides = [1, 1]} : vector<4x32xf32> to vector<4x16xf32>
    %c0_6 = arith.constant 0 : index
    %c0_7 = arith.constant 0 : index
    %10 = vector.load %arg4[%c0_6, %c0_7] : memref<4x16xf32, #tpu.memory_space<vmem>>, vector<4x16xf32>
    %cst_8 = arith.constant 5.000000e-01 : f32
    %11 = vector.broadcast %cst_8 : f32 to vector<4x16xf32>
    %12 = arith.mulf %11, %9 : vector<4x16xf32>
    %13 = math.exp %12 : vector<4x16xf32>
    %14 = arith.mulf %10, %13 : vector<4x16xf32>
    %15 = arith.addf %8, %14 : vector<4x16xf32>
    %16 = arith.truncf %15 : vector<4x16xf32> to vector<4x16xbf16>
    %c0_9 = arith.constant 0 : index
    %c0_10 = arith.constant 0 : index
    %17 = vector.load %arg5[%c0_9, %c0_10] : memref<16x7056xbf16, #tpu.memory_space<vmem>>, vector<16x7056xbf16>
    %cst_11 = arith.constant dense<0.000000e+00> : vector<4x7056xf32>
    %18 = tpu.matmul %16, %17, %cst_11 {dimension_numbers = #tpu.dot_dimension_numbers<[1], [0], [0], [1], [0, 0, 1, 1], [], []>} : vector<4x16xbf16>, vector<16x7056xbf16>, vector<4x7056xf32> -> vector<4x7056xf32>
    %c0_12 = arith.constant 0 : index
    %c0_13 = arith.constant 0 : index
    %19 = vector.load %arg6[%c0_12, %c0_13] : memref<1x7056xf32, #tpu.memory_space<vmem>>, vector<1x7056xf32>
    %20 = vector.broadcast %19 : vector<1x7056xf32> to vector<4x7056xf32>
    %21 = arith.addf %18, %20 : vector<4x7056xf32>
    %22 = arith.truncf %21 : vector<4x7056xf32> to vector<4x7056xbf16>
    %23 = arith.negf %22 : vector<4x7056xbf16>
    %24 = math.exp %23 : vector<4x7056xbf16>
    %cst_14 = arith.constant 1.000000e+00 : bf16
    %25 = vector.broadcast %cst_14 : bf16 to vector<4x7056xbf16>
    %26 = arith.addf %25, %24 : vector<4x7056xbf16>
    %27 = arith.divf %25, %26 : vector<4x7056xbf16>
    %c0_15 = arith.constant 0 : index
    %c0_16 = arith.constant 0 : index
    %28 = vector.load %arg8[%c0_15, %c0_16] : memref<4x7056xbf16, #tpu.memory_space<vmem>>, vector<4x7056xbf16>
    tpu.vector_store %arg8[%c0_15, %c0_16], %27 {strides = array<i32>} : memref<4x7056xbf16, #tpu.memory_space<vmem>>, vector<4x7056xbf16>,
    %c0_17 = arith.constant 0 : index
    %c0_18 = arith.constant 0 : index
    %c0_19 = arith.constant 0 : index
    %29 = vector.load %arg7[%c0_17, %c0_18, %c0_19] : memref<3x4x16xf32, #tpu.memory_space<vmem>>, vector<1x4x16xf32>
    %30 = vector.shape_cast %29 : vector<1x4x16xf32> to vector<4x16xf32>
    %31 = vector.shape_cast %15 : vector<4x16xf32> to vector<1x4x16xf32>
    tpu.vector_store %arg7[%c0_17, %c0_18, %c0_19], %31 {strides = array<i32>} : memref<3x4x16xf32, #tpu.memory_space<vmem>>, vector<1x4x16xf32>,
    %c1 = arith.constant 1 : index
    %c0_20 = arith.constant 0 : index
    %c0_21 = arith.constant 0 : index
    %32 = vector.load %arg7[%c1, %c0_20, %c0_21] : memref<3x4x16xf32, #tpu.memory_space<vmem>>, vector<1x4x16xf32>
    %33 = vector.shape_cast %32 : vector<1x4x16xf32> to vector<4x16xf32>
    %34 = vector.shape_cast %8 : vector<4x16xf32> to vector<1x4x16xf32>
    tpu.vector_store %arg7[%c1, %c0_20, %c0_21], %34 {strides = array<i32>} : memref<3x4x16xf32, #tpu.memory_space<vmem>>, vector<1x4x16xf32>,
    %c2 = arith.constant 2 : index
    %c0_22 = arith.constant 0 : index
    %c0_23 = arith.constant 0 : index
    %35 = vector.load %arg7[%c2, %c0_22, %c0_23] : memref<3x4x16xf32, #tpu.memory_space<vmem>>, vector<1x4x16xf32>
    %36 = vector.shape_cast %35 : vector<1x4x16xf32> to vector<4x16xf32>
    %37 = vector.shape_cast %9 : vector<4x16xf32> to vector<1x4x16xf32>
    tpu.vector_store %arg7[%c2, %c0_22, %c0_23], %37 {strides = array<i32>} : memref<3x4x16xf32, #tpu.memory_space<vmem>>, vector<1x4x16xf32>,
    return
  }
  func.func @transform_0(%arg0: i32) -> (i32, i32) {
    %c0_i32 = arith.constant 0 : i32
    %c0_i32_0 = arith.constant 0 : i32
    return %arg0, %c0_i32 : i32, i32
  }
  func.func @transform_1(%arg0: i32) -> (i32, i32) {
    %c0_i32 = arith.constant 0 : i32
    %c0_i32_0 = arith.constant 0 : i32
    %c0_i32_1 = arith.constant 0 : i32
    return %c0_i32, %c0_i32_0 : i32, i32
  }
  func.func @transform_2(%arg0: i32) -> (i32, i32) {
    %c0_i32 = arith.constant 0 : i32
    %c0_i32_0 = arith.constant 0 : i32
    %c0_i32_1 = arith.constant 0 : i32
    return %c0_i32, %c0_i32_0 : i32, i32
  }
  func.func @transform_3(%arg0: i32) -> (i32, i32) {
    %c0_i32 = arith.constant 0 : i32
    %c0_i32_0 = arith.constant 0 : i32
    return %arg0, %c0_i32 : i32, i32
  }
  func.func @transform_4(%arg0: i32) -> (i32, i32) {
    %c0_i32 = arith.constant 0 : i32
    %c0_i32_0 = arith.constant 0 : i32
    %c0_i32_1 = arith.constant 0 : i32
    return %c0_i32, %c0_i32_0 : i32, i32
  }
  func.func @transform_5(%arg0: i32) -> (i32, i32) {
    %c0_i32 = arith.constant 0 : i32
    %c0_i32_0 = arith.constant 0 : i32
    %c0_i32_1 = arith.constant 0 : i32
    return %c0_i32, %c0_i32_0 : i32, i32
  }
  func.func @transform_6(%arg0: i32) -> (i32, i32, i32) {
    %c0_i32 = arith.constant 0 : i32
    %c0_i32_0 = arith.constant 0 : i32
    %c0_i32_1 = arith.constant 0 : i32
    return %c0_i32, %arg0, %c0_i32_0 : i32, i32, i32
  }
  func.func @transform_7(%arg0: i32) -> (i32, i32) {
    %c0_i32 = arith.constant 0 : i32
    %c0_i32_0 = arith.constant 0 : i32
    return %arg0, %c0_i32 : i32, i32
  }
}

</mosaic_0001>

<llo_original>
// kernel: linear1_vae_forward.1
$region0: #{linear1_vae_forward.1}
  #allocation0 [shape = 'u32[]', space=smem, size = 0x4, offset = 0x4, fixed_abs, tag = 'smem constant byte address 0x4 - core index']
  #allocation1 [shape = 'u32[72,128]{1,0:T(1,128)}', space=vmem, size = 0x9000, scoped, tag = 'internal scratch']
  %s0 = inlined_call_operand.vmem [shape: bf16[4,7056], index: 0, kind: input, shape index: {}]
  %s1 = inlined_call_operand.vmem [shape: bf16[7056,32], index: 1, kind: input, shape index: {}]
  %s2 = inlined_call_operand.vmem [shape: f32[1,32], index: 2, kind: input, shape index: {}]
  %s3 = inlined_call_operand.vmem [shape: f32[4,16], index: 3, kind: input, shape index: {}]
  %s4 = inlined_call_operand.vmem [shape: bf16[16,7056], index: 4, kind: input, shape index: {}]
  %s5 = inlined_call_operand.vmem [shape: f32[1,7056], index: 5, kind: input, shape index: {}]
  %s6 = inlined_call_operand.vmem [shape: f32[3,4,16], index: 6, kind: output, shape index: {0}]
  %s7 = inlined_call_operand.hbm [shape: bf16[4,7056], index: 7, kind: output, shape index: {1}]
  %8 = xla_tuple %s6, %s7
  %s9 = sld [smem:[#allocation0]]
  $region42: #{linear1_vae_forward.1} parent=0
    _
  %s11 = ssub.s32 1, %s9
  %s12 = scalar_select 0, %s11, %s9
  $region1: #{linear1_vae_forward.1} parent=0
    #allocation2 [shape = 'u8[57344]{0}', space=vmem, size = 0xe000, scoped, tag = 'output window, operand 1, single buffered']
    #allocation3 [shape = 's32[1]{0}', space=sflag, size = 0x4, scoped, tag = 'scoped memory for linear1_vae_forward.1']
    %13 = vsyncpa [#allocation3], 0
    // Predicated region
    $region2: #{linear1_vae_forward.1} parent=1 // pred_check
      _
    $region3: #{linear1_vae_forward.1} parent=1 // pred_check_branch
      %15 = sbr.rel (0) target = $region5
    $region4: #{linear1_vae_forward.1} parent=1 // pred_region
      _
    $region5: #{linear1_vae_forward.1} parent=1 // pred_fallthru
      _
    // Predicated region
    $region6: #{linear1_vae_forward.1} parent=1 // pred_check
      _
    $region7: #{linear1_vae_forward.1} parent=1 // pred_check_branch
      %17 = sbr.rel (0) target = $region9
    $region8: #{linear1_vae_forward.1} parent=1 // pred_region
      _
    $region9: #{linear1_vae_forward.1} parent=1 // pred_fallthru
      _
    // Predicated region
    $region10: #{linear1_vae_forward.1} parent=1 // pred_check
      _
    $region11: #{linear1_vae_forward.1} parent=1 // pred_check_branch
      %19 = sbr.rel (0) target = $region13
    $region12: #{linear1_vae_forward.1} parent=1 // pred_region
      _
    $region13: #{linear1_vae_forward.1} parent=1 // pred_fallthru
      _
    // Predicated region
    $region14: #{linear1_vae_forward.1} parent=1 // pred_check
      _
    $region15: #{linear1_vae_forward.1} parent=1 // pred_check_branch
      %21 = sbr.rel (0) target = $region17
    $region16: #{linear1_vae_forward.1} parent=1 // pred_region
      _
    $region17: #{linear1_vae_forward.1} parent=1 // pred_fallthru
      _
    // Predicated region
    $region18: #{linear1_vae_forward.1} parent=1 // pred_check
      _
    $region19: #{linear1_vae_forward.1} parent=1 // pred_check_branch
      %23 = sbr.rel (0) target = $region21
    $region20: #{linear1_vae_forward.1} parent=1 // pred_region
      _
    $region21: #{linear1_vae_forward.1} parent=1 // pred_fallthru
      _
    // Predicated region
    $region22: #{linear1_vae_forward.1} parent=1 // pred_check
      _
    $region23: #{linear1_vae_forward.1} parent=1 // pred_check_branch
      %25 = sbr.rel (0) target = $region25
    $region24: #{linear1_vae_forward.1} parent=1 // pred_region
      _
    $region25: #{linear1_vae_forward.1} parent=1 // pred_fallthru
      _
    %v28 = vld [vmem:[%s0] sm:$0xff]
    %v29 = vld [vmem:[%s0 + $0x8] sm:$0xff]
    %v30 = vld [vmem:[%s0 + $0x10] sm:$0xff]
    %v31 = vld [vmem:[%s0 + $0x18] sm:$0xff]
    %v32 = vld [vmem:[%s0 + $0x20] sm:$0xff]
    %v33 = vld [vmem:[%s0 + $0x28] sm:$0xff]
    %v34 = vld [vmem:[%s0 + $0x30] sm:$0xff]
    %v35 = vld [vmem:[%s0 + $0x38] sm:$0xff]
    %v36 = vld [vmem:[%s0 + $0x40] sm:$0xff]
    %v37 = vld [vmem:[%s0 + $0x48] sm:$0xff]
    %v38 = vld [vmem:[%s0 + $0x50] sm:$0xff]
    %v39 = vld [vmem:[%s0 + $0x58] sm:$0xff]
    %v40 = vld [vmem:[%s0 + $0x60] sm:$0xff]
    %v41 = vld [vmem:[%s0 + $0x68] sm:$0xff]
    %v42 = vld [vmem:[%s1] sm:$0xf]
    %v43 = vld [vmem:[%s1 + $0x4] sm:$0xf]
    %v44 = vld [vmem:[%s1 + $0x8] sm:$0xf]
    %v45 = vld [vmem:[%s1 + $0xc] sm:$0xf]
    %v46 = vld [vmem:[%s1 + $0x10] sm:$0xf]
    %v47 = vld [vmem:[%s1 + $0x14] sm:$0xf]
    %v48 = vld [vmem:[%s1 + $0x18] sm:$0xf]
    %v49 = vld [vmem:[%s1 + $0x1c] sm:$0xf]
    %v50 = vld [vmem:[%s1 + $0x20] sm:$0xf]
    %v51 = vld [vmem:[%s1 + $0x24] sm:$0xf]
    %v52 = vld [vmem:[%s1 + $0x28] sm:$0xf]
    %v53 = vld [vmem:[%s1 + $0x2c] sm:$0xf]
    %v54 = vld [vmem:[%s1 + $0x30] sm:$0xf]
    %v55 = vld [vmem:[%s1 + $0x34] sm:$0xf]
    %v56 = vld [vmem:[%s1 + $0x38] sm:$0xf]
    %v57 = vld [vmem:[%s1 + $0x3c] sm:$0xf]
    %v58 = vld [vmem:[%s1 + $0x40] sm:$0xf]
    %v59 = vld [vmem:[%s1 + $0x44] sm:$0xf]
    %v60 = vld [vmem:[%s1 + $0x48] sm:$0xf]
    %v61 = vld [vmem:[%s1 + $0x4c] sm:$0xf]
    %v62 = vld [vmem:[%s1 + $0x50] sm:$0xf]
    %v63 = vld [vmem:[%s1 + $0x54] sm:$0xf]
    %v64 = vld [vmem:[%s1 + $0x58] sm:$0xf]
    %v65 = vld [vmem:[%s1 + $0x5c] sm:$0xf]
    %v66 = vld [vmem:[%s1 + $0x60] sm:$0xf]
    %v67 = vld [vmem:[%s1 + $0x64] sm:$0xf]
    %v68 = vld [vmem:[%s1 + $0x68] sm:$0xf]
    %v69 = vld [vmem:[%s1 + $0x6c] sm:$0xf]
    %v70 = vld [vmem:[%s1 + $0x70] sm:$0xf]
    %v71 = vld [vmem:[%s1 + $0x74] sm:$0xf]
    %v72 = vld [vmem:[%s1 + $0x78] sm:$0xf]
    %v73 = vld [vmem:[%s1 + $0x7c] sm:$0xf]
    %v74 = vld [vmem:[%s1 + $0x80] sm:$0xf]
    %v75 = vld [vmem:[%s1 + $0x84] sm:$0xf]
    %v76 = vld [vmem:[%s1 + $0x88] sm:$0xf]
    %v77 = vld [vmem:[%s1 + $0x8c] sm:$0xf]
    %v78 = vld [vmem:[%s1 + $0x90] sm:$0xf]
    %v79 = vld [vmem:[%s1 + $0x94] sm:$0xf]
    %v80 = vld [vmem:[%s1 + $0x98] sm:$0xf]
    %v81 = vld [vmem:[%s1 + $0x9c] sm:$0xf]
    %v82 = vld [vmem:[%s1 + $0xa0] sm:$0xf]
    %v83 = vld [vmem:[%s1 + $0xa4] sm:$0xf]
    %v84 = vld [vmem:[%s1 + $0xa8] sm:$0xf]
    %v85 = vld [vmem:[%s1 + $0xac] sm:$0xf]
    %v86 = vld [vmem:[%s1 + $0xb0] sm:$0xf]
    %v87 = vld [vmem:[%s1 + $0xb4] sm:$0xf]
    %v88 = vld [vmem:[%s1 + $0xb8] sm:$0xf]
    %v89 = vld [vmem:[%s1 + $0xbc] sm:$0xf]
    %v90 = vld [vmem:[%s1 + $0xc0] sm:$0xf]
    %v91 = vld [vmem:[%s1 + $0xc4] sm:$0xf]
    %v92 = vld [vmem:[%s1 + $0xc8] sm:$0xf]
    %v93 = vld [vmem:[%s1 + $0xcc] sm:$0xf]
    %v94 = vld [vmem:[%s1 + $0xd0] sm:$0xf]
    %v95 = vld [vmem:[%s1 + $0xd4] sm:$0xf]
    %v96 = vld [vmem:[%s1 + $0xd8] sm:$0xf]
    %v97 = vld [vmem:[%s1 + $0xdc] sm:$0xf]
    %v98 = vld [vmem:[%s1 + $0xe0] sm:$0xf]
    %v99 = vld [vmem:[%s1 + $0xe4] sm:$0xf]
    %v100 = vld [vmem:[%s1 + $0xe8] sm:$0xf]
    %v101 = vld [vmem:[%s1 + $0xec] sm:$0xf]
    %v102 = vld [vmem:[%s1 + $0xf0] sm:$0xf]
    %v103 = vld [vmem:[%s1 + $0xf4] sm:$0xf]
    %v104 = vld [vmem:[%s1 + $0xf8] sm:$0xf]
    %v105 = vld [vmem:[%s1 + $0xfc] sm:$0xf]
    %v106 = vld [vmem:[%s1 + $0x100] sm:$0xf]
    %v107 = vld [vmem:[%s1 + $0x104] sm:$0xf]
    %v108 = vld [vmem:[%s1 + $0x108] sm:$0xf]
    %v109 = vld [vmem:[%s1 + $0x10c] sm:$0xf]
    %v110 = vld [vmem:[%s1 + $0x110] sm:$0xf]
    %v111 = vld [vmem:[%s1 + $0x114] sm:$0xf]
    %v112 = vld [vmem:[%s1 + $0x118] sm:$0xf]
    %v113 = vld [vmem:[%s1 + $0x11c] sm:$0xf]
    %v114 = vld [vmem:[%s1 + $0x120] sm:$0xf]
    %v115 = vld [vmem:[%s1 + $0x124] sm:$0xf]
    %v116 = vld [vmem:[%s1 + $0x128] sm:$0xf]
    %v117 = vld [vmem:[%s1 + $0x12c] sm:$0xf]
    %v118 = vld [vmem:[%s1 + $0x130] sm:$0xf]
    %v119 = vld [vmem:[%s1 + $0x134] sm:$0xf]
    %v120 = vld [vmem:[%s1 + $0x138] sm:$0xf]
    %v121 = vld [vmem:[%s1 + $0x13c] sm:$0xf]
    %v122 = vld [vmem:[%s1 + $0x140] sm:$0xf]
    %v123 = vld [vmem:[%s1 + $0x144] sm:$0xf]
    %v124 = vld [vmem:[%s1 + $0x148] sm:$0xf]
    %v125 = vld [vmem:[%s1 + $0x14c] sm:$0xf]
    %v126 = vld [vmem:[%s1 + $0x150] sm:$0xf]
    %v127 = vld [vmem:[%s1 + $0x154] sm:$0xf]
    %v128 = vld [vmem:[%s1 + $0x158] sm:$0xf]
    %v129 = vld [vmem:[%s1 + $0x15c] sm:$0xf]
    %v130 = vld [vmem:[%s1 + $0x160] sm:$0xf]
    %v131 = vld [vmem:[%s1 + $0x164] sm:$0xf]
    %v132 = vld [vmem:[%s1 + $0x168] sm:$0xf]
    %v133 = vld [vmem:[%s1 + $0x16c] sm:$0xf]
    %v134 = vld [vmem:[%s1 + $0x170] sm:$0xf]
    %v135 = vld [vmem:[%s1 + $0x174] sm:$0xf]
    %v136 = vld [vmem:[%s1 + $0x178] sm:$0xf]
    %v137 = vld [vmem:[%s1 + $0x17c] sm:$0xf]
    %v138 = vld [vmem:[%s1 + $0x180] sm:$0xf]
    %v139 = vld [vmem:[%s1 + $0x184] sm:$0xf]
    %v140 = vld [vmem:[%s1 + $0x188] sm:$0xf]
    %v141 = vld [vmem:[%s1 + $0x18c] sm:$0xf]
    %v142 = vld [vmem:[%s1 + $0x190] sm:$0xf]
    %v143 = vld [vmem:[%s1 + $0x194] sm:$0xf]
    %v144 = vld [vmem:[%s1 + $0x198] sm:$0xf]
    %v145 = vld [vmem:[%s1 + $0x19c] sm:$0xf]
    %v146 = vld [vmem:[%s1 + $0x1a0] sm:$0xf]
    %v147 = vld [vmem:[%s1 + $0x1a4] sm:$0xf]
    %v148 = vld [vmem:[%s1 + $0x1a8] sm:$0xf]
    %v149 = vld [vmem:[%s1 + $0x1ac] sm:$0xf]
    %v150 = vld [vmem:[%s1 + $0x1b0] sm:$0xf]
    %v151 = vld [vmem:[%s1 + $0x1b4] sm:$0xf]
    %v152 = vld [vmem:[%s1 + $0x1b8] sm:$0xf]
    %v153 = vld [vmem:[%s1 + $0x1bc] sm:$0xf]
    %v154 = vld [vmem:[%s1 + $0x1c0] sm:$0xf]
    %v155 = vld [vmem:[%s1 + $0x1c4] sm:$0xf]
    %v156 = vld [vmem:[%s1 + $0x1c8] sm:$0xf]
    %v157 = vld [vmem:[%s1 + $0x1cc] sm:$0xf]
    %v158 = vld [vmem:[%s1 + $0x1d0] sm:$0xf]
    %v159 = vld [vmem:[%s1 + $0x1d4] sm:$0xf]
    %v160 = vld [vmem:[%s1 + $0x1d8] sm:$0xf]
    %v161 = vld [vmem:[%s1 + $0x1dc] sm:$0xf]
    %v162 = vld [vmem:[%s1 + $0x1e0] sm:$0xf]
    %v163 = vld [vmem:[%s1 + $0x1e4] sm:$0xf]
    %v164 = vld [vmem:[%s1 + $0x1e8] sm:$0xf]
    %v165 = vld [vmem:[%s1 + $0x1ec] sm:$0xf]
    %v166 = vld [vmem:[%s1 + $0x1f0] sm:$0xf]
    %v167 = vld [vmem:[%s1 + $0x1f4] sm:$0xf]
    %v168 = vld [vmem:[%s1 + $0x1f8] sm:$0xf]
    %v169 = vld [vmem:[%s1 + $0x1fc] sm:$0xf]
    %v170 = vld [vmem:[%s1 + $0x200] sm:$0xf]
    %v171 = vld [vmem:[%s1 + $0x204] sm:$0xf]
    %v172 = vld [vmem:[%s1 + $0x208] sm:$0xf]
    %v173 = vld [vmem:[%s1 + $0x20c] sm:$0xf]
    %v174 = vld [vmem:[%s1 + $0x210] sm:$0xf]
    %v175 = vld [vmem:[%s1 + $0x214] sm:$0xf]
    %v176 = vld [vmem:[%s1 + $0x218] sm:$0xf]
    %v177 = vld [vmem:[%s1 + $0x21c] sm:$0xf]
    %v178 = vld [vmem:[%s1 + $0x220] sm:$0xf]
    %v179 = vld [vmem:[%s1 + $0x224] sm:$0xf]
    %v180 = vld [vmem:[%s1 + $0x228] sm:$0xf]
    %v181 = vld [vmem:[%s1 + $0x22c] sm:$0xf]
    %v182 = vld [vmem:[%s1 + $0x230] sm:$0xf]
    %v183 = vld [vmem:[%s1 + $0x234] sm:$0xf]
    %v184 = vld [vmem:[%s1 + $0x238] sm:$0xf]
    %v185 = vld [vmem:[%s1 + $0x23c] sm:$0xf]
    %v186 = vld [vmem:[%s1 + $0x240] sm:$0xf]
    %v187 = vld [vmem:[%s1 + $0x244] sm:$0xf]
    %v188 = vld [vmem:[%s1 + $0x248] sm:$0xf]
    %v189 = vld [vmem:[%s1 + $0x24c] sm:$0xf]
    %v190 = vld [vmem:[%s1 + $0x250] sm:$0xf]
    %v191 = vld [vmem:[%s1 + $0x254] sm:$0xf]
    %v192 = vld [vmem:[%s1 + $0x258] sm:$0xf]
    %v193 = vld [vmem:[%s1 + $0x25c] sm:$0xf]
    %v194 = vld [vmem:[%s1 + $0x260] sm:$0xf]
    %v195 = vld [vmem:[%s1 + $0x264] sm:$0xf]
    %v196 = vld [vmem:[%s1 + $0x268] sm:$0xf]
    %v197 = vld [vmem:[%s1 + $0x26c] sm:$0xf]
    %v198 = vld [vmem:[%s1 + $0x270] sm:$0xf]
    %v199 = vld [vmem:[%s1 + $0x274] sm:$0xf]
    %v200 = vld [vmem:[%s1 + $0x278] sm:$0xf]
    %v201 = vld [vmem:[%s1 + $0x27c] sm:$0xf]
    %v202 = vld [vmem:[%s1 + $0x280] sm:$0xf]
    %v203 = vld [vmem:[%s1 + $0x284] sm:$0xf]
    %v204 = vld [vmem:[%s1 + $0x288] sm:$0xf]
    %v205 = vld [vmem:[%s1 + $0x28c] sm:$0xf]
    %v206 = vld [vmem:[%s1 + $0x290] sm:$0xf]
    %v207 = vld [vmem:[%s1 + $0x294] sm:$0xf]
    %v208 = vld [vmem:[%s1 + $0x298] sm:$0xf]
    %v209 = vld [vmem:[%s1 + $0x29c] sm:$0xf]
    %v210 = vld [vmem:[%s1 + $0x2a0] sm:$0xf]
    %v211 = vld [vmem:[%s1 + $0x2a4] sm:$0xf]
    %v212 = vld [vmem:[%s1 + $0x2a8] sm:$0xf]
    %v213 = vld [vmem:[%s1 + $0x2ac] sm:$0xf]
    %v214 = vld [vmem:[%s1 + $0x2b0] sm:$0xf]
    %v215 = vld [vmem:[%s1 + $0x2b4] sm:$0xf]
    %v216 = vld [vmem:[%s1 + $0x2b8] sm:$0xf]
    %v217 = vld [vmem:[%s1 + $0x2bc] sm:$0xf]
    %v218 = vld [vmem:[%s1 + $0x2c0] sm:$0xf]
    %v219 = vld [vmem:[%s1 + $0x2c4] sm:$0xf]
    %v220 = vld [vmem:[%s1 + $0x2c8] sm:$0xf]
    %v221 = vld [vmem:[%s1 + $0x2cc] sm:$0xf]
    %v222 = vld [vmem:[%s1 + $0x2d0] sm:$0xf]
    %v223 = vld [vmem:[%s1 + $0x2d4] sm:$0xf]
    %v224 = vld [vmem:[%s1 + $0x2d8] sm:$0xf]
    %v225 = vld [vmem:[%s1 + $0x2dc] sm:$0xf]
    %v226 = vld [vmem:[%s1 + $0x2e0] sm:$0xf]
    %v227 = vld [vmem:[%s1 + $0x2e4] sm:$0xf]
    %v228 = vld [vmem:[%s1 + $0x2e8] sm:$0xf]
    %v229 = vld [vmem:[%s1 + $0x2ec] sm:$0xf]
    %v230 = vld [vmem:[%s1 + $0x2f0] sm:$0xf]
    %v231 = vld [vmem:[%s1 + $0x2f4] sm:$0xf]
    %v232 = vld [vmem:[%s1 + $0x2f8] sm:$0xf]
    %v233 = vld [vmem:[%s1 + $0x2fc] sm:$0xf]
    %v234 = vld [vmem:[%s1 + $0x300] sm:$0xf]
    %v235 = vld [vmem:[%s1 + $0x304] sm:$0xf]
    %v236 = vld [vmem:[%s1 + $0x308] sm:$0xf]
    %v237 = vld [vmem:[%s1 + $0x30c] sm:$0xf]
    %v238 = vld [vmem:[%s1 + $0x310] sm:$0xf]
    %v239 = vld [vmem:[%s1 + $0x314] sm:$0xf]
    %v240 = vld [vmem:[%s1 + $0x318] sm:$0xf]
    %v241 = vld [vmem:[%s1 + $0x31c] sm:$0xf]
    %v242 = vld [vmem:[%s1 + $0x320] sm:$0xf]
    %v243 = vld [vmem:[%s1 + $0x324] sm:$0xf]
    %v244 = vld [vmem:[%s1 + $0x328] sm:$0xf]
    %v245 = vld [vmem:[%s1 + $0x32c] sm:$0xf]
    %v246 = vld [vmem:[%s1 + $0x330] sm:$0xf]
    %v247 = vld [vmem:[%s1 + $0x334] sm:$0xf]
    %v248 = vld [vmem:[%s1 + $0x338] sm:$0xf]
    %v249 = vld [vmem:[%s1 + $0x33c] sm:$0xf]
    %v250 = vld [vmem:[%s1 + $0x340] sm:$0xf]
    %v251 = vld [vmem:[%s1 + $0x344] sm:$0xf]
    %v252 = vld [vmem:[%s1 + $0x348] sm:$0xf]
    %v253 = vld [vmem:[%s1 + $0x34c] sm:$0xf]
    %v254 = vld [vmem:[%s1 + $0x350] sm:$0xf]
    %v255 = vld [vmem:[%s1 + $0x354] sm:$0xf]
    %v256 = vld [vmem:[%s1 + $0x358] sm:$0xf]
    %v257 = vld [vmem:[%s1 + $0x35c] sm:$0xf]
    %v258 = vld [vmem:[%s1 + $0x360] sm:$0xf]
    %v259 = vld [vmem:[%s1 + $0x364] sm:$0xf]
    %v260 = vld [vmem:[%s1 + $0x368] sm:$0xf]
    %v261 = vld [vmem:[%s1 + $0x36c] sm:$0xf]
    %v262 = vld [vmem:[%s1 + $0x370] sm:$0xf]
    %v263 = vld [vmem:[%s1 + $0x374] sm:$0xf]
    %v264 = vld [vmem:[%s1 + $0x378] sm:$0xf]
    %v265 = vld [vmem:[%s1 + $0x37c] sm:$0xf]
    %v266 = vld [vmem:[%s1 + $0x380] sm:$0xf]
    %v267 = vld [vmem:[%s1 + $0x384] sm:$0xf]
    %v268 = vld [vmem:[%s1 + $0x388] sm:$0xf]
    %v269 = vld [vmem:[%s1 + $0x38c] sm:$0xf]
    %v270 = vld [vmem:[%s1 + $0x390] sm:$0xf]
    %v271 = vld [vmem:[%s1 + $0x394] sm:$0xf]
    %v272 = vld [vmem:[%s1 + $0x398] sm:$0xf]
    %v273 = vld [vmem:[%s1 + $0x39c] sm:$0xf]
    %v274 = vld [vmem:[%s1 + $0x3a0] sm:$0xf]
    %v275 = vld [vmem:[%s1 + $0x3a4] sm:$0xf]
    %v276 = vld [vmem:[%s1 + $0x3a8] sm:$0xf]
    %v277 = vld [vmem:[%s1 + $0x3ac] sm:$0xf]
    %v278 = vld [vmem:[%s1 + $0x3b0] sm:$0xf]
    %v279 = vld [vmem:[%s1 + $0x3b4] sm:$0xf]
    %v280 = vld [vmem:[%s1 + $0x3b8] sm:$0xf]
    %v281 = vld [vmem:[%s1 + $0x3bc] sm:$0xf]
    %v282 = vld [vmem:[%s1 + $0x3c0] sm:$0xf]
    %v283 = vld [vmem:[%s1 + $0x3c4] sm:$0xf]
    %v284 = vld [vmem:[%s1 + $0x3c8] sm:$0xf]
    %v285 = vld [vmem:[%s1 + $0x3cc] sm:$0xf]
    %v286 = vld [vmem:[%s1 + $0x3d0] sm:$0xf]
    %v287 = vld [vmem:[%s1 + $0x3d4] sm:$0xf]
    %v288 = vld [vmem:[%s1 + $0x3d8] sm:$0xf]
    %v289 = vld [vmem:[%s1 + $0x3dc] sm:$0xf]
    %v290 = vld [vmem:[%s1 + $0x3e0] sm:$0xf]
    %v291 = vld [vmem:[%s1 + $0x3e4] sm:$0xf]
    %v292 = vld [vmem:[%s1 + $0x3e8] sm:$0xf]
    %v293 = vld [vmem:[%s1 + $0x3ec] sm:$0xf]
    %v294 = vld [vmem:[%s1 + $0x3f0] sm:$0xf]
    %v295 = vld [vmem:[%s1 + $0x3f4] sm:$0xf]
    %v296 = vld [vmem:[%s1 + $0x3f8] sm:$0xf]
    %v297 = vld [vmem:[%s1 + $0x3fc] sm:$0xf]
    %v298 = vld [vmem:[%s1 + $0x400] sm:$0xf]
    %v299 = vld [vmem:[%s1 + $0x404] sm:$0xf]
    %v300 = vld [vmem:[%s1 + $0x408] sm:$0xf]
    %v301 = vld [vmem:[%s1 + $0x40c] sm:$0xf]
    %v302 = vld [vmem:[%s1 + $0x410] sm:$0xf]
    %v303 = vld [vmem:[%s1 + $0x414] sm:$0xf]
    %v304 = vld [vmem:[%s1 + $0x418] sm:$0xf]
    %v305 = vld [vmem:[%s1 + $0x41c] sm:$0xf]
    %v306 = vld [vmem:[%s1 + $0x420] sm:$0xf]
    %v307 = vld [vmem:[%s1 + $0x424] sm:$0xf]
    %v308 = vld [vmem:[%s1 + $0x428] sm:$0xf]
    %v309 = vld [vmem:[%s1 + $0x42c] sm:$0xf]
    %v310 = vld [vmem:[%s1 + $0x430] sm:$0xf]
    %v311 = vld [vmem:[%s1 + $0x434] sm:$0xf]
    %v312 = vld [vmem:[%s1 + $0x438] sm:$0xf]
    %v313 = vld [vmem:[%s1 + $0x43c] sm:$0xf]
    %v314 = vld [vmem:[%s1 + $0x440] sm:$0xf]
    %v315 = vld [vmem:[%s1 + $0x444] sm:$0xf]
    %v316 = vld [vmem:[%s1 + $0x448] sm:$0xf]
    %v317 = vld [vmem:[%s1 + $0x44c] sm:$0xf]
    %v318 = vld [vmem:[%s1 + $0x450] sm:$0xf]
    %v319 = vld [vmem:[%s1 + $0x454] sm:$0xf]
    %v320 = vld [vmem:[%s1 + $0x458] sm:$0xf]
    %v321 = vld [vmem:[%s1 + $0x45c] sm:$0xf]
    %v322 = vld [vmem:[%s1 + $0x460] sm:$0xf]
    %v323 = vld [vmem:[%s1 + $0x464] sm:$0xf]
    %v324 = vld [vmem:[%s1 + $0x468] sm:$0xf]
    %v325 = vld [vmem:[%s1 + $0x46c] sm:$0xf]
    %v326 = vld [vmem:[%s1 + $0x470] sm:$0xf]
    %v327 = vld [vmem:[%s1 + $0x474] sm:$0xf]
    %v328 = vld [vmem:[%s1 + $0x478] sm:$0xf]
    %v329 = vld [vmem:[%s1 + $0x47c] sm:$0xf]
    %v330 = vld [vmem:[%s1 + $0x480] sm:$0xf]
    %v331 = vld [vmem:[%s1 + $0x484] sm:$0xf]
    %v332 = vld [vmem:[%s1 + $0x488] sm:$0xf]
    %v333 = vld [vmem:[%s1 + $0x48c] sm:$0xf]
    %v334 = vld [vmem:[%s1 + $0x490] sm:$0xf]
    %v335 = vld [vmem:[%s1 + $0x494] sm:$0xf]
    %v336 = vld [vmem:[%s1 + $0x498] sm:$0xf]
    %v337 = vld [vmem:[%s1 + $0x49c] sm:$0xf]
    %v338 = vld [vmem:[%s1 + $0x4a0] sm:$0xf]
    %v339 = vld [vmem:[%s1 + $0x4a4] sm:$0xf]
    %v340 = vld [vmem:[%s1 + $0x4a8] sm:$0xf]
    %v341 = vld [vmem:[%s1 + $0x4ac] sm:$0xf]
    %v342 = vld [vmem:[%s1 + $0x4b0] sm:$0xf]
    %v343 = vld [vmem:[%s1 + $0x4b4] sm:$0xf]
    %v344 = vld [vmem:[%s1 + $0x4b8] sm:$0xf]
    %v345 = vld [vmem:[%s1 + $0x4bc] sm:$0xf]
    %v346 = vld [vmem:[%s1 + $0x4c0] sm:$0xf]
    %v347 = vld [vmem:[%s1 + $0x4c4] sm:$0xf]
    %v348 = vld [vmem:[%s1 + $0x4c8] sm:$0xf]
    %v349 = vld [vmem:[%s1 + $0x4cc] sm:$0xf]
    %v350 = vld [vmem:[%s1 + $0x4d0] sm:$0xf]
    %v351 = vld [vmem:[%s1 + $0x4d4] sm:$0xf]
    %v352 = vld [vmem:[%s1 + $0x4d8] sm:$0xf]
    %v353 = vld [vmem:[%s1 + $0x4dc] sm:$0xf]
    %v354 = vld [vmem:[%s1 + $0x4e0] sm:$0xf]
    %v355 = vld [vmem:[%s1 + $0x4e4] sm:$0xf]
    %v356 = vld [vmem:[%s1 + $0x4e8] sm:$0xf]
    %v357 = vld [vmem:[%s1 + $0x4ec] sm:$0xf]
    %v358 = vld [vmem:[%s1 + $0x4f0] sm:$0xf]
    %v359 = vld [vmem:[%s1 + $0x4f4] sm:$0xf]
    %v360 = vld [vmem:[%s1 + $0x4f8] sm:$0xf]
    %v361 = vld [vmem:[%s1 + $0x4fc] sm:$0xf]
    %v362 = vld [vmem:[%s1 + $0x500] sm:$0xf]
    %v363 = vld [vmem:[%s1 + $0x504] sm:$0xf]
    %v364 = vld [vmem:[%s1 + $0x508] sm:$0xf]
    %v365 = vld [vmem:[%s1 + $0x50c] sm:$0xf]
    %v366 = vld [vmem:[%s1 + $0x510] sm:$0xf]
    %v367 = vld [vmem:[%s1 + $0x514] sm:$0xf]
    %v368 = vld [vmem:[%s1 + $0x518] sm:$0xf]
    %v369 = vld [vmem:[%s1 + $0x51c] sm:$0xf]
    %v370 = vld [vmem:[%s1 + $0x520] sm:$0xf]
    %v371 = vld [vmem:[%s1 + $0x524] sm:$0xf]
    %v372 = vld [vmem:[%s1 + $0x528] sm:$0xf]
    %v373 = vld [vmem:[%s1 + $0x52c] sm:$0xf]
    %v374 = vld [vmem:[%s1 + $0x530] sm:$0xf]
    %v375 = vld [vmem:[%s1 + $0x534] sm:$0xf]
    %v376 = vld [vmem:[%s1 + $0x538] sm:$0xf]
    %v377 = vld [vmem:[%s1 + $0x53c] sm:$0xf]
    %v378 = vld [vmem:[%s1 + $0x540] sm:$0xf]
    %v379 = vld [vmem:[%s1 + $0x544] sm:$0xf]
    %v380 = vld [vmem:[%s1 + $0x548] sm:$0xf]
    %v381 = vld [vmem:[%s1 + $0x54c] sm:$0xf]
    %v382 = vld [vmem:[%s1 + $0x550] sm:$0xf]
    %v383 = vld [vmem:[%s1 + $0x554] sm:$0xf]
    %v384 = vld [vmem:[%s1 + $0x558] sm:$0xf]
    %v385 = vld [vmem:[%s1 + $0x55c] sm:$0xf]
    %v386 = vld [vmem:[%s1 + $0x560] sm:$0xf]
    %v387 = vld [vmem:[%s1 + $0x564] sm:$0xf]
    %v388 = vld [vmem:[%s1 + $0x568] sm:$0xf]
    %v389 = vld [vmem:[%s1 + $0x56c] sm:$0xf]
    %v390 = vld [vmem:[%s1 + $0x570] sm:$0xf]
    %v391 = vld [vmem:[%s1 + $0x574] sm:$0xf]
    %v392 = vld [vmem:[%s1 + $0x578] sm:$0xf]
    %v393 = vld [vmem:[%s1 + $0x57c] sm:$0xf]
    %v394 = vld [vmem:[%s1 + $0x580] sm:$0xf]
    %v395 = vld [vmem:[%s1 + $0x584] sm:$0xf]
    %v396 = vld [vmem:[%s1 + $0x588] sm:$0xf]
    %v397 = vld [vmem:[%s1 + $0x58c] sm:$0xf]
    %v398 = vld [vmem:[%s1 + $0x590] sm:$0xf]
    %v399 = vld [vmem:[%s1 + $0x594] sm:$0xf]
    %v400 = vld [vmem:[%s1 + $0x598] sm:$0xf]
    %v401 = vld [vmem:[%s1 + $0x59c] sm:$0xf]
    %v402 = vld [vmem:[%s1 + $0x5a0] sm:$0xf]
    %v403 = vld [vmem:[%s1 + $0x5a4] sm:$0xf]
    %v404 = vld [vmem:[%s1 + $0x5a8] sm:$0xf]
    %v405 = vld [vmem:[%s1 + $0x5ac] sm:$0xf]
    %v406 = vld [vmem:[%s1 + $0x5b0] sm:$0xf]
    %v407 = vld [vmem:[%s1 + $0x5b4] sm:$0xf]
    %v408 = vld [vmem:[%s1 + $0x5b8] sm:$0xf]
    %v409 = vld [vmem:[%s1 + $0x5bc] sm:$0xf]
    %v410 = vld [vmem:[%s1 + $0x5c0] sm:$0xf]
    %v411 = vld [vmem:[%s1 + $0x5c4] sm:$0xf]
    %v412 = vld [vmem:[%s1 + $0x5c8] sm:$0xf]
    %v413 = vld [vmem:[%s1 + $0x5cc] sm:$0xf]
    %v414 = vld [vmem:[%s1 + $0x5d0] sm:$0xf]
    %v415 = vld [vmem:[%s1 + $0x5d4] sm:$0xf]
    %v416 = vld [vmem:[%s1 + $0x5d8] sm:$0xf]
    %v417 = vld [vmem:[%s1 + $0x5dc] sm:$0xf]
    %v418 = vld [vmem:[%s1 + $0x5e0] sm:$0xf]
    %v419 = vld [vmem:[%s1 + $0x5e4] sm:$0xf]
    %v420 = vld [vmem:[%s1 + $0x5e8] sm:$0xf]
    %v421 = vld [vmem:[%s1 + $0x5ec] sm:$0xf]
    %v422 = vld [vmem:[%s1 + $0x5f0] sm:$0xf]
    %v423 = vld [vmem:[%s1 + $0x5f4] sm:$0xf]
    %v424 = vld [vmem:[%s1 + $0x5f8] sm:$0xf]
    %v425 = vld [vmem:[%s1 + $0x5fc] sm:$0xf]
    %v426 = vld [vmem:[%s1 + $0x600] sm:$0xf]
    %v427 = vld [vmem:[%s1 + $0x604] sm:$0xf]
    %v428 = vld [vmem:[%s1 + $0x608] sm:$0xf]
    %v429 = vld [vmem:[%s1 + $0x60c] sm:$0xf]
    %v430 = vld [vmem:[%s1 + $0x610] sm:$0xf]
    %v431 = vld [vmem:[%s1 + $0x614] sm:$0xf]
    %v432 = vld [vmem:[%s1 + $0x618] sm:$0xf]
    %v433 = vld [vmem:[%s1 + $0x61c] sm:$0xf]
    %v434 = vld [vmem:[%s1 + $0x620] sm:$0xf]
    %v435 = vld [vmem:[%s1 + $0x624] sm:$0xf]
    %v436 = vld [vmem:[%s1 + $0x628] sm:$0xf]
    %v437 = vld [vmem:[%s1 + $0x62c] sm:$0xf]
    %v438 = vld [vmem:[%s1 + $0x630] sm:$0xf]
    %v439 = vld [vmem:[%s1 + $0x634] sm:$0xf]
    %v440 = vld [vmem:[%s1 + $0x638] sm:$0xf]
    %v441 = vld [vmem:[%s1 + $0x63c] sm:$0xf]
    %v442 = vld [vmem:[%s1 + $0x640] sm:$0xf]
    %v443 = vld [vmem:[%s1 + $0x644] sm:$0xf]
    %v444 = vld [vmem:[%s1 + $0x648] sm:$0xf]
    %v445 = vld [vmem:[%s1 + $0x64c] sm:$0xf]
    %v446 = vld [vmem:[%s1 + $0x650] sm:$0xf]
    %v447 = vld [vmem:[%s1 + $0x654] sm:$0xf]
    %v448 = vld [vmem:[%s1 + $0x658] sm:$0xf]
    %v449 = vld [vmem:[%s1 + $0x65c] sm:$0xf]
    %v450 = vld [vmem:[%s1 + $0x660] sm:$0xf]
    %v451 = vld [vmem:[%s1 + $0x664] sm:$0xf]
    %v452 = vld [vmem:[%s1 + $0x668] sm:$0xf]
    %v453 = vld [vmem:[%s1 + $0x66c] sm:$0xf]
    %v454 = vld [vmem:[%s1 + $0x670] sm:$0xf]
    %v455 = vld [vmem:[%s1 + $0x674] sm:$0xf]
    %v456 = vld [vmem:[%s1 + $0x678] sm:$0xf]
    %v457 = vld [vmem:[%s1 + $0x67c] sm:$0xf]
    %v458 = vld [vmem:[%s1 + $0x680] sm:$0xf]
    %v459 = vld [vmem:[%s1 + $0x684] sm:$0xf]
    %v460 = vld [vmem:[%s1 + $0x688] sm:$0xf]
    %v461 = vld [vmem:[%s1 + $0x68c] sm:$0xf]
    %v462 = vld [vmem:[%s1 + $0x690] sm:$0xf]
    %v463 = vld [vmem:[%s1 + $0x694] sm:$0xf]
    %v464 = vld [vmem:[%s1 + $0x698] sm:$0xf]
    %v465 = vld [vmem:[%s1 + $0x69c] sm:$0xf]
    %v466 = vld [vmem:[%s1 + $0x6a0] sm:$0xf]
    %v467 = vld [vmem:[%s1 + $0x6a4] sm:$0xf]
    %v468 = vld [vmem:[%s1 + $0x6a8] sm:$0xf]
    %v469 = vld [vmem:[%s1 + $0x6ac] sm:$0xf]
    %v470 = vld [vmem:[%s1 + $0x6b0] sm:$0xf]
    %v471 = vld [vmem:[%s1 + $0x6b4] sm:$0xf]
    %v472 = vld [vmem:[%s1 + $0x6b8] sm:$0xf]
    %v473 = vld [vmem:[%s1 + $0x6bc] sm:$0xf]
    %v474 = vld [vmem:[%s1 + $0x6c0] sm:$0xf]
    %v475 = vld [vmem:[%s1 + $0x6c4] sm:$0xf]
    %v476 = vld [vmem:[%s1 + $0x6c8] sm:$0xf]
    %v477 = vld [vmem:[%s1 + $0x6cc] sm:$0xf]
    %v478 = vld [vmem:[%s1 + $0x6d0] sm:$0xf]
    %v479 = vld [vmem:[%s1 + $0x6d4] sm:$0xf]
    %v480 = vld [vmem:[%s1 + $0x6d8] sm:$0xf]
    %v481 = vld [vmem:[%s1 + $0x6dc] sm:$0xf]
    %v482 = vld [vmem:[%s1 + $0x6e0] sm:$0xf]
    %v483 = vld [vmem:[%s1 + $0x6e4] sm:$0xf]
    %v484 = vld [vmem:[%s1 + $0x6e8] sm:$0xf]
    %v485 = vld [vmem:[%s1 + $0x6ec] sm:$0xf]
    %v486 = vld [vmem:[%s1 + $0x6f0] sm:$0xf]
    %v487 = vld [vmem:[%s1 + $0x6f4] sm:$0xf]
    %v488 = vld [vmem:[%s1 + $0x6f8] sm:$0xf]
    %v489 = vld [vmem:[%s1 + $0x6fc] sm:$0xf]
    %v490 = vld [vmem:[%s1 + $0x700] sm:$0xf]
    %v491 = vld [vmem:[%s1 + $0x704] sm:$0xf]
    %v492 = vld [vmem:[%s1 + $0x708] sm:$0xf]
    %v493 = vld [vmem:[%s1 + $0x70c] sm:$0xf]
    %v494 = vld [vmem:[%s1 + $0x710] sm:$0xf]
    %v495 = vld [vmem:[%s1 + $0x714] sm:$0xf]
    %v496 = vld [vmem:[%s1 + $0x718] sm:$0xf]
    %v497 = vld [vmem:[%s1 + $0x71c] sm:$0xf]
    %v498 = vld [vmem:[%s1 + $0x720] sm:$0xf]
    %v499 = vld [vmem:[%s1 + $0x724] sm:$0xf]
    %v500 = vld [vmem:[%s1 + $0x728] sm:$0xf]
    %v501 = vld [vmem:[%s1 + $0x72c] sm:$0xf]
    %v502 = vld [vmem:[%s1 + $0x730] sm:$0xf]
    %v503 = vld [vmem:[%s1 + $0x734] sm:$0xf]
    %v504 = vld [vmem:[%s1 + $0x738] sm:$0xf]
    %v505 = vld [vmem:[%s1 + $0x73c] sm:$0xf]
    %v506 = vld [vmem:[%s1 + $0x740] sm:$0xf]
    %v507 = vld [vmem:[%s1 + $0x744] sm:$0xf]
    %v508 = vld [vmem:[%s1 + $0x748] sm:$0xf]
    %v509 = vld [vmem:[%s1 + $0x74c] sm:$0xf]
    %v510 = vld [vmem:[%s1 + $0x750] sm:$0xf]
    %v511 = vld [vmem:[%s1 + $0x754] sm:$0xf]
    %v512 = vld [vmem:[%s1 + $0x758] sm:$0xf]
    %v513 = vld [vmem:[%s1 + $0x75c] sm:$0xf]
    %v514 = vld [vmem:[%s1 + $0x760] sm:$0xf]
    %v515 = vld [vmem:[%s1 + $0x764] sm:$0xf]
    %v516 = vld [vmem:[%s1 + $0x768] sm:$0xf]
    %v517 = vld [vmem:[%s1 + $0x76c] sm:$0xf]
    %v518 = vld [vmem:[%s1 + $0x770] sm:$0xf]
    %v519 = vld [vmem:[%s1 + $0x774] sm:$0xf]
    %v520 = vld [vmem:[%s1 + $0x778] sm:$0xf]
    %v521 = vld [vmem:[%s1 + $0x77c] sm:$0xf]
    %v522 = vld [vmem:[%s1 + $0x780] sm:$0xf]
    %v523 = vld [vmem:[%s1 + $0x784] sm:$0xf]
    %v524 = vld [vmem:[%s1 + $0x788] sm:$0xf]
    %v525 = vld [vmem:[%s1 + $0x78c] sm:$0xf]
    %v526 = vld [vmem:[%s1 + $0x790] sm:$0xf]
    %v527 = vld [vmem:[%s1 + $0x794] sm:$0xf]
    %v528 = vld [vmem:[%s1 + $0x798] sm:$0xf]
    %v529 = vld [vmem:[%s1 + $0x79c] sm:$0xf]
    %v530 = vld [vmem:[%s1 + $0x7a0] sm:$0xf]
    %v531 = vld [vmem:[%s1 + $0x7a4] sm:$0xf]
    %v532 = vld [vmem:[%s1 + $0x7a8] sm:$0xf]
    %v533 = vld [vmem:[%s1 + $0x7ac] sm:$0xf]
    %v534 = vld [vmem:[%s1 + $0x7b0] sm:$0xf]
    %v535 = vld [vmem:[%s1 + $0x7b4] sm:$0xf]
    %v536 = vld [vmem:[%s1 + $0x7b8] sm:$0xf]
    %v537 = vld [vmem:[%s1 + $0x7bc] sm:$0xf]
    %v538 = vld [vmem:[%s1 + $0x7c0] sm:$0xf]
    %v539 = vld [vmem:[%s1 + $0x7c4] sm:$0xf]
    %v540 = vld [vmem:[%s1 + $0x7c8] sm:$0xf]
    %v541 = vld [vmem:[%s1 + $0x7cc] sm:$0xf]
    %v542 = vld [vmem:[%s1 + $0x7d0] sm:$0xf]
    %v543 = vld [vmem:[%s1 + $0x7d4] sm:$0xf]
    %v544 = vld [vmem:[%s1 + $0x7d8] sm:$0xf]
    %v545 = vld [vmem:[%s1 + $0x7dc] sm:$0xf]
    %v546 = vld [vmem:[%s1 + $0x7e0] sm:$0xf]
    %v547 = vld [vmem:[%s1 + $0x7e4] sm:$0xf]
    %v548 = vld [vmem:[%s1 + $0x7e8] sm:$0xf]
    %v549 = vld [vmem:[%s1 + $0x7ec] sm:$0xf]
    %v550 = vld [vmem:[%s1 + $0x7f0] sm:$0xf]
    %v551 = vld [vmem:[%s1 + $0x7f4] sm:$0xf]
    %v552 = vld [vmem:[%s1 + $0x7f8] sm:$0xf]
    %v553 = vld [vmem:[%s1 + $0x7fc] sm:$0xf]
    %v554 = vld [vmem:[%s1 + $0x800] sm:$0xf]
    %v555 = vld [vmem:[%s1 + $0x804] sm:$0xf]
    %v556 = vld [vmem:[%s1 + $0x808] sm:$0xf]
    %v557 = vld [vmem:[%s1 + $0x80c] sm:$0xf]
    %v558 = vld [vmem:[%s1 + $0x810] sm:$0xf]
    %v559 = vld [vmem:[%s1 + $0x814] sm:$0xf]
    %v560 = vld [vmem:[%s1 + $0x818] sm:$0xf]
    %v561 = vld [vmem:[%s1 + $0x81c] sm:$0xf]
    %v562 = vld [vmem:[%s1 + $0x820] sm:$0xf]
    %v563 = vld [vmem:[%s1 + $0x824] sm:$0xf]
    %v564 = vld [vmem:[%s1 + $0x828] sm:$0xf]
    %v565 = vld [vmem:[%s1 + $0x82c] sm:$0xf]
    %v566 = vld [vmem:[%s1 + $0x830] sm:$0xf]
    %v567 = vld [vmem:[%s1 + $0x834] sm:$0xf]
    %v568 = vld [vmem:[%s1 + $0x838] sm:$0xf]
    %v569 = vld [vmem:[%s1 + $0x83c] sm:$0xf]
    %v570 = vld [vmem:[%s1 + $0x840] sm:$0xf]
    %v571 = vld [vmem:[%s1 + $0x844] sm:$0xf]
    %v572 = vld [vmem:[%s1 + $0x848] sm:$0xf]
    %v573 = vld [vmem:[%s1 + $0x84c] sm:$0xf]
    %v574 = vld [vmem:[%s1 + $0x850] sm:$0xf]
    %v575 = vld [vmem:[%s1 + $0x854] sm:$0xf]
    %v576 = vld [vmem:[%s1 + $0x858] sm:$0xf]
    %v577 = vld [vmem:[%s1 + $0x85c] sm:$0xf]
    %v578 = vld [vmem:[%s1 + $0x860] sm:$0xf]
    %v579 = vld [vmem:[%s1 + $0x864] sm:$0xf]
    %v580 = vld [vmem:[%s1 + $0x868] sm:$0xf]
    %v581 = vld [vmem:[%s1 + $0x86c] sm:$0xf]
    %v582 = vld [vmem:[%s1 + $0x870] sm:$0xf]
    %v583 = vld [vmem:[%s1 + $0x874] sm:$0xf]
    %v584 = vld [vmem:[%s1 + $0x878] sm:$0xf]
    %v585 = vld [vmem:[%s1 + $0x87c] sm:$0xf]
    %v586 = vld [vmem:[%s1 + $0x880] sm:$0xf]
    %v587 = vld [vmem:[%s1 + $0x884] sm:$0xf]
    %v588 = vld [vmem:[%s1 + $0x888] sm:$0xf]
    %v589 = vld [vmem:[%s1 + $0x88c] sm:$0xf]
    %v590 = vld [vmem:[%s1 + $0x890] sm:$0xf]
    %v591 = vld [vmem:[%s1 + $0x894] sm:$0xf]
    %v592 = vld [vmem:[%s1 + $0x898] sm:$0xf]
    %v593 = vld [vmem:[%s1 + $0x89c] sm:$0xf]
    %v594 = vld [vmem:[%s1 + $0x8a0] sm:$0xf]
    %v595 = vld [vmem:[%s1 + $0x8a4] sm:$0xf]
    %v596 = vld [vmem:[%s1 + $0x8a8] sm:$0xf]
    %v597 = vld [vmem:[%s1 + $0x8ac] sm:$0xf]
    %v598 = vld [vmem:[%s1 + $0x8b0] sm:$0xf]
    %v599 = vld [vmem:[%s1 + $0x8b4] sm:$0xf]
    %v600 = vld [vmem:[%s1 + $0x8b8] sm:$0xf]
    %v601 = vld [vmem:[%s1 + $0x8bc] sm:$0xf]
    %v602 = vld [vmem:[%s1 + $0x8c0] sm:$0xf]
    %v603 = vld [vmem:[%s1 + $0x8c4] sm:$0xf]
    %v604 = vld [vmem:[%s1 + $0x8c8] sm:$0xf]
    %v605 = vld [vmem:[%s1 + $0x8cc] sm:$0xf]
    %v606 = vld [vmem:[%s1 + $0x8d0] sm:$0xf]
    %v607 = vld [vmem:[%s1 + $0x8d4] sm:$0xf]
    %v608 = vld [vmem:[%s1 + $0x8d8] sm:$0xf]
    %v609 = vld [vmem:[%s1 + $0x8dc] sm:$0xf]
    %v610 = vld [vmem:[%s1 + $0x8e0] sm:$0xf]
    %v611 = vld [vmem:[%s1 + $0x8e4] sm:$0xf]
    %v612 = vld [vmem:[%s1 + $0x8e8] sm:$0xf]
    %v613 = vld [vmem:[%s1 + $0x8ec] sm:$0xf]
    %v614 = vld [vmem:[%s1 + $0x8f0] sm:$0xf]
    %v615 = vld [vmem:[%s1 + $0x8f4] sm:$0xf]
    %v616 = vld [vmem:[%s1 + $0x8f8] sm:$0xf]
    %v617 = vld [vmem:[%s1 + $0x8fc] sm:$0xf]
    %v618 = vld [vmem:[%s1 + $0x900] sm:$0xf]
    %v619 = vld [vmem:[%s1 + $0x904] sm:$0xf]
    %v620 = vld [vmem:[%s1 + $0x908] sm:$0xf]
    %v621 = vld [vmem:[%s1 + $0x90c] sm:$0xf]
    %v622 = vld [vmem:[%s1 + $0x910] sm:$0xf]
    %v623 = vld [vmem:[%s1 + $0x914] sm:$0xf]
    %v624 = vld [vmem:[%s1 + $0x918] sm:$0xf]
    %v625 = vld [vmem:[%s1 + $0x91c] sm:$0xf]
    %v626 = vld [vmem:[%s1 + $0x920] sm:$0xf]
    %v627 = vld [vmem:[%s1 + $0x924] sm:$0xf]
    %v628 = vld [vmem:[%s1 + $0x928] sm:$0xf]
    %v629 = vld [vmem:[%s1 + $0x92c] sm:$0xf]
    %v630 = vld [vmem:[%s1 + $0x930] sm:$0xf]
    %v631 = vld [vmem:[%s1 + $0x934] sm:$0xf]
    %v632 = vld [vmem:[%s1 + $0x938] sm:$0xf]
    %v633 = vld [vmem:[%s1 + $0x93c] sm:$0xf]
    %v634 = vld [vmem:[%s1 + $0x940] sm:$0xf]
    %v635 = vld [vmem:[%s1 + $0x944] sm:$0xf]
    %v636 = vld [vmem:[%s1 + $0x948] sm:$0xf]
    %v637 = vld [vmem:[%s1 + $0x94c] sm:$0xf]
    %v638 = vld [vmem:[%s1 + $0x950] sm:$0xf]
    %v639 = vld [vmem:[%s1 + $0x954] sm:$0xf]
    %v640 = vld [vmem:[%s1 + $0x958] sm:$0xf]
    %v641 = vld [vmem:[%s1 + $0x95c] sm:$0xf]
    %v642 = vld [vmem:[%s1 + $0x960] sm:$0xf]
    %v643 = vld [vmem:[%s1 + $0x964] sm:$0xf]
    %v644 = vld [vmem:[%s1 + $0x968] sm:$0xf]
    %v645 = vld [vmem:[%s1 + $0x96c] sm:$0xf]
    %v646 = vld [vmem:[%s1 + $0x970] sm:$0xf]
    %v647 = vld [vmem:[%s1 + $0x974] sm:$0xf]
    %v648 = vld [vmem:[%s1 + $0x978] sm:$0xf]
    %v649 = vld [vmem:[%s1 + $0x97c] sm:$0xf]
    %v650 = vld [vmem:[%s1 + $0x980] sm:$0xf]
    %v651 = vld [vmem:[%s1 + $0x984] sm:$0xf]
    %v652 = vld [vmem:[%s1 + $0x988] sm:$0xf]
    %v653 = vld [vmem:[%s1 + $0x98c] sm:$0xf]
    %v654 = vld [vmem:[%s1 + $0x990] sm:$0xf]
    %v655 = vld [vmem:[%s1 + $0x994] sm:$0xf]
    %v656 = vld [vmem:[%s1 + $0x998] sm:$0xf]
    %v657 = vld [vmem:[%s1 + $0x99c] sm:$0xf]
    %v658 = vld [vmem:[%s1 + $0x9a0] sm:$0xf]
    %v659 = vld [vmem:[%s1 + $0x9a4] sm:$0xf]
    %v660 = vld [vmem:[%s1 + $0x9a8] sm:$0xf]
    %v661 = vld [vmem:[%s1 + $0x9ac] sm:$0xf]
    %v662 = vld [vmem:[%s1 + $0x9b0] sm:$0xf]
    %v663 = vld [vmem:[%s1 + $0x9b4] sm:$0xf]
    %v664 = vld [vmem:[%s1 + $0x9b8] sm:$0xf]
    %v665 = vld [vmem:[%s1 + $0x9bc] sm:$0xf]
    %v666 = vld [vmem:[%s1 + $0x9c0] sm:$0xf]
    %v667 = vld [vmem:[%s1 + $0x9c4] sm:$0xf]
    %v668 = vld [vmem:[%s1 + $0x9c8] sm:$0xf]
    %v669 = vld [vmem:[%s1 + $0x9cc] sm:$0xf]
    %v670 = vld [vmem:[%s1 + $0x9d0] sm:$0xf]
    %v671 = vld [vmem:[%s1 + $0x9d4] sm:$0xf]
    %v672 = vld [vmem:[%s1 + $0x9d8] sm:$0xf]
    %v673 = vld [vmem:[%s1 + $0x9dc] sm:$0xf]
    %v674 = vld [vmem:[%s1 + $0x9e0] sm:$0xf]
    %v675 = vld [vmem:[%s1 + $0x9e4] sm:$0xf]
    %v676 = vld [vmem:[%s1 + $0x9e8] sm:$0xf]
    %v677 = vld [vmem:[%s1 + $0x9ec] sm:$0xf]
    %v678 = vld [vmem:[%s1 + $0x9f0] sm:$0xf]
    %v679 = vld [vmem:[%s1 + $0x9f4] sm:$0xf]
    %v680 = vld [vmem:[%s1 + $0x9f8] sm:$0xf]
    %v681 = vld [vmem:[%s1 + $0x9fc] sm:$0xf]
    %v682 = vld [vmem:[%s1 + $0xa00] sm:$0xf]
    %v683 = vld [vmem:[%s1 + $0xa04] sm:$0xf]
    %v684 = vld [vmem:[%s1 + $0xa08] sm:$0xf]
    %v685 = vld [vmem:[%s1 + $0xa0c] sm:$0xf]
    %v686 = vld [vmem:[%s1 + $0xa10] sm:$0xf]
    %v687 = vld [vmem:[%s1 + $0xa14] sm:$0xf]
    %v688 = vld [vmem:[%s1 + $0xa18] sm:$0xf]
    %v689 = vld [vmem:[%s1 + $0xa1c] sm:$0xf]
    %v690 = vld [vmem:[%s1 + $0xa20] sm:$0xf]
    %v691 = vld [vmem:[%s1 + $0xa24] sm:$0xf]
    %v692 = vld [vmem:[%s1 + $0xa28] sm:$0xf]
    %v693 = vld [vmem:[%s1 + $0xa2c] sm:$0xf]
    %v694 = vld [vmem:[%s1 + $0xa30] sm:$0xf]
    %v695 = vld [vmem:[%s1 + $0xa34] sm:$0xf]
    %v696 = vld [vmem:[%s1 + $0xa38] sm:$0xf]
    %v697 = vld [vmem:[%s1 + $0xa3c] sm:$0xf]
    %v698 = vld [vmem:[%s1 + $0xa40] sm:$0xf]
    %v699 = vld [vmem:[%s1 + $0xa44] sm:$0xf]
    %v700 = vld [vmem:[%s1 + $0xa48] sm:$0xf]
    %v701 = vld [vmem:[%s1 + $0xa4c] sm:$0xf]
    %v702 = vld [vmem:[%s1 + $0xa50] sm:$0xf]
    %v703 = vld [vmem:[%s1 + $0xa54] sm:$0xf]
    %v704 = vld [vmem:[%s1 + $0xa58] sm:$0xf]
    %v705 = vld [vmem:[%s1 + $0xa5c] sm:$0xf]
    %v706 = vld [vmem:[%s1 + $0xa60] sm:$0xf]
    %v707 = vld [vmem:[%s1 + $0xa64] sm:$0xf]
    %v708 = vld [vmem:[%s1 + $0xa68] sm:$0xf]
    %v709 = vld [vmem:[%s1 + $0xa6c] sm:$0xf]
    %v710 = vld [vmem:[%s1 + $0xa70] sm:$0xf]
    %v711 = vld [vmem:[%s1 + $0xa74] sm:$0xf]
    %v712 = vld [vmem:[%s1 + $0xa78] sm:$0xf]
    %v713 = vld [vmem:[%s1 + $0xa7c] sm:$0xf]
    %v714 = vld [vmem:[%s1 + $0xa80] sm:$0xf]
    %v715 = vld [vmem:[%s1 + $0xa84] sm:$0xf]
    %v716 = vld [vmem:[%s1 + $0xa88] sm:$0xf]
    %v717 = vld [vmem:[%s1 + $0xa8c] sm:$0xf]
    %v718 = vld [vmem:[%s1 + $0xa90] sm:$0xf]
    %v719 = vld [vmem:[%s1 + $0xa94] sm:$0xf]
    %v720 = vld [vmem:[%s1 + $0xa98] sm:$0xf]
    %v721 = vld [vmem:[%s1 + $0xa9c] sm:$0xf]
    %v722 = vld [vmem:[%s1 + $0xaa0] sm:$0xf]
    %v723 = vld [vmem:[%s1 + $0xaa4] sm:$0xf]
    %v724 = vld [vmem:[%s1 + $0xaa8] sm:$0xf]
    %v725 = vld [vmem:[%s1 + $0xaac] sm:$0xf]
    %v726 = vld [vmem:[%s1 + $0xab0] sm:$0xf]
    %v727 = vld [vmem:[%s1 + $0xab4] sm:$0xf]
    %v728 = vld [vmem:[%s1 + $0xab8] sm:$0xf]
    %v729 = vld [vmem:[%s1 + $0xabc] sm:$0xf]
    %v730 = vld [vmem:[%s1 + $0xac0] sm:$0xf]
    %v731 = vld [vmem:[%s1 + $0xac4] sm:$0xf]
    %v732 = vld [vmem:[%s1 + $0xac8] sm:$0xf]
    %v733 = vld [vmem:[%s1 + $0xacc] sm:$0xf]
    %v734 = vld [vmem:[%s1 + $0xad0] sm:$0xf]
    %v735 = vld [vmem:[%s1 + $0xad4] sm:$0xf]
    %v736 = vld [vmem:[%s1 + $0xad8] sm:$0xf]
    %v737 = vld [vmem:[%s1 + $0xadc] sm:$0xf]
    %v738 = vld [vmem:[%s1 + $0xae0] sm:$0xf]
    %v739 = vld [vmem:[%s1 + $0xae4] sm:$0xf]
    %v740 = vld [vmem:[%s1 + $0xae8] sm:$0xf]
    %v741 = vld [vmem:[%s1 + $0xaec] sm:$0xf]
    %v742 = vld [vmem:[%s1 + $0xaf0] sm:$0xf]
    %v743 = vld [vmem:[%s1 + $0xaf4] sm:$0xf]
    %v744 = vld [vmem:[%s1 + $0xaf8] sm:$0xf]
    %v745 = vld [vmem:[%s1 + $0xafc] sm:$0xf]
    %v746 = vld [vmem:[%s1 + $0xb00] sm:$0xf]
    %v747 = vld [vmem:[%s1 + $0xb04] sm:$0xf]
    %v748 = vld [vmem:[%s1 + $0xb08] sm:$0xf]
    %v749 = vld [vmem:[%s1 + $0xb0c] sm:$0xf]
    %v750 = vld [vmem:[%s1 + $0xb10] sm:$0xf]
    %v751 = vld [vmem:[%s1 + $0xb14] sm:$0xf]
    %v752 = vld [vmem:[%s1 + $0xb18] sm:$0xf]
    %v753 = vld [vmem:[%s1 + $0xb1c] sm:$0xf]
    %v754 = vld [vmem:[%s1 + $0xb20] sm:$0xf]
    %v755 = vld [vmem:[%s1 + $0xb24] sm:$0xf]
    %v756 = vld [vmem:[%s1 + $0xb28] sm:$0xf]
    %v757 = vld [vmem:[%s1 + $0xb2c] sm:$0xf]
    %v758 = vld [vmem:[%s1 + $0xb30] sm:$0xf]
    %v759 = vld [vmem:[%s1 + $0xb34] sm:$0xf]
    %v760 = vld [vmem:[%s1 + $0xb38] sm:$0xf]
    %v761 = vld [vmem:[%s1 + $0xb3c] sm:$0xf]
    %v762 = vld [vmem:[%s1 + $0xb40] sm:$0xf]
    %v763 = vld [vmem:[%s1 + $0xb44] sm:$0xf]
    %v764 = vld [vmem:[%s1 + $0xb48] sm:$0xf]
    %v765 = vld [vmem:[%s1 + $0xb4c] sm:$0xf]
    %v766 = vld [vmem:[%s1 + $0xb50] sm:$0xf]
    %v767 = vld [vmem:[%s1 + $0xb54] sm:$0xf]
    %v768 = vld [vmem:[%s1 + $0xb58] sm:$0xf]
    %v769 = vld [vmem:[%s1 + $0xb5c] sm:$0xf]
    %v770 = vld [vmem:[%s1 + $0xb60] sm:$0xf]
    %v771 = vld [vmem:[%s1 + $0xb64] sm:$0xf]
    %v772 = vld [vmem:[%s1 + $0xb68] sm:$0xf]
    %v773 = vld [vmem:[%s1 + $0xb6c] sm:$0xf]
    %v774 = vld [vmem:[%s1 + $0xb70] sm:$0xf]
    %v775 = vld [vmem:[%s1 + $0xb74] sm:$0xf]
    %v776 = vld [vmem:[%s1 + $0xb78] sm:$0xf]
    %v777 = vld [vmem:[%s1 + $0xb7c] sm:$0xf]
    %v778 = vld [vmem:[%s1 + $0xb80] sm:$0xf]
    %v779 = vld [vmem:[%s1 + $0xb84] sm:$0xf]
    %v780 = vld [vmem:[%s1 + $0xb88] sm:$0xf]
    %v781 = vld [vmem:[%s1 + $0xb8c] sm:$0xf]
    %v782 = vld [vmem:[%s1 + $0xb90] sm:$0xf]
    %v783 = vld [vmem:[%s1 + $0xb94] sm:$0xf]
    %v784 = vld [vmem:[%s1 + $0xb98] sm:$0xf]
    %v785 = vld [vmem:[%s1 + $0xb9c] sm:$0xf]
    %v786 = vld [vmem:[%s1 + $0xba0] sm:$0xf]
    %v787 = vld [vmem:[%s1 + $0xba4] sm:$0xf]
    %v788 = vld [vmem:[%s1 + $0xba8] sm:$0xf]
    %v789 = vld [vmem:[%s1 + $0xbac] sm:$0xf]
    %v790 = vld [vmem:[%s1 + $0xbb0] sm:$0xf]
    %v791 = vld [vmem:[%s1 + $0xbb4] sm:$0xf]
    %v792 = vld [vmem:[%s1 + $0xbb8] sm:$0xf]
    %v793 = vld [vmem:[%s1 + $0xbbc] sm:$0xf]
    %v794 = vld [vmem:[%s1 + $0xbc0] sm:$0xf]
    %v795 = vld [vmem:[%s1 + $0xbc4] sm:$0xf]
    %v796 = vld [vmem:[%s1 + $0xbc8] sm:$0xf]
    %v797 = vld [vmem:[%s1 + $0xbcc] sm:$0xf]
    %v798 = vld [vmem:[%s1 + $0xbd0] sm:$0xf]
    %v799 = vld [vmem:[%s1 + $0xbd4] sm:$0xf]
    %v800 = vld [vmem:[%s1 + $0xbd8] sm:$0xf]
    %v801 = vld [vmem:[%s1 + $0xbdc] sm:$0xf]
    %v802 = vld [vmem:[%s1 + $0xbe0] sm:$0xf]
    %v803 = vld [vmem:[%s1 + $0xbe4] sm:$0xf]
    %v804 = vld [vmem:[%s1 + $0xbe8] sm:$0xf]
    %v805 = vld [vmem:[%s1 + $0xbec] sm:$0xf]
    %v806 = vld [vmem:[%s1 + $0xbf0] sm:$0xf]
    %v807 = vld [vmem:[%s1 + $0xbf4] sm:$0xf]
    %v808 = vld [vmem:[%s1 + $0xbf8] sm:$0xf]
    %v809 = vld [vmem:[%s1 + $0xbfc] sm:$0xf]
    %v810 = vld [vmem:[%s1 + $0xc00] sm:$0xf]
    %v811 = vld [vmem:[%s1 + $0xc04] sm:$0xf]
    %v812 = vld [vmem:[%s1 + $0xc08] sm:$0xf]
    %v813 = vld [vmem:[%s1 + $0xc0c] sm:$0xf]
    %v814 = vld [vmem:[%s1 + $0xc10] sm:$0xf]
    %v815 = vld [vmem:[%s1 + $0xc14] sm:$0xf]
    %v816 = vld [vmem:[%s1 + $0xc18] sm:$0xf]
    %v817 = vld [vmem:[%s1 + $0xc1c] sm:$0xf]
    %v818 = vld [vmem:[%s1 + $0xc20] sm:$0xf]
    %v819 = vld [vmem:[%s1 + $0xc24] sm:$0xf]
    %v820 = vld [vmem:[%s1 + $0xc28] sm:$0xf]
    %v821 = vld [vmem:[%s1 + $0xc2c] sm:$0xf]
    %v822 = vld [vmem:[%s1 + $0xc30] sm:$0xf]
    %v823 = vld [vmem:[%s1 + $0xc34] sm:$0xf]
    %v824 = vld [vmem:[%s1 + $0xc38] sm:$0xf]
    %v825 = vld [vmem:[%s1 + $0xc3c] sm:$0xf]
    %v826 = vld [vmem:[%s1 + $0xc40] sm:$0xf]
    %v827 = vld [vmem:[%s1 + $0xc44] sm:$0xf]
    %v828 = vld [vmem:[%s1 + $0xc48] sm:$0xf]
    %v829 = vld [vmem:[%s1 + $0xc4c] sm:$0xf]
    %v830 = vld [vmem:[%s1 + $0xc50] sm:$0xf]
    %v831 = vld [vmem:[%s1 + $0xc54] sm:$0xf]
    %v832 = vld [vmem:[%s1 + $0xc58] sm:$0xf]
    %v833 = vld [vmem:[%s1 + $0xc5c] sm:$0xf]
    %v834 = vld [vmem:[%s1 + $0xc60] sm:$0xf]
    %v835 = vld [vmem:[%s1 + $0xc64] sm:$0xf]
    %v836 = vld [vmem:[%s1 + $0xc68] sm:$0xf]
    %v837 = vld [vmem:[%s1 + $0xc6c] sm:$0xf]
    %v838 = vld [vmem:[%s1 + $0xc70] sm:$0xf]
    %v839 = vld [vmem:[%s1 + $0xc74] sm:$0xf]
    %v840 = vld [vmem:[%s1 + $0xc78] sm:$0xf]
    %v841 = vld [vmem:[%s1 + $0xc7c] sm:$0xf]
    %v842 = vld [vmem:[%s1 + $0xc80] sm:$0xf]
    %v843 = vld [vmem:[%s1 + $0xc84] sm:$0xf]
    %v844 = vld [vmem:[%s1 + $0xc88] sm:$0xf]
    %v845 = vld [vmem:[%s1 + $0xc8c] sm:$0xf]
    %v846 = vld [vmem:[%s1 + $0xc90] sm:$0xf]
    %v847 = vld [vmem:[%s1 + $0xc94] sm:$0xf]
    %v848 = vld [vmem:[%s1 + $0xc98] sm:$0xf]
    %v849 = vld [vmem:[%s1 + $0xc9c] sm:$0xf]
    %v850 = vld [vmem:[%s1 + $0xca0] sm:$0xf]
    %v851 = vld [vmem:[%s1 + $0xca4] sm:$0xf]
    %v852 = vld [vmem:[%s1 + $0xca8] sm:$0xf]
    %v853 = vld [vmem:[%s1 + $0xcac] sm:$0xf]
    %v854 = vld [vmem:[%s1 + $0xcb0] sm:$0xf]
    %v855 = vld [vmem:[%s1 + $0xcb4] sm:$0xf]
    %v856 = vld [vmem:[%s1 + $0xcb8] sm:$0xf]
    %v857 = vld [vmem:[%s1 + $0xcbc] sm:$0xf]
    %v858 = vld [vmem:[%s1 + $0xcc0] sm:$0xf]
    %v859 = vld [vmem:[%s1 + $0xcc4] sm:$0xf]
    %v860 = vld [vmem:[%s1 + $0xcc8] sm:$0xf]
    %v861 = vld [vmem:[%s1 + $0xccc] sm:$0xf]
    %v862 = vld [vmem:[%s1 + $0xcd0] sm:$0xf]
    %v863 = vld [vmem:[%s1 + $0xcd4] sm:$0xf]
    %v864 = vld [vmem:[%s1 + $0xcd8] sm:$0xf]
    %v865 = vld [vmem:[%s1 + $0xcdc] sm:$0xf]
    %v866 = vld [vmem:[%s1 + $0xce0] sm:$0xf]
    %v867 = vld [vmem:[%s1 + $0xce4] sm:$0xf]
    %v868 = vld [vmem:[%s1 + $0xce8] sm:$0xf]
    %v869 = vld [vmem:[%s1 + $0xcec] sm:$0xf]
    %v870 = vld [vmem:[%s1 + $0xcf0] sm:$0xf]
    %v871 = vld [vmem:[%s1 + $0xcf4] sm:$0xf]
    %v872 = vld [vmem:[%s1 + $0xcf8] sm:$0xf]
    %v873 = vld [vmem:[%s1 + $0xcfc] sm:$0xf]
    %v874 = vld [vmem:[%s1 + $0xd00] sm:$0xf]
    %v875 = vld [vmem:[%s1 + $0xd04] sm:$0xf]
    %v876 = vld [vmem:[%s1 + $0xd08] sm:$0xf]
    %v877 = vld [vmem:[%s1 + $0xd0c] sm:$0xf]
    %v878 = vld [vmem:[%s1 + $0xd10] sm:$0xf]
    %v879 = vld [vmem:[%s1 + $0xd14] sm:$0xf]
    %v880 = vld [vmem:[%s1 + $0xd18] sm:$0xf]
    %v881 = vld [vmem:[%s1 + $0xd1c] sm:$0xf]
    %v882 = vld [vmem:[%s1 + $0xd20] sm:$0xf]
    %v883 = vld [vmem:[%s1 + $0xd24] sm:$0xf]
    %v884 = vld [vmem:[%s1 + $0xd28] sm:$0xf]
    %v885 = vld [vmem:[%s1 + $0xd2c] sm:$0xf]
    %v886 = vld [vmem:[%s1 + $0xd30] sm:$0xf]
    %v887 = vld [vmem:[%s1 + $0xd34] sm:$0xf]
    %v888 = vld [vmem:[%s1 + $0xd38] sm:$0xf]
    %v889 = vld [vmem:[%s1 + $0xd3c] sm:$0xf]
    %v890 = vld [vmem:[%s1 + $0xd40] sm:$0xf]
    %v891 = vld [vmem:[%s1 + $0xd44] sm:$0xf]
    %v892 = vld [vmem:[%s1 + $0xd48] sm:$0xf]
    %v893 = vld [vmem:[%s1 + $0xd4c] sm:$0xf]
    %v894 = vld [vmem:[%s1 + $0xd50] sm:$0xf]
    %v895 = vld [vmem:[%s1 + $0xd54] sm:$0xf]
    %v896 = vld [vmem:[%s1 + $0xd58] sm:$0xf]
    %v897 = vld [vmem:[%s1 + $0xd5c] sm:$0xf]
    %v898 = vld [vmem:[%s1 + $0xd60] sm:$0xf]
    %v899 = vld [vmem:[%s1 + $0xd64] sm:$0xf]
    %v900 = vld [vmem:[%s1 + $0xd68] sm:$0xf]
    %v901 = vld [vmem:[%s1 + $0xd6c] sm:$0xf]
    %v902 = vld [vmem:[%s1 + $0xd70] sm:$0xf]
    %v903 = vld [vmem:[%s1 + $0xd74] sm:$0xf]
    %v904 = vld [vmem:[%s1 + $0xd78] sm:$0xf]
    %v905 = vld [vmem:[%s1 + $0xd7c] sm:$0xf]
    %v906 = vld [vmem:[%s1 + $0xd80] sm:$0xf]
    %v907 = vld [vmem:[%s1 + $0xd84] sm:$0xf]
    %v908 = vld [vmem:[%s1 + $0xd88] sm:$0xf]
    %v909 = vld [vmem:[%s1 + $0xd8c] sm:$0xf]
    %v910 = vld [vmem:[%s1 + $0xd90] sm:$0xf]
    %v911 = vld [vmem:[%s1 + $0xd94] sm:$0xf]
    %v912 = vld [vmem:[%s1 + $0xd98] sm:$0xf]
    %v913 = vld [vmem:[%s1 + $0xd9c] sm:$0xf]
    %v914 = vld [vmem:[%s1 + $0xda0] sm:$0xf]
    %v915 = vld [vmem:[%s1 + $0xda4] sm:$0xf]
    %v916 = vld [vmem:[%s1 + $0xda8] sm:$0xf]
    %v917 = vld [vmem:[%s1 + $0xdac] sm:$0xf]
    %v918 = vld [vmem:[%s1 + $0xdb0] sm:$0xf]
    %v919 = vld [vmem:[%s1 + $0xdb4] sm:$0xf]
    %v920 = vld [vmem:[%s1 + $0xdb8] sm:$0xf]
    %v921 = vld [vmem:[%s1 + $0xdbc] sm:$0xf]
    %v922 = vld [vmem:[%s1 + $0xdc0] sm:$0xf]
    %v923 = vld [vmem:[%s1 + $0xdc4] sm:$0xf]
    %v924 = vld [vmem:[%s2] sm:$0x1]
    %v926 = vperm.slane %v924, 0
    %929 = vst [vmem:[#allocation1] ss:$4 sm:$0xff] %v28
    %s931 = scalar_lea.vmem [#allocation1], 32
    %932 = vst [vmem:[%s931] ss:$4 sm:$0xff] %v29
    %v933 = vld.sshfl [vmem:[#allocation1] sm:$0xff pattern:$0x73625140]
    %v934 = vld.sshfl [vmem:[#allocation1 + $0x8] sm:$0xff pattern:$0x73625140]
    %v935 = vld.sshfl [vmem:[#allocation1 + $0x10] sm:$0xff pattern:$0x73625140]
    %v936 = vld.sshfl [vmem:[#allocation1 + $0x18] sm:$0xff pattern:$0x73625140]
    %v937 = vld.sshfl [vmem:[#allocation1 + $0x20] sm:$0xff pattern:$0x73625140]
    %v938 = vld.sshfl [vmem:[#allocation1 + $0x28] sm:$0xff pattern:$0x73625140]
    %v939 = vld.sshfl [vmem:[#allocation1 + $0x30] sm:$0xff pattern:$0x73625140]
    %v940 = vld.sshfl [vmem:[#allocation1 + $0x38] sm:$0xff pattern:$0x73625140]
    %942 = vst [vmem:[#allocation1] ss:$4 sm:$0xff] %v30
    %944 = vst [vmem:[%s931] ss:$4 sm:$0xff] %v31
    %v945 = vld.sshfl [vmem:[#allocation1] sm:$0xff pattern:$0x73625140]
    %v946 = vld.sshfl [vmem:[#allocation1 + $0x8] sm:$0xff pattern:$0x73625140]
    %v947 = vld.sshfl [vmem:[#allocation1 + $0x10] sm:$0xff pattern:$0x73625140]
    %v948 = vld.sshfl [vmem:[#allocation1 + $0x18] sm:$0xff pattern:$0x73625140]
    %v949 = vld.sshfl [vmem:[#allocation1 + $0x20] sm:$0xff pattern:$0x73625140]
    %v950 = vld.sshfl [vmem:[#allocation1 + $0x28] sm:$0xff pattern:$0x73625140]
    %v951 = vld.sshfl [vmem:[#allocation1 + $0x30] sm:$0xff pattern:$0x73625140]
    %v952 = vld.sshfl [vmem:[#allocation1 + $0x38] sm:$0xff pattern:$0x73625140]
    %954 = vst [vmem:[#allocation1] ss:$4 sm:$0xff] %v32
    %956 = vst [vmem:[%s931] ss:$4 sm:$0xff] %v33
    %v957 = vld.sshfl [vmem:[#allocation1] sm:$0xff pattern:$0x73625140]
    %v958 = vld.sshfl [vmem:[#allocation1 + $0x8] sm:$0xff pattern:$0x73625140]
    %v959 = vld.sshfl [vmem:[#allocation1 + $0x10] sm:$0xff pattern:$0x73625140]
    %v960 = vld.sshfl [vmem:[#allocation1 + $0x18] sm:$0xff pattern:$0x73625140]
    %v961 = vld.sshfl [vmem:[#allocation1 + $0x20] sm:$0xff pattern:$0x73625140]
    %v962 = vld.sshfl [vmem:[#allocation1 + $0x28] sm:$0xff pattern:$0x73625140]
    %v963 = vld.sshfl [vmem:[#allocation1 + $0x30] sm:$0xff pattern:$0x73625140]
    %v964 = vld.sshfl [vmem:[#allocation1 + $0x38] sm:$0xff pattern:$0x73625140]
    %966 = vst [vmem:[#allocation1] ss:$4 sm:$0xff] %v34
    %968 = vst [vmem:[%s931] ss:$4 sm:$0xff] %v35
    %v969 = vld.sshfl [vmem:[#allocation1] sm:$0xff pattern:$0x73625140]
    %v970 = vld.sshfl [vmem:[#allocation1 + $0x8] sm:$0xff pattern:$0x73625140]
    %v971 = vld.sshfl [vmem:[#allocation1 + $0x10] sm:$0xff pattern:$0x73625140]
    %v972 = vld.sshfl [vmem:[#allocation1 + $0x18] sm:$0xff pattern:$0x73625140]
    %v973 = vld.sshfl [vmem:[#allocation1 + $0x20] sm:$0xff pattern:$0x73625140]
    %v974 = vld.sshfl [vmem:[#allocation1 + $0x28] sm:$0xff pattern:$0x73625140]
    %v975 = vld.sshfl [vmem:[#allocation1 + $0x30] sm:$0xff pattern:$0x73625140]
    %v976 = vld.sshfl [vmem:[#allocation1 + $0x38] sm:$0xff pattern:$0x73625140]
    %978 = vst [vmem:[#allocation1] ss:$4 sm:$0xff] %v36
    %980 = vst [vmem:[%s931] ss:$4 sm:$0xff] %v37
    %v981 = vld.sshfl [vmem:[#allocation1] sm:$0xff pattern:$0x73625140]
    %v982 = vld.sshfl [vmem:[#allocation1 + $0x8] sm:$0xff pattern:$0x73625140]
    %v983 = vld.sshfl [vmem:[#allocation1 + $0x10] sm:$0xff pattern:$0x73625140]
    %v984 = vld.sshfl [vmem:[#allocation1 + $0x18] sm:$0xff pattern:$0x73625140]
    %v985 = vld.sshfl [vmem:[#allocation1 + $0x20] sm:$0xff pattern:$0x73625140]
    %v986 = vld.sshfl [vmem:[#allocation1 + $0x28] sm:$0xff pattern:$0x73625140]
    %v987 = vld.sshfl [vmem:[#allocation1 + $0x30] sm:$0xff pattern:$0x73625140]
    %v988 = vld.sshfl [vmem:[#allocation1 + $0x38] sm:$0xff pattern:$0x73625140]
    %990 = vst [vmem:[#allocation1] ss:$4 sm:$0xff] %v38
    %992 = vst [vmem:[%s931] ss:$4 sm:$0xff] %v39
    %v993 = vld.sshfl [vmem:[#allocation1] sm:$0xff pattern:$0x73625140]
    %v994 = vld.sshfl [vmem:[#allocation1 + $0x8] sm:$0xff pattern:$0x73625140]
    %v995 = vld.sshfl [vmem:[#allocation1 + $0x10] sm:$0xff pattern:$0x73625140]
    %v996 = vld.sshfl [vmem:[#allocation1 + $0x18] sm:$0xff pattern:$0x73625140]
    %v997 = vld.sshfl [vmem:[#allocation1 + $0x20] sm:$0xff pattern:$0x73625140]
    %v998 = vld.sshfl [vmem:[#allocation1 + $0x28] sm:$0xff pattern:$0x73625140]
    %v999 = vld.sshfl [vmem:[#allocation1 + $0x30] sm:$0xff pattern:$0x73625140]
    %v1000 = vld.sshfl [vmem:[#allocation1 + $0x38] sm:$0xff pattern:$0x73625140]
    %1002 = vst [vmem:[#allocation1] ss:$4 sm:$0xff] %v40
    %1004 = vst [vmem:[%s931] ss:$4 sm:$0xff] %v41
    %v1005 = vld.sshfl [vmem:[#allocation1] sm:$0xff pattern:$0x73625140]
    %v1006 = vld.sshfl [vmem:[#allocation1 + $0x8] sm:$0xff pattern:$0x73625140]
    %v1007 = vld.sshfl [vmem:[#allocation1 + $0x10] sm:$0xff pattern:$0x73625140]
    %v1008 = vld.sshfl [vmem:[#allocation1 + $0x18] sm:$0xff pattern:$0x73625140]
    %v1009 = vld.sshfl [vmem:[#allocation1 + $0x20] sm:$0xff pattern:$0x73625140]
    %v1010 = vld.sshfl [vmem:[#allocation1 + $0x28] sm:$0xff pattern:$0x73625140]
    %v1011 = vld.sshfl [vmem:[#allocation1 + $0x30] sm:$0xff pattern:$0x73625140]
    %v1012 = vld.sshfl [vmem:[#allocation1 + $0x38] sm:$0xff pattern:$0x73625140]
    %v1950 = vunpack.c.l.b16 %v42
    %v1951 = vunpack.c.l.b16 %v43
    %v1952 = vunpack.c.l.b16 %v44
    %v1953 = vunpack.c.l.b16 %v45
    %v1954 = vunpack.c.l.b16 %v46
    %v1955 = vunpack.c.l.b16 %v47
    %v1956 = vunpack.c.l.b16 %v48
    %v1957 = vunpack.c.l.b16 %v49
    %v1958 = vunpack.c.l.b16 %v50
    %v1959 = vunpack.c.l.b16 %v51
    %v1960 = vunpack.c.l.b16 %v52
    %v1961 = vunpack.c.l.b16 %v53
    %v1962 = vunpack.c.l.b16 %v54
    %v1963 = vunpack.c.l.b16 %v55
    %v1964 = vunpack.c.l.b16 %v56
    %v1965 = vunpack.c.l.b16 %v57
    %v1966 = vunpack.c.l.b16 %v58
    %v1967 = vunpack.c.l.b16 %v59
    %v1968 = vunpack.c.l.b16 %v60
    %v1969 = vunpack.c.l.b16 %v61
    %v1970 = vunpack.c.l.b16 %v62
    %v1971 = vunpack.c.l.b16 %v63
    %v1972 = vunpack.c.l.b16 %v64
    %v1973 = vunpack.c.l.b16 %v65
    %v1974 = vunpack.c.l.b16 %v66
    %v1975 = vunpack.c.l.b16 %v67
    %v1976 = vunpack.c.l.b16 %v68
    %v1977 = vunpack.c.l.b16 %v69
    %v1978 = vunpack.c.l.b16 %v70
    %v1979 = vunpack.c.l.b16 %v71
    %v1980 = vunpack.c.l.b16 %v72
    %v1981 = vunpack.c.l.b16 %v73
    %v1982 = vunpack.c.l.b16 %v74
    %v1983 = vunpack.c.l.b16 %v75
    %v1984 = vunpack.c.l.b16 %v76
    %v1985 = vunpack.c.l.b16 %v77
    %v1986 = vunpack.c.l.b16 %v78
    %v1987 = vunpack.c.l.b16 %v79
    %v1988 = vunpack.c.l.b16 %v80
    %v1989 = vunpack.c.l.b16 %v81
    %v1990 = vunpack.c.l.b16 %v82
    %v1991 = vunpack.c.l.b16 %v83
    %v1992 = vunpack.c.l.b16 %v84
    %v1993 = vunpack.c.l.b16 %v85
    %v1994 = vunpack.c.l.b16 %v86
    %v1995 = vunpack.c.l.b16 %v87
    %v1996 = vunpack.c.l.b16 %v88
    %v1997 = vunpack.c.l.b16 %v89
    %v1998 = vunpack.c.l.b16 %v90
    %v1999 = vunpack.c.l.b16 %v91
    %v2000 = vunpack.c.l.b16 %v92
    %v2001 = vunpack.c.l.b16 %v93
    %v2002 = vunpack.c.l.b16 %v94
    %v2003 = vunpack.c.l.b16 %v95
    %v2004 = vunpack.c.l.b16 %v96
    %v2005 = vunpack.c.l.b16 %v97
    %v2006 = vunpack.c.l.b16 %v98
    %v2007 = vunpack.c.l.b16 %v99
    %v2008 = vunpack.c.l.b16 %v100
    %v2009 = vunpack.c.l.b16 %v101
    %v2010 = vunpack.c.l.b16 %v102
    %v2011 = vunpack.c.l.b16 %v103
    %v2012 = vunpack.c.l.b16 %v104
    %v2013 = vunpack.c.l.b16 %v105
    %v2014 = vunpack.c.l.b16 %v106
    %v2015 = vunpack.c.l.b16 %v107
    %v2016 = vunpack.c.l.b16 %v108
    %v2017 = vunpack.c.l.b16 %v109
    %v2018 = vunpack.c.l.b16 %v110
    %v2019 = vunpack.c.l.b16 %v111
    %v2020 = vunpack.c.l.b16 %v112
    %v2021 = vunpack.c.l.b16 %v113
    %v2022 = vunpack.c.l.b16 %v114
    %v2023 = vunpack.c.l.b16 %v115
    %v2024 = vunpack.c.l.b16 %v116
    %v2025 = vunpack.c.l.b16 %v117
    %v2026 = vunpack.c.l.b16 %v118
    %v2027 = vunpack.c.l.b16 %v119
    %v2028 = vunpack.c.l.b16 %v120
    %v2029 = vunpack.c.l.b16 %v121
    %v2030 = vunpack.c.l.b16 %v122
    %v2031 = vunpack.c.l.b16 %v123
    %v2032 = vunpack.c.l.b16 %v124
    %v2033 = vunpack.c.l.b16 %v125
    %v2034 = vunpack.c.l.b16 %v126
    %v2035 = vunpack.c.l.b16 %v127
    %v2036 = vunpack.c.l.b16 %v128
    %v2037 = vunpack.c.l.b16 %v129
    %v2038 = vunpack.c.l.b16 %v130
    %v2039 = vunpack.c.l.b16 %v131
    %v2040 = vunpack.c.l.b16 %v132
    %v2041 = vunpack.c.l.b16 %v133
    %v2042 = vunpack.c.l.b16 %v134
    %v2043 = vunpack.c.l.b16 %v135
    %v2044 = vunpack.c.l.b16 %v136
    %v2045 = vunpack.c.l.b16 %v137
    %v2046 = vunpack.c.l.b16 %v138
    %v2047 = vunpack.c.l.b16 %v139
    %v2048 = vunpack.c.l.b16 %v140
    %v2049 = vunpack.c.l.b16 %v141
    %v2050 = vunpack.c.l.b16 %v142
    %v2051 = vunpack.c.l.b16 %v143
    %v2052 = vunpack.c.l.b16 %v144
    %v2053 = vunpack.c.l.b16 %v145
    %v2054 = vunpack.c.l.b16 %v146
    %v2055 = vunpack.c.l.b16 %v147
    %v2056 = vunpack.c.l.b16 %v148
    %v2057 = vunpack.c.l.b16 %v149
    %v2058 = vunpack.c.l.b16 %v150
    %v2059 = vunpack.c.l.b16 %v151
    %v2060 = vunpack.c.l.b16 %v152
    %v2061 = vunpack.c.l.b16 %v153
    %v2062 = vunpack.c.l.b16 %v154
    %v2063 = vunpack.c.l.b16 %v155
    %v2064 = vunpack.c.l.b16 %v156
    %v2065 = vunpack.c.l.b16 %v157
    %v2066 = vunpack.c.l.b16 %v158
    %v2067 = vunpack.c.l.b16 %v159
    %v2068 = vunpack.c.l.b16 %v160
    %v2069 = vunpack.c.l.b16 %v161
    %v2070 = vunpack.c.l.b16 %v162
    %v2071 = vunpack.c.l.b16 %v163
    %v2072 = vunpack.c.l.b16 %v164
    %v2073 = vunpack.c.l.b16 %v165
    %v2074 = vunpack.c.l.b16 %v166
    %v2075 = vunpack.c.l.b16 %v167
    %v2076 = vunpack.c.l.b16 %v168
    %v2077 = vunpack.c.l.b16 %v169
    %v2078 = vunpack.c.l.b16 %v170
    %v2079 = vunpack.c.l.b16 %v171
    %v2080 = vunpack.c.l.b16 %v172
    %v2081 = vunpack.c.l.b16 %v173
    %v2082 = vunpack.c.l.b16 %v174
    %v2083 = vunpack.c.l.b16 %v175
    %v2084 = vunpack.c.l.b16 %v176
    %v2085 = vunpack.c.l.b16 %v177
    %v2086 = vunpack.c.l.b16 %v178
    %v2087 = vunpack.c.l.b16 %v179
    %v2088 = vunpack.c.l.b16 %v180
    %v2089 = vunpack.c.l.b16 %v181
    %v2090 = vunpack.c.l.b16 %v182
    %v2091 = vunpack.c.l.b16 %v183
    %v2092 = vunpack.c.l.b16 %v184
    %v2093 = vunpack.c.l.b16 %v185
    %v2094 = vunpack.c.l.b16 %v186
    %v2095 = vunpack.c.l.b16 %v187
    %v2096 = vunpack.c.l.b16 %v188
    %v2097 = vunpack.c.l.b16 %v189
    %v2098 = vunpack.c.l.b16 %v190
    %v2099 = vunpack.c.l.b16 %v191
    %v2100 = vunpack.c.l.b16 %v192
    %v2101 = vunpack.c.l.b16 %v193
    %v2102 = vunpack.c.l.b16 %v194
    %v2103 = vunpack.c.l.b16 %v195
    %v2104 = vunpack.c.l.b16 %v196
    %v2105 = vunpack.c.l.b16 %v197
    %v2106 = vunpack.c.l.b16 %v198
    %v2107 = vunpack.c.l.b16 %v199
    %v2108 = vunpack.c.l.b16 %v200
    %v2109 = vunpack.c.l.b16 %v201
    %v2110 = vunpack.c.l.b16 %v202
    %v2111 = vunpack.c.l.b16 %v203
    %v2112 = vunpack.c.l.b16 %v204
    %v2113 = vunpack.c.l.b16 %v205
    %v2114 = vunpack.c.l.b16 %v206
    %v2115 = vunpack.c.l.b16 %v207
    %v2116 = vunpack.c.l.b16 %v208
    %v2117 = vunpack.c.l.b16 %v209
    %v2118 = vunpack.c.l.b16 %v210
    %v2119 = vunpack.c.l.b16 %v211
    %v2120 = vunpack.c.l.b16 %v212
    %v2121 = vunpack.c.l.b16 %v213
    %v2122 = vunpack.c.l.b16 %v214
    %v2123 = vunpack.c.l.b16 %v215
    %v2124 = vunpack.c.l.b16 %v216
    %v2125 = vunpack.c.l.b16 %v217
    %v2126 = vunpack.c.l.b16 %v218
    %v2127 = vunpack.c.l.b16 %v219
    %v2128 = vunpack.c.l.b16 %v220
    %v2129 = vunpack.c.l.b16 %v221
    %v2130 = vunpack.c.l.b16 %v222
    %v2131 = vunpack.c.l.b16 %v223
    %v2132 = vunpack.c.l.b16 %v224
    %v2133 = vunpack.c.l.b16 %v225
    %v2134 = vunpack.c.l.b16 %v226
    %v2135 = vunpack.c.l.b16 %v227
    %v2136 = vunpack.c.l.b16 %v228
    %v2137 = vunpack.c.l.b16 %v229
    %v2138 = vunpack.c.l.b16 %v230
    %v2139 = vunpack.c.l.b16 %v231
    %v2140 = vunpack.c.l.b16 %v232
    %v2141 = vunpack.c.l.b16 %v233
    %v2142 = vunpack.c.l.b16 %v234
    %v2143 = vunpack.c.l.b16 %v235
    %v2144 = vunpack.c.l.b16 %v236
    %v2145 = vunpack.c.l.b16 %v237
    %v2146 = vunpack.c.l.b16 %v238
    %v2147 = vunpack.c.l.b16 %v239
    %v2148 = vunpack.c.l.b16 %v240
    %v2149 = vunpack.c.l.b16 %v241
    %v2150 = vunpack.c.l.b16 %v242
    %v2151 = vunpack.c.l.b16 %v243
    %v2152 = vunpack.c.l.b16 %v244
    %v2153 = vunpack.c.l.b16 %v245
    %v2154 = vunpack.c.l.b16 %v246
    %v2155 = vunpack.c.l.b16 %v247
    %v2156 = vunpack.c.l.b16 %v248
    %v2157 = vunpack.c.l.b16 %v249
    %v2158 = vunpack.c.l.b16 %v250
    %v2159 = vunpack.c.l.b16 %v251
    %v2160 = vunpack.c.l.b16 %v252
    %v2161 = vunpack.c.l.b16 %v253
    %v2162 = vunpack.c.l.b16 %v254
    %v2163 = vunpack.c.l.b16 %v255
    %v2164 = vunpack.c.l.b16 %v256
    %v2165 = vunpack.c.l.b16 %v257
    %v2166 = vunpack.c.l.b16 %v258
    %v2167 = vunpack.c.l.b16 %v259
    %v2168 = vunpack.c.l.b16 %v260
    %v2169 = vunpack.c.l.b16 %v261
    %v2170 = vunpack.c.l.b16 %v262
    %v2171 = vunpack.c.l.b16 %v263
    %v2172 = vunpack.c.l.b16 %v264
    %v2173 = vunpack.c.l.b16 %v265
    %v2174 = vunpack.c.l.b16 %v266
    %v2175 = vunpack.c.l.b16 %v267
    %v2176 = vunpack.c.l.b16 %v268
    %v2177 = vunpack.c.l.b16 %v269
    %v2178 = vunpack.c.l.b16 %v270
    %v2179 = vunpack.c.l.b16 %v271
    %v2180 = vunpack.c.l.b16 %v272
    %v2181 = vunpack.c.l.b16 %v273
    %v2182 = vunpack.c.l.b16 %v274
    %v2183 = vunpack.c.l.b16 %v275
    %v2184 = vunpack.c.l.b16 %v276
    %v2185 = vunpack.c.l.b16 %v277
    %v2186 = vunpack.c.l.b16 %v278
    %v2187 = vunpack.c.l.b16 %v279
    %v2188 = vunpack.c.l.b16 %v280
    %v2189 = vunpack.c.l.b16 %v281
    %v2190 = vunpack.c.l.b16 %v282
    %v2191 = vunpack.c.l.b16 %v283
    %v2192 = vunpack.c.l.b16 %v284
    %v2193 = vunpack.c.l.b16 %v285
    %v2194 = vunpack.c.l.b16 %v286
    %v2195 = vunpack.c.l.b16 %v287
    %v2196 = vunpack.c.l.b16 %v288
    %v2197 = vunpack.c.l.b16 %v289
    %v2198 = vunpack.c.l.b16 %v290
    %v2199 = vunpack.c.l.b16 %v291
    %v2200 = vunpack.c.l.b16 %v292
    %v2201 = vunpack.c.l.b16 %v293
    %v2202 = vunpack.c.l.b16 %v294
    %v2203 = vunpack.c.l.b16 %v295
    %v2204 = vunpack.c.l.b16 %v296
    %v2205 = vunpack.c.l.b16 %v297
    %v2206 = vunpack.c.l.b16 %v298
    %v2207 = vunpack.c.l.b16 %v299
    %v2208 = vunpack.c.l.b16 %v300
    %v2209 = vunpack.c.l.b16 %v301
    %v2210 = vunpack.c.l.b16 %v302
    %v2211 = vunpack.c.l.b16 %v303
    %v2212 = vunpack.c.l.b16 %v304
    %v2213 = vunpack.c.l.b16 %v305
    %v2214 = vunpack.c.l.b16 %v306
    %v2215 = vunpack.c.l.b16 %v307
    %v2216 = vunpack.c.l.b16 %v308
    %v2217 = vunpack.c.l.b16 %v309
    %v2218 = vunpack.c.l.b16 %v310
    %v2219 = vunpack.c.l.b16 %v311
    %v2220 = vunpack.c.l.b16 %v312
    %v2221 = vunpack.c.l.b16 %v313
    %v2222 = vunpack.c.l.b16 %v314
    %v2223 = vunpack.c.l.b16 %v315
    %v2224 = vunpack.c.l.b16 %v316
    %v2225 = vunpack.c.l.b16 %v317
    %v2226 = vunpack.c.l.b16 %v318
    %v2227 = vunpack.c.l.b16 %v319
    %v2228 = vunpack.c.l.b16 %v320
    %v2229 = vunpack.c.l.b16 %v321
    %v2230 = vunpack.c.l.b16 %v322
    %v2231 = vunpack.c.l.b16 %v323
    %v2232 = vunpack.c.l.b16 %v324
    %v2233 = vunpack.c.l.b16 %v325
    %v2234 = vunpack.c.l.b16 %v326
    %v2235 = vunpack.c.l.b16 %v327
    %v2236 = vunpack.c.l.b16 %v328
    %v2237 = vunpack.c.l.b16 %v329
    %v2238 = vunpack.c.l.b16 %v330
    %v2239 = vunpack.c.l.b16 %v331
    %v2240 = vunpack.c.l.b16 %v332
    %v2241 = vunpack.c.l.b16 %v333
    %v2242 = vunpack.c.l.b16 %v334
    %v2243 = vunpack.c.l.b16 %v335
    %v2244 = vunpack.c.l.b16 %v336
    %v2245 = vunpack.c.l.b16 %v337
    %v2246 = vunpack.c.l.b16 %v338
    %v2247 = vunpack.c.l.b16 %v339
    %v2248 = vunpack.c.l.b16 %v340
    %v2249 = vunpack.c.l.b16 %v341
    %v2250 = vunpack.c.l.b16 %v342
    %v2251 = vunpack.c.l.b16 %v343
    %v2252 = vunpack.c.l.b16 %v344
    %v2253 = vunpack.c.l.b16 %v345
    %v2254 = vunpack.c.l.b16 %v346
    %v2255 = vunpack.c.l.b16 %v347
    %v2256 = vunpack.c.l.b16 %v348
    %v2257 = vunpack.c.l.b16 %v349
    %v2258 = vunpack.c.l.b16 %v350
    %v2259 = vunpack.c.l.b16 %v351
    %v2260 = vunpack.c.l.b16 %v352
    %v2261 = vunpack.c.l.b16 %v353
    %v2262 = vunpack.c.l.b16 %v354
    %v2263 = vunpack.c.l.b16 %v355
    %v2264 = vunpack.c.l.b16 %v356
    %v2265 = vunpack.c.l.b16 %v357
    %v2266 = vunpack.c.l.b16 %v358
    %v2267 = vunpack.c.l.b16 %v359
    %v2268 = vunpack.c.l.b16 %v360
    %v2269 = vunpack.c.l.b16 %v361
    %v2270 = vunpack.c.l.b16 %v362
    %v2271 = vunpack.c.l.b16 %v363
    %v2272 = vunpack.c.l.b16 %v364
    %v2273 = vunpack.c.l.b16 %v365
    %v2274 = vunpack.c.l.b16 %v366
    %v2275 = vunpack.c.l.b16 %v367
    %v2276 = vunpack.c.l.b16 %v368
    %v2277 = vunpack.c.l.b16 %v369
    %v2278 = vunpack.c.l.b16 %v370
    %v2279 = vunpack.c.l.b16 %v371
    %v2280 = vunpack.c.l.b16 %v372
    %v2281 = vunpack.c.l.b16 %v373
    %v2282 = vunpack.c.l.b16 %v374
    %v2283 = vunpack.c.l.b16 %v375
    %v2284 = vunpack.c.l.b16 %v376
    %v2285 = vunpack.c.l.b16 %v377
    %v2286 = vunpack.c.l.b16 %v378
    %v2287 = vunpack.c.l.b16 %v379
    %v2288 = vunpack.c.l.b16 %v380
    %v2289 = vunpack.c.l.b16 %v381
    %v2290 = vunpack.c.l.b16 %v382
    %v2291 = vunpack.c.l.b16 %v383
    %v2292 = vunpack.c.l.b16 %v384
    %v2293 = vunpack.c.l.b16 %v385
    %v2294 = vunpack.c.l.b16 %v386
    %v2295 = vunpack.c.l.b16 %v387
    %v2296 = vunpack.c.l.b16 %v388
    %v2297 = vunpack.c.l.b16 %v389
    %v2298 = vunpack.c.l.b16 %v390
    %v2299 = vunpack.c.l.b16 %v391
    %v2300 = vunpack.c.l.b16 %v392
    %v2301 = vunpack.c.l.b16 %v393
    %v2302 = vunpack.c.l.b16 %v394
    %v2303 = vunpack.c.l.b16 %v395
    %v2304 = vunpack.c.l.b16 %v396
    %v2305 = vunpack.c.l.b16 %v397
    %v2306 = vunpack.c.l.b16 %v398
    %v2307 = vunpack.c.l.b16 %v399
    %v2308 = vunpack.c.l.b16 %v400
    %v2309 = vunpack.c.l.b16 %v401
    %v2310 = vunpack.c.l.b16 %v402
    %v2311 = vunpack.c.l.b16 %v403
    %v2312 = vunpack.c.l.b16 %v404
    %v2313 = vunpack.c.l.b16 %v405
    %v2314 = vunpack.c.l.b16 %v406
    %v2315 = vunpack.c.l.b16 %v407
    %v2316 = vunpack.c.l.b16 %v408
    %v2317 = vunpack.c.l.b16 %v409
    %v2318 = vunpack.c.l.b16 %v410
    %v2319 = vunpack.c.l.b16 %v411
    %v2320 = vunpack.c.l.b16 %v412
    %v2321 = vunpack.c.l.b16 %v413
    %v2322 = vunpack.c.l.b16 %v414
    %v2323 = vunpack.c.l.b16 %v415
    %v2324 = vunpack.c.l.b16 %v416
    %v2325 = vunpack.c.l.b16 %v417
    %v2326 = vunpack.c.l.b16 %v418
    %v2327 = vunpack.c.l.b16 %v419
    %v2328 = vunpack.c.l.b16 %v420
    %v2329 = vunpack.c.l.b16 %v421
    %v2330 = vunpack.c.l.b16 %v422
    %v2331 = vunpack.c.l.b16 %v423
    %v2332 = vunpack.c.l.b16 %v424
    %v2333 = vunpack.c.l.b16 %v425
    %v2334 = vunpack.c.l.b16 %v426
    %v2335 = vunpack.c.l.b16 %v427
    %v2336 = vunpack.c.l.b16 %v428
    %v2337 = vunpack.c.l.b16 %v429
    %v2338 = vunpack.c.l.b16 %v430
    %v2339 = vunpack.c.l.b16 %v431
    %v2340 = vunpack.c.l.b16 %v432
    %v2341 = vunpack.c.l.b16 %v433
    %v2342 = vunpack.c.l.b16 %v434
    %v2343 = vunpack.c.l.b16 %v435
    %v2344 = vunpack.c.l.b16 %v436
    %v2345 = vunpack.c.l.b16 %v437
    %v2346 = vunpack.c.l.b16 %v438
    %v2347 = vunpack.c.l.b16 %v439
    %v2348 = vunpack.c.l.b16 %v440
    %v2349 = vunpack.c.l.b16 %v441
    %v2350 = vunpack.c.l.b16 %v442
    %v2351 = vunpack.c.l.b16 %v443
    %v2352 = vunpack.c.l.b16 %v444
    %v2353 = vunpack.c.l.b16 %v445
    %v2354 = vunpack.c.l.b16 %v446
    %v2355 = vunpack.c.l.b16 %v447
    %v2356 = vunpack.c.l.b16 %v448
    %v2357 = vunpack.c.l.b16 %v449
    %v2358 = vunpack.c.l.b16 %v450
    %v2359 = vunpack.c.l.b16 %v451
    %v2360 = vunpack.c.l.b16 %v452
    %v2361 = vunpack.c.l.b16 %v453
    %v2362 = vunpack.c.l.b16 %v454
    %v2363 = vunpack.c.l.b16 %v455
    %v2364 = vunpack.c.l.b16 %v456
    %v2365 = vunpack.c.l.b16 %v457
    %v2366 = vunpack.c.l.b16 %v458
    %v2367 = vunpack.c.l.b16 %v459
    %v2368 = vunpack.c.l.b16 %v460
    %v2369 = vunpack.c.l.b16 %v461
    %v2370 = vunpack.c.l.b16 %v462
    %v2371 = vunpack.c.l.b16 %v463
    %v2372 = vunpack.c.l.b16 %v464
    %v2373 = vunpack.c.l.b16 %v465
    %v2374 = vunpack.c.l.b16 %v466
    %v2375 = vunpack.c.l.b16 %v467
    %v2376 = vunpack.c.l.b16 %v468
    %v2377 = vunpack.c.l.b16 %v469
    %v2378 = vunpack.c.l.b16 %v470
    %v2379 = vunpack.c.l.b16 %v471
    %v2380 = vunpack.c.l.b16 %v472
    %v2381 = vunpack.c.l.b16 %v473
    %v2382 = vunpack.c.l.b16 %v474
    %v2383 = vunpack.c.l.b16 %v475
    %v2384 = vunpack.c.l.b16 %v476
    %v2385 = vunpack.c.l.b16 %v477
    %v2386 = vunpack.c.l.b16 %v478
    %v2387 = vunpack.c.l.b16 %v479
    %v2388 = vunpack.c.l.b16 %v480
    %v2389 = vunpack.c.l.b16 %v481
    %v2390 = vunpack.c.l.b16 %v482
    %v2391 = vunpack.c.l.b16 %v483
    %v2392 = vunpack.c.l.b16 %v484
    %v2393 = vunpack.c.l.b16 %v485
    %v2394 = vunpack.c.l.b16 %v486
    %v2395 = vunpack.c.l.b16 %v487
    %v2396 = vunpack.c.l.b16 %v488
    %v2397 = vunpack.c.l.b16 %v489
    %v2398 = vunpack.c.l.b16 %v490
    %v2399 = vunpack.c.l.b16 %v491
    %v2400 = vunpack.c.l.b16 %v492
    %v2401 = vunpack.c.l.b16 %v493
    %v2402 = vunpack.c.l.b16 %v494
    %v2403 = vunpack.c.l.b16 %v495
    %v2404 = vunpack.c.l.b16 %v496
    %v2405 = vunpack.c.l.b16 %v497
    %v2406 = vunpack.c.l.b16 %v498
    %v2407 = vunpack.c.l.b16 %v499
    %v2408 = vunpack.c.l.b16 %v500
    %v2409 = vunpack.c.l.b16 %v501
    %v2410 = vunpack.c.l.b16 %v502
    %v2411 = vunpack.c.l.b16 %v503
    %v2412 = vunpack.c.l.b16 %v504
    %v2413 = vunpack.c.l.b16 %v505
    %v2414 = vunpack.c.l.b16 %v506
    %v2415 = vunpack.c.l.b16 %v507
    %v2416 = vunpack.c.l.b16 %v508
    %v2417 = vunpack.c.l.b16 %v509
    %v2418 = vunpack.c.l.b16 %v510
    %v2419 = vunpack.c.l.b16 %v511
    %v2420 = vunpack.c.l.b16 %v512
    %v2421 = vunpack.c.l.b16 %v513
    %v2422 = vunpack.c.l.b16 %v514
    %v2423 = vunpack.c.l.b16 %v515
    %v2424 = vunpack.c.l.b16 %v516
    %v2425 = vunpack.c.l.b16 %v517
    %v2426 = vunpack.c.l.b16 %v518
    %v2427 = vunpack.c.l.b16 %v519
    %v2428 = vunpack.c.l.b16 %v520
    %v2429 = vunpack.c.l.b16 %v521
    %v2430 = vunpack.c.l.b16 %v522
    %v2431 = vunpack.c.l.b16 %v523
    %v2432 = vunpack.c.l.b16 %v524
    %v2433 = vunpack.c.l.b16 %v525
    %v2434 = vunpack.c.l.b16 %v526
    %v2435 = vunpack.c.l.b16 %v527
    %v2436 = vunpack.c.l.b16 %v528
    %v2437 = vunpack.c.l.b16 %v529
    %v2438 = vunpack.c.l.b16 %v530
    %v2439 = vunpack.c.l.b16 %v531
    %v2440 = vunpack.c.l.b16 %v532
    %v2441 = vunpack.c.l.b16 %v533
    %v2442 = vunpack.c.l.b16 %v534
    %v2443 = vunpack.c.l.b16 %v535
    %v2444 = vunpack.c.l.b16 %v536
    %v2445 = vunpack.c.l.b16 %v537
    %v2446 = vunpack.c.l.b16 %v538
    %v2447 = vunpack.c.l.b16 %v539
    %v2448 = vunpack.c.l.b16 %v540
    %v2449 = vunpack.c.l.b16 %v541
    %v2450 = vunpack.c.l.b16 %v542
    %v2451 = vunpack.c.l.b16 %v543
    %v2452 = vunpack.c.l.b16 %v544
    %v2453 = vunpack.c.l.b16 %v545
    %v2454 = vunpack.c.l.b16 %v546
    %v2455 = vunpack.c.l.b16 %v547
    %v2456 = vunpack.c.l.b16 %v548
    %v2457 = vunpack.c.l.b16 %v549
    %v2458 = vunpack.c.l.b16 %v550
    %v2459 = vunpack.c.l.b16 %v551
    %v2460 = vunpack.c.l.b16 %v552
    %v2461 = vunpack.c.l.b16 %v553
    %v2462 = vunpack.c.l.b16 %v554
    %v2463 = vunpack.c.l.b16 %v555
    %v2464 = vunpack.c.l.b16 %v556
    %v2465 = vunpack.c.l.b16 %v557
    %v2466 = vunpack.c.l.b16 %v558
    %v2467 = vunpack.c.l.b16 %v559
    %v2468 = vunpack.c.l.b16 %v560
    %v2469 = vunpack.c.l.b16 %v561
    %v2470 = vunpack.c.l.b16 %v562
    %v2471 = vunpack.c.l.b16 %v563
    %v2472 = vunpack.c.l.b16 %v564
    %v2473 = vunpack.c.l.b16 %v565
    %v2474 = vunpack.c.l.b16 %v566
    %v2475 = vunpack.c.l.b16 %v567
    %v2476 = vunpack.c.l.b16 %v568
    %v2477 = vunpack.c.l.b16 %v569
    %v2478 = vunpack.c.l.b16 %v570
    %v2479 = vunpack.c.l.b16 %v571
    %v2480 = vunpack.c.l.b16 %v572
    %v2481 = vunpack.c.l.b16 %v573
    %v2482 = vunpack.c.l.b16 %v574
    %v2483 = vunpack.c.l.b16 %v575
    %v2484 = vunpack.c.l.b16 %v576
    %v2485 = vunpack.c.l.b16 %v577
    %v2486 = vunpack.c.l.b16 %v578
    %v2487 = vunpack.c.l.b16 %v579
    %v2488 = vunpack.c.l.b16 %v580
    %v2489 = vunpack.c.l.b16 %v581
    %v2490 = vunpack.c.l.b16 %v582
    %v2491 = vunpack.c.l.b16 %v583
    %v2492 = vunpack.c.l.b16 %v584
    %v2493 = vunpack.c.l.b16 %v585
    %v2494 = vunpack.c.l.b16 %v586
    %v2495 = vunpack.c.l.b16 %v587
    %v2496 = vunpack.c.l.b16 %v588
    %v2497 = vunpack.c.l.b16 %v589
    %v2498 = vunpack.c.l.b16 %v590
    %v2499 = vunpack.c.l.b16 %v591
    %v2500 = vunpack.c.l.b16 %v592
    %v2501 = vunpack.c.l.b16 %v593
    %v2502 = vunpack.c.l.b16 %v594
    %v2503 = vunpack.c.l.b16 %v595
    %v2504 = vunpack.c.l.b16 %v596
    %v2505 = vunpack.c.l.b16 %v597
    %v2506 = vunpack.c.l.b16 %v598
    %v2507 = vunpack.c.l.b16 %v599
    %v2508 = vunpack.c.l.b16 %v600
    %v2509 = vunpack.c.l.b16 %v601
    %v2510 = vunpack.c.l.b16 %v602
    %v2511 = vunpack.c.l.b16 %v603
    %v2512 = vunpack.c.l.b16 %v604
    %v2513 = vunpack.c.l.b16 %v605
    %v2514 = vunpack.c.l.b16 %v606
    %v2515 = vunpack.c.l.b16 %v607
    %v2516 = vunpack.c.l.b16 %v608
    %v2517 = vunpack.c.l.b16 %v609
    %v2518 = vunpack.c.l.b16 %v610
    %v2519 = vunpack.c.l.b16 %v611
    %v2520 = vunpack.c.l.b16 %v612
    %v2521 = vunpack.c.l.b16 %v613
    %v2522 = vunpack.c.l.b16 %v614
    %v2523 = vunpack.c.l.b16 %v615
    %v2524 = vunpack.c.l.b16 %v616
    %v2525 = vunpack.c.l.b16 %v617
    %v2526 = vunpack.c.l.b16 %v618
    %v2527 = vunpack.c.l.b16 %v619
    %v2528 = vunpack.c.l.b16 %v620
    %v2529 = vunpack.c.l.b16 %v621
    %v2530 = vunpack.c.l.b16 %v622
    %v2531 = vunpack.c.l.b16 %v623
    %v2532 = vunpack.c.l.b16 %v624
    %v2533 = vunpack.c.l.b16 %v625
    %v2534 = vunpack.c.l.b16 %v626
    %v2535 = vunpack.c.l.b16 %v627
    %v2536 = vunpack.c.l.b16 %v628
    %v2537 = vunpack.c.l.b16 %v629
    %v2538 = vunpack.c.l.b16 %v630
    %v2539 = vunpack.c.l.b16 %v631
    %v2540 = vunpack.c.l.b16 %v632
    %v2541 = vunpack.c.l.b16 %v633
    %v2542 = vunpack.c.l.b16 %v634
    %v2543 = vunpack.c.l.b16 %v635
    %v2544 = vunpack.c.l.b16 %v636
    %v2545 = vunpack.c.l.b16 %v637
    %v2546 = vunpack.c.l.b16 %v638
    %v2547 = vunpack.c.l.b16 %v639
    %v2548 = vunpack.c.l.b16 %v640
    %v2549 = vunpack.c.l.b16 %v641
    %v2550 = vunpack.c.l.b16 %v642
    %v2551 = vunpack.c.l.b16 %v643
    %v2552 = vunpack.c.l.b16 %v644
    %v2553 = vunpack.c.l.b16 %v645
    %v2554 = vunpack.c.l.b16 %v646
    %v2555 = vunpack.c.l.b16 %v647
    %v2556 = vunpack.c.l.b16 %v648
    %v2557 = vunpack.c.l.b16 %v649
    %v2558 = vunpack.c.l.b16 %v650
    %v2559 = vunpack.c.l.b16 %v651
    %v2560 = vunpack.c.l.b16 %v652
    %v2561 = vunpack.c.l.b16 %v653
    %v2562 = vunpack.c.l.b16 %v654
    %v2563 = vunpack.c.l.b16 %v655
    %v2564 = vunpack.c.l.b16 %v656
    %v2565 = vunpack.c.l.b16 %v657
    %v2566 = vunpack.c.l.b16 %v658
    %v2567 = vunpack.c.l.b16 %v659
    %v2568 = vunpack.c.l.b16 %v660
    %v2569 = vunpack.c.l.b16 %v661
    %v2570 = vunpack.c.l.b16 %v662
    %v2571 = vunpack.c.l.b16 %v663
    %v2572 = vunpack.c.l.b16 %v664
    %v2573 = vunpack.c.l.b16 %v665
    %v2574 = vunpack.c.l.b16 %v666
    %v2575 = vunpack.c.l.b16 %v667
    %v2576 = vunpack.c.l.b16 %v668
    %v2577 = vunpack.c.l.b16 %v669
    %v2578 = vunpack.c.l.b16 %v670
    %v2579 = vunpack.c.l.b16 %v671
    %v2580 = vunpack.c.l.b16 %v672
    %v2581 = vunpack.c.l.b16 %v673
    %v2582 = vunpack.c.l.b16 %v674
    %v2583 = vunpack.c.l.b16 %v675
    %v2584 = vunpack.c.l.b16 %v676
    %v2585 = vunpack.c.l.b16 %v677
    %v2586 = vunpack.c.l.b16 %v678
    %v2587 = vunpack.c.l.b16 %v679
    %v2588 = vunpack.c.l.b16 %v680
    %v2589 = vunpack.c.l.b16 %v681
    %v2590 = vunpack.c.l.b16 %v682
    %v2591 = vunpack.c.l.b16 %v683
    %v2592 = vunpack.c.l.b16 %v684
    %v2593 = vunpack.c.l.b16 %v685
    %v2594 = vunpack.c.l.b16 %v686
    %v2595 = vunpack.c.l.b16 %v687
    %v2596 = vunpack.c.l.b16 %v688
    %v2597 = vunpack.c.l.b16 %v689
    %v2598 = vunpack.c.l.b16 %v690
    %v2599 = vunpack.c.l.b16 %v691
    %v2600 = vunpack.c.l.b16 %v692
    %v2601 = vunpack.c.l.b16 %v693
    %v2602 = vunpack.c.l.b16 %v694
    %v2603 = vunpack.c.l.b16 %v695
    %v2604 = vunpack.c.l.b16 %v696
    %v2605 = vunpack.c.l.b16 %v697
    %v2606 = vunpack.c.l.b16 %v698
    %v2607 = vunpack.c.l.b16 %v699
    %v2608 = vunpack.c.l.b16 %v700
    %v2609 = vunpack.c.l.b16 %v701
    %v2610 = vunpack.c.l.b16 %v702
    %v2611 = vunpack.c.l.b16 %v703
    %v2612 = vunpack.c.l.b16 %v704
    %v2613 = vunpack.c.l.b16 %v705
    %v2614 = vunpack.c.l.b16 %v706
    %v2615 = vunpack.c.l.b16 %v707
    %v2616 = vunpack.c.l.b16 %v708
    %v2617 = vunpack.c.l.b16 %v709
    %v2618 = vunpack.c.l.b16 %v710
    %v2619 = vunpack.c.l.b16 %v711
    %v2620 = vunpack.c.l.b16 %v712
    %v2621 = vunpack.c.l.b16 %v713
    %v2622 = vunpack.c.l.b16 %v714
    %v2623 = vunpack.c.l.b16 %v715
    %v2624 = vunpack.c.l.b16 %v716
    %v2625 = vunpack.c.l.b16 %v717
    %v2626 = vunpack.c.l.b16 %v718
    %v2627 = vunpack.c.l.b16 %v719
    %v2628 = vunpack.c.l.b16 %v720
    %v2629 = vunpack.c.l.b16 %v721
    %v2630 = vunpack.c.l.b16 %v722
    %v2631 = vunpack.c.l.b16 %v723
    %v2632 = vunpack.c.l.b16 %v724
    %v2633 = vunpack.c.l.b16 %v725
    %v2634 = vunpack.c.l.b16 %v726
    %v2635 = vunpack.c.l.b16 %v727
    %v2636 = vunpack.c.l.b16 %v728
    %v2637 = vunpack.c.l.b16 %v729
    %v2638 = vunpack.c.l.b16 %v730
    %v2639 = vunpack.c.l.b16 %v731
    %v2640 = vunpack.c.l.b16 %v732
    %v2641 = vunpack.c.l.b16 %v733
    %v2642 = vunpack.c.l.b16 %v734
    %v2643 = vunpack.c.l.b16 %v735
    %v2644 = vunpack.c.l.b16 %v736
    %v2645 = vunpack.c.l.b16 %v737
    %v2646 = vunpack.c.l.b16 %v738
    %v2647 = vunpack.c.l.b16 %v739
    %v2648 = vunpack.c.l.b16 %v740
    %v2649 = vunpack.c.l.b16 %v741
    %v2650 = vunpack.c.l.b16 %v742
    %v2651 = vunpack.c.l.b16 %v743
    %v2652 = vunpack.c.l.b16 %v744
    %v2653 = vunpack.c.l.b16 %v745
    %v2654 = vunpack.c.l.b16 %v746
    %v2655 = vunpack.c.l.b16 %v747
    %v2656 = vunpack.c.l.b16 %v748
    %v2657 = vunpack.c.l.b16 %v749
    %v2658 = vunpack.c.l.b16 %v750
    %v2659 = vunpack.c.l.b16 %v751
    %v2660 = vunpack.c.l.b16 %v752
    %v2661 = vunpack.c.l.b16 %v753
    %v2662 = vunpack.c.l.b16 %v754
    %v2663 = vunpack.c.l.b16 %v755
    %v2664 = vunpack.c.l.b16 %v756
    %v2665 = vunpack.c.l.b16 %v757
    %v2666 = vunpack.c.l.b16 %v758
    %v2667 = vunpack.c.l.b16 %v759
    %v2668 = vunpack.c.l.b16 %v760
    %v2669 = vunpack.c.l.b16 %v761
    %v2670 = vunpack.c.l.b16 %v762
    %v2671 = vunpack.c.l.b16 %v763
    %v2672 = vunpack.c.l.b16 %v764
    %v2673 = vunpack.c.l.b16 %v765
    %v2674 = vunpack.c.l.b16 %v766
    %v2675 = vunpack.c.l.b16 %v767
    %v2676 = vunpack.c.l.b16 %v768
    %v2677 = vunpack.c.l.b16 %v769
    %v2678 = vunpack.c.l.b16 %v770
    %v2679 = vunpack.c.l.b16 %v771
    %v2680 = vunpack.c.l.b16 %v772
    %v2681 = vunpack.c.l.b16 %v773
    %v2682 = vunpack.c.l.b16 %v774
    %v2683 = vunpack.c.l.b16 %v775
    %v2684 = vunpack.c.l.b16 %v776
    %v2685 = vunpack.c.l.b16 %v777
    %v2686 = vunpack.c.l.b16 %v778
    %v2687 = vunpack.c.l.b16 %v779
    %v2688 = vunpack.c.l.b16 %v780
    %v2689 = vunpack.c.l.b16 %v781
    %v2690 = vunpack.c.l.b16 %v782
    %v2691 = vunpack.c.l.b16 %v783
    %v2692 = vunpack.c.l.b16 %v784
    %v2693 = vunpack.c.l.b16 %v785
    %v2694 = vunpack.c.l.b16 %v786
    %v2695 = vunpack.c.l.b16 %v787
    %v2696 = vunpack.c.l.b16 %v788
    %v2697 = vunpack.c.l.b16 %v789
    %v2698 = vunpack.c.l.b16 %v790
    %v2699 = vunpack.c.l.b16 %v791
    %v2700 = vunpack.c.l.b16 %v792
    %v2701 = vunpack.c.l.b16 %v793
    %v2702 = vunpack.c.l.b16 %v794
    %v2703 = vunpack.c.l.b16 %v795
    %v2704 = vunpack.c.l.b16 %v796
    %v2705 = vunpack.c.l.b16 %v797
    %v2706 = vunpack.c.l.b16 %v798
    %v2707 = vunpack.c.l.b16 %v799
    %v2708 = vunpack.c.l.b16 %v800
    %v2709 = vunpack.c.l.b16 %v801
    %v2710 = vunpack.c.l.b16 %v802
    %v2711 = vunpack.c.l.b16 %v803
    %v2712 = vunpack.c.l.b16 %v804
    %v2713 = vunpack.c.l.b16 %v805
    %v2714 = vunpack.c.l.b16 %v806
    %v2715 = vunpack.c.l.b16 %v807
    %v2716 = vunpack.c.l.b16 %v808
    %v2717 = vunpack.c.l.b16 %v809
    %v2718 = vunpack.c.l.b16 %v810
    %v2719 = vunpack.c.l.b16 %v811
    %v2720 = vunpack.c.l.b16 %v812
    %v2721 = vunpack.c.l.b16 %v813
    %v2722 = vunpack.c.l.b16 %v814
    %v2723 = vunpack.c.l.b16 %v815
    %v2724 = vunpack.c.l.b16 %v816
    %v2725 = vunpack.c.l.b16 %v817
    %v2726 = vunpack.c.l.b16 %v818
    %v2727 = vunpack.c.l.b16 %v819
    %v2728 = vunpack.c.l.b16 %v820
    %v2729 = vunpack.c.l.b16 %v821
    %v2730 = vunpack.c.l.b16 %v822
    %v2731 = vunpack.c.l.b16 %v823
    %v2732 = vunpack.c.l.b16 %v824
    %v2733 = vunpack.c.l.b16 %v825
    %v2734 = vunpack.c.l.b16 %v826
    %v2735 = vunpack.c.l.b16 %v827
    %v2736 = vunpack.c.l.b16 %v828
    %v2737 = vunpack.c.l.b16 %v829
    %v2738 = vunpack.c.l.b16 %v830
    %v2739 = vunpack.c.l.b16 %v831
    %v2740 = vunpack.c.l.b16 %v832
    %v2741 = vunpack.c.l.b16 %v833
    %v2742 = vunpack.c.l.b16 %v834
    %v2743 = vunpack.c.l.b16 %v835
    %v2744 = vunpack.c.l.b16 %v836
    %v2745 = vunpack.c.l.b16 %v837
    %v2746 = vunpack.c.l.b16 %v838
    %v2747 = vunpack.c.l.b16 %v839
    %v2748 = vunpack.c.l.b16 %v840
    %v2749 = vunpack.c.l.b16 %v841
    %v2750 = vunpack.c.l.b16 %v842
    %v2751 = vunpack.c.l.b16 %v843
    %v2752 = vunpack.c.l.b16 %v844
    %v2753 = vunpack.c.l.b16 %v845
    %v2754 = vunpack.c.l.b16 %v846
    %v2755 = vunpack.c.l.b16 %v847
    %v2756 = vunpack.c.l.b16 %v848
    %v2757 = vunpack.c.l.b16 %v849
    %v2758 = vunpack.c.l.b16 %v850
    %v2759 = vunpack.c.l.b16 %v851
    %v2760 = vunpack.c.l.b16 %v852
    %v2761 = vunpack.c.l.b16 %v853
    %v2762 = vunpack.c.l.b16 %v854
    %v2763 = vunpack.c.l.b16 %v855
    %v2764 = vunpack.c.l.b16 %v856
    %v2765 = vunpack.c.l.b16 %v857
    %v2766 = vunpack.c.l.b16 %v858
    %v2767 = vunpack.c.l.b16 %v859
    %v2768 = vunpack.c.l.b16 %v860
    %v2769 = vunpack.c.l.b16 %v861
    %v2770 = vunpack.c.l.b16 %v862
    %v2771 = vunpack.c.l.b16 %v863
    %v2772 = vunpack.c.l.b16 %v864
    %v2773 = vunpack.c.l.b16 %v865
    %v2774 = vunpack.c.l.b16 %v866
    %v2775 = vunpack.c.l.b16 %v867
    %v2776 = vunpack.c.l.b16 %v868
    %v2777 = vunpack.c.l.b16 %v869
    %v2778 = vunpack.c.l.b16 %v870
    %v2779 = vunpack.c.l.b16 %v871
    %v2780 = vunpack.c.l.b16 %v872
    %v2781 = vunpack.c.l.b16 %v873
    %v2782 = vunpack.c.l.b16 %v874
    %v2783 = vunpack.c.l.b16 %v875
    %v2784 = vunpack.c.l.b16 %v876
    %v2785 = vunpack.c.l.b16 %v877
    %v2786 = vunpack.c.l.b16 %v878
    %v2787 = vunpack.c.l.b16 %v879
    %v2788 = vunpack.c.l.b16 %v880
    %v2789 = vunpack.c.l.b16 %v881
    %v2790 = vunpack.c.l.b16 %v882
    %v2791 = vunpack.c.l.b16 %v883
    %v2792 = vunpack.c.l.b16 %v884
    %v2793 = vunpack.c.l.b16 %v885
    %v2794 = vunpack.c.l.b16 %v886
    %v2795 = vunpack.c.l.b16 %v887
    %v2796 = vunpack.c.l.b16 %v888
    %v2797 = vunpack.c.l.b16 %v889
    %v2798 = vunpack.c.l.b16 %v890
    %v2799 = vunpack.c.l.b16 %v891
    %v2800 = vunpack.c.l.b16 %v892
    %v2801 = vunpack.c.l.b16 %v893
    %v2802 = vunpack.c.l.b16 %v894
    %v2803 = vunpack.c.l.b16 %v895
    %v2804 = vunpack.c.l.b16 %v896
    %v2805 = vunpack.c.l.b16 %v897
    %v2806 = vunpack.c.l.b16 %v898
    %v2807 = vunpack.c.l.b16 %v899
    %v2808 = vunpack.c.l.b16 %v900
    %v2809 = vunpack.c.l.b16 %v901
    %v2810 = vunpack.c.l.b16 %v902
    %v2811 = vunpack.c.l.b16 %v903
    %v2812 = vunpack.c.l.b16 %v904
    %v2813 = vunpack.c.l.b16 %v905
    %v2814 = vunpack.c.l.b16 %v906
    %v2815 = vunpack.c.l.b16 %v907
    %v2816 = vunpack.c.l.b16 %v908
    %v2817 = vunpack.c.l.b16 %v909
    %v2818 = vunpack.c.l.b16 %v910
    %v2819 = vunpack.c.l.b16 %v911
    %v2820 = vunpack.c.l.b16 %v912
    %v2821 = vunpack.c.l.b16 %v913
    %v2822 = vunpack.c.l.b16 %v914
    %v2823 = vunpack.c.l.b16 %v915
    %v2824 = vunpack.c.l.b16 %v916
    %v2825 = vunpack.c.l.b16 %v917
    %v2826 = vunpack.c.l.b16 %v918
    %v2827 = vunpack.c.l.b16 %v919
    %v2828 = vunpack.c.l.b16 %v920
    %v2829 = vunpack.c.l.b16 %v921
    %v2830 = vunpack.c.l.b16 %v922
    %v2831 = vunpack.c.l.b16 %v923
    %v2832 = vpack.c.b16 %v1951, %v1950
    %v2833 = vpack.c.b16 %v1953, %v1952
    %v2834 = vpack.c.b16 %v1955, %v1954
    %v2835 = vpack.c.b16 %v1957, %v1956
    %v2836 = vpack.c.b16 %v1959, %v1958
    %v2837 = vpack.c.b16 %v1961, %v1960
    %v2838 = vpack.c.b16 %v1963, %v1962
    %v2839 = vpack.c.b16 %v1965, %v1964
    %v2840 = vpack.c.b16 %v1967, %v1966
    %v2841 = vpack.c.b16 %v1969, %v1968
    %v2842 = vpack.c.b16 %v1971, %v1970
    %v2843 = vpack.c.b16 %v1973, %v1972
    %v2844 = vpack.c.b16 %v1975, %v1974
    %v2845 = vpack.c.b16 %v1977, %v1976
    %v2846 = vpack.c.b16 %v1979, %v1978
    %v2847 = vpack.c.b16 %v1981, %v1980
    %v2848 = vpack.c.b16 %v1983, %v1982
    %v2849 = vpack.c.b16 %v1985, %v1984
    %v2850 = vpack.c.b16 %v1987, %v1986
    %v2851 = vpack.c.b16 %v1989, %v1988
    %v2852 = vpack.c.b16 %v1991, %v1990
    %v2853 = vpack.c.b16 %v1993, %v1992
    %v2854 = vpack.c.b16 %v1995, %v1994
    %v2855 = vpack.c.b16 %v1997, %v1996
    %v2856 = vpack.c.b16 %v1999, %v1998
    %v2857 = vpack.c.b16 %v2001, %v2000
    %v2858 = vpack.c.b16 %v2003, %v2002
    %v2859 = vpack.c.b16 %v2005, %v2004
    %v2860 = vpack.c.b16 %v2007, %v2006
    %v2861 = vpack.c.b16 %v2009, %v2008
    %v2862 = vpack.c.b16 %v2011, %v2010
    %v2863 = vpack.c.b16 %v2013, %v2012
    %v2864 = vpack.c.b16 %v2015, %v2014
    %v2865 = vpack.c.b16 %v2017, %v2016
    %v2866 = vpack.c.b16 %v2019, %v2018
    %v2867 = vpack.c.b16 %v2021, %v2020
    %v2868 = vpack.c.b16 %v2023, %v2022
    %v2869 = vpack.c.b16 %v2025, %v2024
    %v2870 = vpack.c.b16 %v2027, %v2026
    %v2871 = vpack.c.b16 %v2029, %v2028
    %v2872 = vpack.c.b16 %v2031, %v2030
    %v2873 = vpack.c.b16 %v2033, %v2032
    %v2874 = vpack.c.b16 %v2035, %v2034
    %v2875 = vpack.c.b16 %v2037, %v2036
    %v2876 = vpack.c.b16 %v2039, %v2038
    %v2877 = vpack.c.b16 %v2041, %v2040
    %v2878 = vpack.c.b16 %v2043, %v2042
    %v2879 = vpack.c.b16 %v2045, %v2044
    %v2880 = vpack.c.b16 %v2047, %v2046
    %v2881 = vpack.c.b16 %v2049, %v2048
    %v2882 = vpack.c.b16 %v2051, %v2050
    %v2883 = vpack.c.b16 %v2053, %v2052
    %v2884 = vpack.c.b16 %v2055, %v2054
    %v2885 = vpack.c.b16 %v2057, %v2056
    %v2886 = vpack.c.b16 %v2059, %v2058
    %v2887 = vpack.c.b16 %v2061, %v2060
    %v2888 = vpack.c.b16 %v2063, %v2062
    %v2889 = vpack.c.b16 %v2065, %v2064
    %v2890 = vpack.c.b16 %v2067, %v2066
    %v2891 = vpack.c.b16 %v2069, %v2068
    %v2892 = vpack.c.b16 %v2071, %v2070
    %v2893 = vpack.c.b16 %v2073, %v2072
    %v2894 = vpack.c.b16 %v2075, %v2074
    %v2895 = vpack.c.b16 %v2077, %v2076
    %v2896 = vpack.c.b16 %v2079, %v2078
    %v2897 = vpack.c.b16 %v2081, %v2080
    %v2898 = vpack.c.b16 %v2083, %v2082
    %v2899 = vpack.c.b16 %v2085, %v2084
    %v2900 = vpack.c.b16 %v2087, %v2086
    %v2901 = vpack.c.b16 %v2089, %v2088
    %v2902 = vpack.c.b16 %v2091, %v2090
    %v2903 = vpack.c.b16 %v2093, %v2092
    %v2904 = vpack.c.b16 %v2095, %v2094
    %v2905 = vpack.c.b16 %v2097, %v2096
    %v2906 = vpack.c.b16 %v2099, %v2098
    %v2907 = vpack.c.b16 %v2101, %v2100
    %v2908 = vpack.c.b16 %v2103, %v2102
    %v2909 = vpack.c.b16 %v2105, %v2104
    %v2910 = vpack.c.b16 %v2107, %v2106
    %v2911 = vpack.c.b16 %v2109, %v2108
    %v2912 = vpack.c.b16 %v2111, %v2110
    %v2913 = vpack.c.b16 %v2113, %v2112
    %v2914 = vpack.c.b16 %v2115, %v2114
    %v2915 = vpack.c.b16 %v2117, %v2116
    %v2916 = vpack.c.b16 %v2119, %v2118
    %v2917 = vpack.c.b16 %v2121, %v2120
    %v2918 = vpack.c.b16 %v2123, %v2122
    %v2919 = vpack.c.b16 %v2125, %v2124
    %v2920 = vpack.c.b16 %v2127, %v2126
    %v2921 = vpack.c.b16 %v2129, %v2128
    %v2922 = vpack.c.b16 %v2131, %v2130
    %v2923 = vpack.c.b16 %v2133, %v2132
    %v2924 = vpack.c.b16 %v2135, %v2134
    %v2925 = vpack.c.b16 %v2137, %v2136
    %v2926 = vpack.c.b16 %v2139, %v2138
    %v2927 = vpack.c.b16 %v2141, %v2140
    %v2928 = vpack.c.b16 %v2143, %v2142
    %v2929 = vpack.c.b16 %v2145, %v2144
    %v2930 = vpack.c.b16 %v2147, %v2146
    %v2931 = vpack.c.b16 %v2149, %v2148
    %v2932 = vpack.c.b16 %v2151, %v2150
    %v2933 = vpack.c.b16 %v2153, %v2152
    %v2934 = vpack.c.b16 %v2155, %v2154
    %v2935 = vpack.c.b16 %v2157, %v2156
    %v2936 = vpack.c.b16 %v2159, %v2158
    %v2937 = vpack.c.b16 %v2161, %v2160
    %v2938 = vpack.c.b16 %v2163, %v2162
    %v2939 = vpack.c.b16 %v2165, %v2164
    %v2940 = vpack.c.b16 %v2167, %v2166
    %v2941 = vpack.c.b16 %v2169, %v2168
    %v2942 = vpack.c.b16 %v2171, %v2170
    %v2943 = vpack.c.b16 %v2173, %v2172
    %v2944 = vpack.c.b16 %v2175, %v2174
    %v2945 = vpack.c.b16 %v2177, %v2176
    %v2946 = vpack.c.b16 %v2179, %v2178
    %v2947 = vpack.c.b16 %v2181, %v2180
    %v2948 = vpack.c.b16 %v2183, %v2182
    %v2949 = vpack.c.b16 %v2185, %v2184
    %v2950 = vpack.c.b16 %v2187, %v2186
    %v2951 = vpack.c.b16 %v2189, %v2188
    %v2952 = vpack.c.b16 %v2191, %v2190
    %v2953 = vpack.c.b16 %v2193, %v2192
    %v2954 = vpack.c.b16 %v2195, %v2194
    %v2955 = vpack.c.b16 %v2197, %v2196
    %v2956 = vpack.c.b16 %v2199, %v2198
    %v2957 = vpack.c.b16 %v2201, %v2200
    %v2958 = vpack.c.b16 %v2203, %v2202
    %v2959 = vpack.c.b16 %v2205, %v2204
    %v2960 = vpack.c.b16 %v2207, %v2206
    %v2961 = vpack.c.b16 %v2209, %v2208
    %v2962 = vpack.c.b16 %v2211, %v2210
    %v2963 = vpack.c.b16 %v2213, %v2212
    %v2964 = vpack.c.b16 %v2215, %v2214
    %v2965 = vpack.c.b16 %v2217, %v2216
    %v2966 = vpack.c.b16 %v2219, %v2218
    %v2967 = vpack.c.b16 %v2221, %v2220
    %v2968 = vpack.c.b16 %v2223, %v2222
    %v2969 = vpack.c.b16 %v2225, %v2224
    %v2970 = vpack.c.b16 %v2227, %v2226
    %v2971 = vpack.c.b16 %v2229, %v2228
    %v2972 = vpack.c.b16 %v2231, %v2230
    %v2973 = vpack.c.b16 %v2233, %v2232
    %v2974 = vpack.c.b16 %v2235, %v2234
    %v2975 = vpack.c.b16 %v2237, %v2236
    %v2976 = vpack.c.b16 %v2239, %v2238
    %v2977 = vpack.c.b16 %v2241, %v2240
    %v2978 = vpack.c.b16 %v2243, %v2242
    %v2979 = vpack.c.b16 %v2245, %v2244
    %v2980 = vpack.c.b16 %v2247, %v2246
    %v2981 = vpack.c.b16 %v2249, %v2248
    %v2982 = vpack.c.b16 %v2251, %v2250
    %v2983 = vpack.c.b16 %v2253, %v2252
    %v2984 = vpack.c.b16 %v2255, %v2254
    %v2985 = vpack.c.b16 %v2257, %v2256
    %v2986 = vpack.c.b16 %v2259, %v2258
    %v2987 = vpack.c.b16 %v2261, %v2260
    %v2988 = vpack.c.b16 %v2263, %v2262
    %v2989 = vpack.c.b16 %v2265, %v2264
    %v2990 = vpack.c.b16 %v2267, %v2266
    %v2991 = vpack.c.b16 %v2269, %v2268
    %v2992 = vpack.c.b16 %v2271, %v2270
    %v2993 = vpack.c.b16 %v2273, %v2272
    %v2994 = vpack.c.b16 %v2275, %v2274
    %v2995 = vpack.c.b16 %v2277, %v2276
    %v2996 = vpack.c.b16 %v2279, %v2278
    %v2997 = vpack.c.b16 %v2281, %v2280
    %v2998 = vpack.c.b16 %v2283, %v2282
    %v2999 = vpack.c.b16 %v2285, %v2284
    %v3000 = vpack.c.b16 %v2287, %v2286
    %v3001 = vpack.c.b16 %v2289, %v2288
    %v3002 = vpack.c.b16 %v2291, %v2290
    %v3003 = vpack.c.b16 %v2293, %v2292
    %v3004 = vpack.c.b16 %v2295, %v2294
    %v3005 = vpack.c.b16 %v2297, %v2296
    %v3006 = vpack.c.b16 %v2299, %v2298
    %v3007 = vpack.c.b16 %v2301, %v2300
    %v3008 = vpack.c.b16 %v2303, %v2302
    %v3009 = vpack.c.b16 %v2305, %v2304
    %v3010 = vpack.c.b16 %v2307, %v2306
    %v3011 = vpack.c.b16 %v2309, %v2308
    %v3012 = vpack.c.b16 %v2311, %v2310
    %v3013 = vpack.c.b16 %v2313, %v2312
    %v3014 = vpack.c.b16 %v2315, %v2314
    %v3015 = vpack.c.b16 %v2317, %v2316
    %v3016 = vpack.c.b16 %v2319, %v2318
    %v3017 = vpack.c.b16 %v2321, %v2320
    %v3018 = vpack.c.b16 %v2323, %v2322
    %v3019 = vpack.c.b16 %v2325, %v2324
    %v3020 = vpack.c.b16 %v2327, %v2326
    %v3021 = vpack.c.b16 %v2329, %v2328
    %v3022 = vpack.c.b16 %v2331, %v2330
    %v3023 = vpack.c.b16 %v2333, %v2332
    %v3024 = vpack.c.b16 %v2335, %v2334
    %v3025 = vpack.c.b16 %v2337, %v2336
    %v3026 = vpack.c.b16 %v2339, %v2338
    %v3027 = vpack.c.b16 %v2341, %v2340
    %v3028 = vpack.c.b16 %v2343, %v2342
    %v3029 = vpack.c.b16 %v2345, %v2344
    %v3030 = vpack.c.b16 %v2347, %v2346
    %v3031 = vpack.c.b16 %v2349, %v2348
    %v3032 = vpack.c.b16 %v2351, %v2350
    %v3033 = vpack.c.b16 %v2353, %v2352
    %v3034 = vpack.c.b16 %v2355, %v2354
    %v3035 = vpack.c.b16 %v2357, %v2356
    %v3036 = vpack.c.b16 %v2359, %v2358
    %v3037 = vpack.c.b16 %v2361, %v2360
    %v3038 = vpack.c.b16 %v2363, %v2362
    %v3039 = vpack.c.b16 %v2365, %v2364
    %v3040 = vpack.c.b16 %v2367, %v2366
    %v3041 = vpack.c.b16 %v2369, %v2368
    %v3042 = vpack.c.b16 %v2371, %v2370
    %v3043 = vpack.c.b16 %v2373, %v2372
    %v3044 = vpack.c.b16 %v2375, %v2374
    %v3045 = vpack.c.b16 %v2377, %v2376
    %v3046 = vpack.c.b16 %v2379, %v2378
    %v3047 = vpack.c.b16 %v2381, %v2380
    %v3048 = vpack.c.b16 %v2383, %v2382
    %v3049 = vpack.c.b16 %v2385, %v2384
    %v3050 = vpack.c.b16 %v2387, %v2386
    %v3051 = vpack.c.b16 %v2389, %v2388
    %v3052 = vpack.c.b16 %v2391, %v2390
    %v3053 = vpack.c.b16 %v2393, %v2392
    %v3054 = vpack.c.b16 %v2395, %v2394
    %v3055 = vpack.c.b16 %v2397, %v2396
    %v3056 = vpack.c.b16 %v2399, %v2398
    %v3057 = vpack.c.b16 %v2401, %v2400
    %v3058 = vpack.c.b16 %v2403, %v2402
    %v3059 = vpack.c.b16 %v2405, %v2404
    %v3060 = vpack.c.b16 %v2407, %v2406
    %v3061 = vpack.c.b16 %v2409, %v2408
    %v3062 = vpack.c.b16 %v2411, %v2410
    %v3063 = vpack.c.b16 %v2413, %v2412
    %v3064 = vpack.c.b16 %v2415, %v2414
    %v3065 = vpack.c.b16 %v2417, %v2416
    %v3066 = vpack.c.b16 %v2419, %v2418
    %v3067 = vpack.c.b16 %v2421, %v2420
    %v3068 = vpack.c.b16 %v2423, %v2422
    %v3069 = vpack.c.b16 %v2425, %v2424
    %v3070 = vpack.c.b16 %v2427, %v2426
    %v3071 = vpack.c.b16 %v2429, %v2428
    %v3072 = vpack.c.b16 %v2431, %v2430
    %v3073 = vpack.c.b16 %v2433, %v2432
    %v3074 = vpack.c.b16 %v2435, %v2434
    %v3075 = vpack.c.b16 %v2437, %v2436
    %v3076 = vpack.c.b16 %v2439, %v2438
    %v3077 = vpack.c.b16 %v2441, %v2440
    %v3078 = vpack.c.b16 %v2443, %v2442
    %v3079 = vpack.c.b16 %v2445, %v2444
    %v3080 = vpack.c.b16 %v2447, %v2446
    %v3081 = vpack.c.b16 %v2449, %v2448
    %v3082 = vpack.c.b16 %v2451, %v2450
    %v3083 = vpack.c.b16 %v2453, %v2452
    %v3084 = vpack.c.b16 %v2455, %v2454
    %v3085 = vpack.c.b16 %v2457, %v2456
    %v3086 = vpack.c.b16 %v2459, %v2458
    %v3087 = vpack.c.b16 %v2461, %v2460
    %v3088 = vpack.c.b16 %v2463, %v2462
    %v3089 = vpack.c.b16 %v2465, %v2464
    %v3090 = vpack.c.b16 %v2467, %v2466
    %v3091 = vpack.c.b16 %v2469, %v2468
    %v3092 = vpack.c.b16 %v2471, %v2470
    %v3093 = vpack.c.b16 %v2473, %v2472
    %v3094 = vpack.c.b16 %v2475, %v2474
    %v3095 = vpack.c.b16 %v2477, %v2476
    %v3096 = vpack.c.b16 %v2479, %v2478
    %v3097 = vpack.c.b16 %v2481, %v2480
    %v3098 = vpack.c.b16 %v2483, %v2482
    %v3099 = vpack.c.b16 %v2485, %v2484
    %v3100 = vpack.c.b16 %v2487, %v2486
    %v3101 = vpack.c.b16 %v2489, %v2488
    %v3102 = vpack.c.b16 %v2491, %v2490
    %v3103 = vpack.c.b16 %v2493, %v2492
    %v3104 = vpack.c.b16 %v2495, %v2494
    %v3105 = vpack.c.b16 %v2497, %v2496
    %v3106 = vpack.c.b16 %v2499, %v2498
    %v3107 = vpack.c.b16 %v2501, %v2500
    %v3108 = vpack.c.b16 %v2503, %v2502
    %v3109 = vpack.c.b16 %v2505, %v2504
    %v3110 = vpack.c.b16 %v2507, %v2506
    %v3111 = vpack.c.b16 %v2509, %v2508
    %v3112 = vpack.c.b16 %v2511, %v2510
    %v3113 = vpack.c.b16 %v2513, %v2512
    %v3114 = vpack.c.b16 %v2515, %v2514
    %v3115 = vpack.c.b16 %v2517, %v2516
    %v3116 = vpack.c.b16 %v2519, %v2518
    %v3117 = vpack.c.b16 %v2521, %v2520
    %v3118 = vpack.c.b16 %v2523, %v2522
    %v3119 = vpack.c.b16 %v2525, %v2524
    %v3120 = vpack.c.b16 %v2527, %v2526
    %v3121 = vpack.c.b16 %v2529, %v2528
    %v3122 = vpack.c.b16 %v2531, %v2530
    %v3123 = vpack.c.b16 %v2533, %v2532
    %v3124 = vpack.c.b16 %v2535, %v2534
    %v3125 = vpack.c.b16 %v2537, %v2536
    %v3126 = vpack.c.b16 %v2539, %v2538
    %v3127 = vpack.c.b16 %v2541, %v2540
    %v3128 = vpack.c.b16 %v2543, %v2542
    %v3129 = vpack.c.b16 %v2545, %v2544
    %v3130 = vpack.c.b16 %v2547, %v2546
    %v3131 = vpack.c.b16 %v2549, %v2548
    %v3132 = vpack.c.b16 %v2551, %v2550
    %v3133 = vpack.c.b16 %v2553, %v2552
    %v3134 = vpack.c.b16 %v2555, %v2554
    %v3135 = vpack.c.b16 %v2557, %v2556
    %v3136 = vpack.c.b16 %v2559, %v2558
    %v3137 = vpack.c.b16 %v2561, %v2560
    %v3138 = vpack.c.b16 %v2563, %v2562
    %v3139 = vpack.c.b16 %v2565, %v2564
    %v3140 = vpack.c.b16 %v2567, %v2566
    %v3141 = vpack.c.b16 %v2569, %v2568
    %v3142 = vpack.c.b16 %v2571, %v2570
    %v3143 = vpack.c.b16 %v2573, %v2572
    %v3144 = vpack.c.b16 %v2575, %v2574
    %v3145 = vpack.c.b16 %v2577, %v2576
    %v3146 = vpack.c.b16 %v2579, %v2578
    %v3147 = vpack.c.b16 %v2581, %v2580
    %v3148 = vpack.c.b16 %v2583, %v2582
    %v3149 = vpack.c.b16 %v2585, %v2584
    %v3150 = vpack.c.b16 %v2587, %v2586
    %v3151 = vpack.c.b16 %v2589, %v2588
    %v3152 = vpack.c.b16 %v2591, %v2590
    %v3153 = vpack.c.b16 %v2593, %v2592
    %v3154 = vpack.c.b16 %v2595, %v2594
    %v3155 = vpack.c.b16 %v2597, %v2596
    %v3156 = vpack.c.b16 %v2599, %v2598
    %v3157 = vpack.c.b16 %v2601, %v2600
    %v3158 = vpack.c.b16 %v2603, %v2602
    %v3159 = vpack.c.b16 %v2605, %v2604
    %v3160 = vpack.c.b16 %v2607, %v2606
    %v3161 = vpack.c.b16 %v2609, %v2608
    %v3162 = vpack.c.b16 %v2611, %v2610
    %v3163 = vpack.c.b16 %v2613, %v2612
    %v3164 = vpack.c.b16 %v2615, %v2614
    %v3165 = vpack.c.b16 %v2617, %v2616
    %v3166 = vpack.c.b16 %v2619, %v2618
    %v3167 = vpack.c.b16 %v2621, %v2620
    %v3168 = vpack.c.b16 %v2623, %v2622
    %v3169 = vpack.c.b16 %v2625, %v2624
    %v3170 = vpack.c.b16 %v2627, %v2626
    %v3171 = vpack.c.b16 %v2629, %v2628
    %v3172 = vpack.c.b16 %v2631, %v2630
    %v3173 = vpack.c.b16 %v2633, %v2632
    %v3174 = vpack.c.b16 %v2635, %v2634
    %v3175 = vpack.c.b16 %v2637, %v2636
    %v3176 = vpack.c.b16 %v2639, %v2638
    %v3177 = vpack.c.b16 %v2641, %v2640
    %v3178 = vpack.c.b16 %v2643, %v2642
    %v3179 = vpack.c.b16 %v2645, %v2644
    %v3180 = vpack.c.b16 %v2647, %v2646
    %v3181 = vpack.c.b16 %v2649, %v2648
    %v3182 = vpack.c.b16 %v2651, %v2650
    %v3183 = vpack.c.b16 %v2653, %v2652
    %v3184 = vpack.c.b16 %v2655, %v2654
    %v3185 = vpack.c.b16 %v2657, %v2656
    %v3186 = vpack.c.b16 %v2659, %v2658
    %v3187 = vpack.c.b16 %v2661, %v2660
    %v3188 = vpack.c.b16 %v2663, %v2662
    %v3189 = vpack.c.b16 %v2665, %v2664
    %v3190 = vpack.c.b16 %v2667, %v2666
    %v3191 = vpack.c.b16 %v2669, %v2668
    %v3192 = vpack.c.b16 %v2671, %v2670
    %v3193 = vpack.c.b16 %v2673, %v2672
    %v3194 = vpack.c.b16 %v2675, %v2674
    %v3195 = vpack.c.b16 %v2677, %v2676
    %v3196 = vpack.c.b16 %v2679, %v2678
    %v3197 = vpack.c.b16 %v2681, %v2680
    %v3198 = vpack.c.b16 %v2683, %v2682
    %v3199 = vpack.c.b16 %v2685, %v2684
    %v3200 = vpack.c.b16 %v2687, %v2686
    %v3201 = vpack.c.b16 %v2689, %v2688
    %v3202 = vpack.c.b16 %v2691, %v2690
    %v3203 = vpack.c.b16 %v2693, %v2692
    %v3204 = vpack.c.b16 %v2695, %v2694
    %v3205 = vpack.c.b16 %v2697, %v2696
    %v3206 = vpack.c.b16 %v2699, %v2698
    %v3207 = vpack.c.b16 %v2701, %v2700
    %v3208 = vpack.c.b16 %v2703, %v2702
    %v3209 = vpack.c.b16 %v2705, %v2704
    %v3210 = vpack.c.b16 %v2707, %v2706
    %v3211 = vpack.c.b16 %v2709, %v2708
    %v3212 = vpack.c.b16 %v2711, %v2710
    %v3213 = vpack.c.b16 %v2713, %v2712
    %v3214 = vpack.c.b16 %v2715, %v2714
    %v3215 = vpack.c.b16 %v2717, %v2716
    %v3216 = vpack.c.b16 %v2719, %v2718
    %v3217 = vpack.c.b16 %v2721, %v2720
    %v3218 = vpack.c.b16 %v2723, %v2722
    %v3219 = vpack.c.b16 %v2725, %v2724
    %v3220 = vpack.c.b16 %v2727, %v2726
    %v3221 = vpack.c.b16 %v2729, %v2728
    %v3222 = vpack.c.b16 %v2731, %v2730
    %v3223 = vpack.c.b16 %v2733, %v2732
    %v3224 = vpack.c.b16 %v2735, %v2734
    %v3225 = vpack.c.b16 %v2737, %v2736
    %v3226 = vpack.c.b16 %v2739, %v2738
    %v3227 = vpack.c.b16 %v2741, %v2740
    %v3228 = vpack.c.b16 %v2743, %v2742
    %v3229 = vpack.c.b16 %v2745, %v2744
    %v3230 = vpack.c.b16 %v2747, %v2746
    %v3231 = vpack.c.b16 %v2749, %v2748
    %v3232 = vpack.c.b16 %v2751, %v2750
    %v3233 = vpack.c.b16 %v2753, %v2752
    %v3234 = vpack.c.b16 %v2755, %v2754
    %v3235 = vpack.c.b16 %v2757, %v2756
    %v3236 = vpack.c.b16 %v2759, %v2758
    %v3237 = vpack.c.b16 %v2761, %v2760
    %v3238 = vpack.c.b16 %v2763, %v2762
    %v3239 = vpack.c.b16 %v2765, %v2764
    %v3240 = vpack.c.b16 %v2767, %v2766
    %v3241 = vpack.c.b16 %v2769, %v2768
    %v3242 = vpack.c.b16 %v2771, %v2770
    %v3243 = vpack.c.b16 %v2773, %v2772
    %v3244 = vpack.c.b16 %v2775, %v2774
    %v3245 = vpack.c.b16 %v2777, %v2776
    %v3246 = vpack.c.b16 %v2779, %v2778
    %v3247 = vpack.c.b16 %v2781, %v2780
    %v3248 = vpack.c.b16 %v2783, %v2782
    %v3249 = vpack.c.b16 %v2785, %v2784
    %v3250 = vpack.c.b16 %v2787, %v2786
    %v3251 = vpack.c.b16 %v2789, %v2788
    %v3252 = vpack.c.b16 %v2791, %v2790
    %v3253 = vpack.c.b16 %v2793, %v2792
    %v3254 = vpack.c.b16 %v2795, %v2794
    %v3255 = vpack.c.b16 %v2797, %v2796
    %v3256 = vpack.c.b16 %v2799, %v2798
    %v3257 = vpack.c.b16 %v2801, %v2800
    %v3258 = vpack.c.b16 %v2803, %v2802
    %v3259 = vpack.c.b16 %v2805, %v2804
    %v3260 = vpack.c.b16 %v2807, %v2806
    %v3261 = vpack.c.b16 %v2809, %v2808
    %v3262 = vpack.c.b16 %v2811, %v2810
    %v3263 = vpack.c.b16 %v2813, %v2812
    %v3264 = vpack.c.b16 %v2815, %v2814
    %v3265 = vpack.c.b16 %v2817, %v2816
    %v3266 = vpack.c.b16 %v2819, %v2818
    %v3267 = vpack.c.b16 %v2821, %v2820
    %v3268 = vpack.c.b16 %v2823, %v2822
    %v3269 = vpack.c.b16 %v2825, %v2824
    %v3270 = vpack.c.b16 %v2827, %v2826
    %v3271 = vpack.c.b16 %v2829, %v2828
    %v3272 = vpack.c.b16 %v2831, %v2830
    %vm3714 = vcmask 130048
    %v3715 = vsel %vm3714, %v1012, 0
    %3717 = vmatpush.bf16.msra.mxu0 %v2839
    %3718 = vmatpush.bf16.msra.mxu0 %v2838
    %3719 = vmatpush.bf16.msra.mxu0 %v2837
    %3720 = vmatpush.bf16.msra.mxu0 %v2836
    %3721 = vmatpush.bf16.msra.mxu0 %v2835
    %3722 = vmatpush.bf16.msra.mxu0 %v2834
    %3723 = vmatpush.bf16.msra.mxu0 %v2833
    %3724 = vmatpush.bf16.msra.mxu0 %v2832
    %3725 = vmatmul.bf16.gmra.mxu0 %v933
    %v3726 = vpop.f32.mrf.mxu0
    %v3727 = vadd.f32 %v926, %v3726
    %v3728 = vpop.f32.mrf.mxu0
    %3729 = vdwg.mxu0
    %3730 = vmatpush.bf16.msra.mxu0 %v2847
    %3731 = vmatpush.bf16.msra.mxu0 %v2846
    %3732 = vmatpush.bf16.msra.mxu0 %v2845
    %3733 = vmatpush.bf16.msra.mxu0 %v2844
    %3734 = vmatpush.bf16.msra.mxu0 %v2843
    %3735 = vmatpush.bf16.msra.mxu0 %v2842
    %3736 = vmatpush.bf16.msra.mxu0 %v2841
    %3737 = vmatpush.bf16.msra.mxu0 %v2840
    %3738 = vmatmul.bf16.gmra.mxu0 %v934
    %v3739 = vpop.f32.mrf.mxu0
    %v3740 = vadd.f32 %v3727, %v3739
    %v3741 = vpop.f32.mrf.mxu0
    %3742 = vdwg.mxu0
    %3743 = vmatpush.bf16.msra.mxu0 %v2855
    %3744 = vmatpush.bf16.msra.mxu0 %v2854
    %3745 = vmatpush.bf16.msra.mxu0 %v2853
    %3746 = vmatpush.bf16.msra.mxu0 %v2852
    %3747 = vmatpush.bf16.msra.mxu0 %v2851
    %3748 = vmatpush.bf16.msra.mxu0 %v2850
    %3749 = vmatpush.bf16.msra.mxu0 %v2849
    %3750 = vmatpush.bf16.msra.mxu0 %v2848
    %3751 = vmatmul.bf16.gmra.mxu0 %v935
    %v3752 = vpop.f32.mrf.mxu0
    %v3753 = vadd.f32 %v3740, %v3752
    %v3754 = vpop.f32.mrf.mxu0
    %3755 = vdwg.mxu0
    %3756 = vmatpush.bf16.msra.mxu0 %v2863
    %3757 = vmatpush.bf16.msra.mxu0 %v2862
    %3758 = vmatpush.bf16.msra.mxu0 %v2861
    %3759 = vmatpush.bf16.msra.mxu0 %v2860
    %3760 = vmatpush.bf16.msra.mxu0 %v2859
    %3761 = vmatpush.bf16.msra.mxu0 %v2858
    %3762 = vmatpush.bf16.msra.mxu0 %v2857
    %3763 = vmatpush.bf16.msra.mxu0 %v2856
    %3764 = vmatmul.bf16.gmra.mxu0 %v936
    %v3765 = vpop.f32.mrf.mxu0
    %v3766 = vadd.f32 %v3753, %v3765
    %v3767 = vpop.f32.mrf.mxu0
    %3768 = vdwg.mxu0
    %3769 = vmatpush.bf16.msra.mxu0 %v2871
    %3770 = vmatpush.bf16.msra.mxu0 %v2870
    %3771 = vmatpush.bf16.msra.mxu0 %v2869
    %3772 = vmatpush.bf16.msra.mxu0 %v2868
    %3773 = vmatpush.bf16.msra.mxu0 %v2867
    %3774 = vmatpush.bf16.msra.mxu0 %v2866
    %3775 = vmatpush.bf16.msra.mxu0 %v2865
    %3776 = vmatpush.bf16.msra.mxu0 %v2864
    %3777 = vmatmul.bf16.gmra.mxu0 %v937
    %v3778 = vpop.f32.mrf.mxu0
    %v3779 = vadd.f32 %v3766, %v3778
    %v3780 = vpop.f32.mrf.mxu0
    %3781 = vdwg.mxu0
    %3782 = vmatpush.bf16.msra.mxu0 %v2879
    %3783 = vmatpush.bf16.msra.mxu0 %v2878
    %3784 = vmatpush.bf16.msra.mxu0 %v2877
    %3785 = vmatpush.bf16.msra.mxu0 %v2876
    %3786 = vmatpush.bf16.msra.mxu0 %v2875
    %3787 = vmatpush.bf16.msra.mxu0 %v2874
    %3788 = vmatpush.bf16.msra.mxu0 %v2873
    %3789 = vmatpush.bf16.msra.mxu0 %v2872
    %3790 = vmatmul.bf16.gmra.mxu0 %v938
    %v3791 = vpop.f32.mrf.mxu0
    %v3792 = vadd.f32 %v3779, %v3791
    %v3793 = vpop.f32.mrf.mxu0
    %3794 = vdwg.mxu0
    %3795 = vmatpush.bf16.msra.mxu0 %v2887
    %3796 = vmatpush.bf16.msra.mxu0 %v2886
    %3797 = vmatpush.bf16.msra.mxu0 %v2885
    %3798 = vmatpush.bf16.msra.mxu0 %v2884
    %3799 = vmatpush.bf16.msra.mxu0 %v2883
    %3800 = vmatpush.bf16.msra.mxu0 %v2882
    %3801 = vmatpush.bf16.msra.mxu0 %v2881
    %3802 = vmatpush.bf16.msra.mxu0 %v2880
    %3803 = vmatmul.bf16.gmra.mxu0 %v939
    %v3804 = vpop.f32.mrf.mxu0
    %v3805 = vadd.f32 %v3792, %v3804
    %v3806 = vpop.f32.mrf.mxu0
    %3807 = vdwg.mxu0
    %3808 = vmatpush.bf16.msra.mxu0 %v2895
    %3809 = vmatpush.bf16.msra.mxu0 %v2894
    %3810 = vmatpush.bf16.msra.mxu0 %v2893
    %3811 = vmatpush.bf16.msra.mxu0 %v2892
    %3812 = vmatpush.bf16.msra.mxu0 %v2891
    %3813 = vmatpush.bf16.msra.mxu0 %v2890
    %3814 = vmatpush.bf16.msra.mxu0 %v2889
    %3815 = vmatpush.bf16.msra.mxu0 %v2888
    %3816 = vmatmul.bf16.gmra.mxu0 %v940
    %v3817 = vpop.f32.mrf.mxu0
    %v3818 = vadd.f32 %v3805, %v3817
    %v3819 = vpop.f32.mrf.mxu0
    %3820 = vdwg.mxu0
    %3821 = vmatpush.bf16.msra.mxu0 %v2903
    %3822 = vmatpush.bf16.msra.mxu0 %v2902
    %3823 = vmatpush.bf16.msra.mxu0 %v2901
    %3824 = vmatpush.bf16.msra.mxu0 %v2900
    %3825 = vmatpush.bf16.msra.mxu0 %v2899
    %3826 = vmatpush.bf16.msra.mxu0 %v2898
    %3827 = vmatpush.bf16.msra.mxu0 %v2897
    %3828 = vmatpush.bf16.msra.mxu0 %v2896
    %3829 = vmatmul.bf16.gmra.mxu0 %v945
    %v3830 = vpop.f32.mrf.mxu0
    %v3831 = vadd.f32 %v3818, %v3830
    %v3832 = vpop.f32.mrf.mxu0
    %3833 = vdwg.mxu0
    %3834 = vmatpush.bf16.msra.mxu0 %v2911
    %3835 = vmatpush.bf16.msra.mxu0 %v2910
    %3836 = vmatpush.bf16.msra.mxu0 %v2909
    %3837 = vmatpush.bf16.msra.mxu0 %v2908
    %3838 = vmatpush.bf16.msra.mxu0 %v2907
    %3839 = vmatpush.bf16.msra.mxu0 %v2906
    %3840 = vmatpush.bf16.msra.mxu0 %v2905
    %3841 = vmatpush.bf16.msra.mxu0 %v2904
    %3842 = vmatmul.bf16.gmra.mxu0 %v946
    %v3843 = vpop.f32.mrf.mxu0
    %v3844 = vadd.f32 %v3831, %v3843
    %v3845 = vpop.f32.mrf.mxu0
    %3846 = vdwg.mxu0
    %3847 = vmatpush.bf16.msra.mxu0 %v2919
    %3848 = vmatpush.bf16.msra.mxu0 %v2918
    %3849 = vmatpush.bf16.msra.mxu0 %v2917
    %3850 = vmatpush.bf16.msra.mxu0 %v2916
    %3851 = vmatpush.bf16.msra.mxu0 %v2915
    %3852 = vmatpush.bf16.msra.mxu0 %v2914
    %3853 = vmatpush.bf16.msra.mxu0 %v2913
    %3854 = vmatpush.bf16.msra.mxu0 %v2912
    %3855 = vmatmul.bf16.gmra.mxu0 %v947
    %v3856 = vpop.f32.mrf.mxu0
    %v3857 = vadd.f32 %v3844, %v3856
    %v3858 = vpop.f32.mrf.mxu0
    %3859 = vdwg.mxu0
    %3860 = vmatpush.bf16.msra.mxu0 %v2927
    %3861 = vmatpush.bf16.msra.mxu0 %v2926
    %3862 = vmatpush.bf16.msra.mxu0 %v2925
    %3863 = vmatpush.bf16.msra.mxu0 %v2924
    %3864 = vmatpush.bf16.msra.mxu0 %v2923
    %3865 = vmatpush.bf16.msra.mxu0 %v2922
    %3866 = vmatpush.bf16.msra.mxu0 %v2921
    %3867 = vmatpush.bf16.msra.mxu0 %v2920
    %3868 = vmatmul.bf16.gmra.mxu0 %v948
    %v3869 = vpop.f32.mrf.mxu0
    %v3870 = vadd.f32 %v3857, %v3869
    %v3871 = vpop.f32.mrf.mxu0
    %3872 = vdwg.mxu0
    %3873 = vmatpush.bf16.msra.mxu0 %v2935
    %3874 = vmatpush.bf16.msra.mxu0 %v2934
    %3875 = vmatpush.bf16.msra.mxu0 %v2933
    %3876 = vmatpush.bf16.msra.mxu0 %v2932
    %3877 = vmatpush.bf16.msra.mxu0 %v2931
    %3878 = vmatpush.bf16.msra.mxu0 %v2930
    %3879 = vmatpush.bf16.msra.mxu0 %v2929
    %3880 = vmatpush.bf16.msra.mxu0 %v2928
    %3881 = vmatmul.bf16.gmra.mxu0 %v949
    %v3882 = vpop.f32.mrf.mxu0
    %v3883 = vadd.f32 %v3870, %v3882
    %v3884 = vpop.f32.mrf.mxu0
    %3885 = vdwg.mxu0
    %3886 = vmatpush.bf16.msra.mxu0 %v2943
    %3887 = vmatpush.bf16.msra.mxu0 %v2942
    %3888 = vmatpush.bf16.msra.mxu0 %v2941
    %3889 = vmatpush.bf16.msra.mxu0 %v2940
    %3890 = vmatpush.bf16.msra.mxu0 %v2939
    %3891 = vmatpush.bf16.msra.mxu0 %v2938
    %3892 = vmatpush.bf16.msra.mxu0 %v2937
    %3893 = vmatpush.bf16.msra.mxu0 %v2936
    %3894 = vmatmul.bf16.gmra.mxu0 %v950
    %v3895 = vpop.f32.mrf.mxu0
    %v3896 = vadd.f32 %v3883, %v3895
    %v3897 = vpop.f32.mrf.mxu0
    %3898 = vdwg.mxu0
    %3899 = vmatpush.bf16.msra.mxu0 %v2951
    %3900 = vmatpush.bf16.msra.mxu0 %v2950
    %3901 = vmatpush.bf16.msra.mxu0 %v2949
    %3902 = vmatpush.bf16.msra.mxu0 %v2948
    %3903 = vmatpush.bf16.msra.mxu0 %v2947
    %3904 = vmatpush.bf16.msra.mxu0 %v2946
    %3905 = vmatpush.bf16.msra.mxu0 %v2945
    %3906 = vmatpush.bf16.msra.mxu0 %v2944
    %3907 = vmatmul.bf16.gmra.mxu0 %v951
    %v3908 = vpop.f32.mrf.mxu0
    %v3909 = vadd.f32 %v3896, %v3908
    %v3910 = vpop.f32.mrf.mxu0
    %3911 = vdwg.mxu0
    %3912 = vmatpush.bf16.msra.mxu0 %v2959
    %3913 = vmatpush.bf16.msra.mxu0 %v2958
    %3914 = vmatpush.bf16.msra.mxu0 %v2957
    %3915 = vmatpush.bf16.msra.mxu0 %v2956
    %3916 = vmatpush.bf16.msra.mxu0 %v2955
    %3917 = vmatpush.bf16.msra.mxu0 %v2954
    %3918 = vmatpush.bf16.msra.mxu0 %v2953
    %3919 = vmatpush.bf16.msra.mxu0 %v2952
    %3920 = vmatmul.bf16.gmra.mxu0 %v952
    %v3921 = vpop.f32.mrf.mxu0
    %v3922 = vadd.f32 %v3909, %v3921
    %v3923 = vpop.f32.mrf.mxu0
    %3924 = vdwg.mxu0
    %3925 = vmatpush.bf16.msra.mxu0 %v2967
    %3926 = vmatpush.bf16.msra.mxu0 %v2966
    %3927 = vmatpush.bf16.msra.mxu0 %v2965
    %3928 = vmatpush.bf16.msra.mxu0 %v2964
    %3929 = vmatpush.bf16.msra.mxu0 %v2963
    %3930 = vmatpush.bf16.msra.mxu0 %v2962
    %3931 = vmatpush.bf16.msra.mxu0 %v2961
    %3932 = vmatpush.bf16.msra.mxu0 %v2960
    %3933 = vmatmul.bf16.gmra.mxu0 %v957
    %v3934 = vpop.f32.mrf.mxu0
    %v3935 = vadd.f32 %v3922, %v3934
    %v3936 = vpop.f32.mrf.mxu0
    %3937 = vdwg.mxu0
    %3938 = vmatpush.bf16.msra.mxu0 %v2975
    %3939 = vmatpush.bf16.msra.mxu0 %v2974
    %3940 = vmatpush.bf16.msra.mxu0 %v2973
    %3941 = vmatpush.bf16.msra.mxu0 %v2972
    %3942 = vmatpush.bf16.msra.mxu0 %v2971
    %3943 = vmatpush.bf16.msra.mxu0 %v2970
    %3944 = vmatpush.bf16.msra.mxu0 %v2969
    %3945 = vmatpush.bf16.msra.mxu0 %v2968
    %3946 = vmatmul.bf16.gmra.mxu0 %v958
    %v3947 = vpop.f32.mrf.mxu0
    %v3948 = vadd.f32 %v3935, %v3947
    %v3949 = vpop.f32.mrf.mxu0
    %3950 = vdwg.mxu0
    %3951 = vmatpush.bf16.msra.mxu0 %v2983
    %3952 = vmatpush.bf16.msra.mxu0 %v2982
    %3953 = vmatpush.bf16.msra.mxu0 %v2981
    %3954 = vmatpush.bf16.msra.mxu0 %v2980
    %3955 = vmatpush.bf16.msra.mxu0 %v2979
    %3956 = vmatpush.bf16.msra.mxu0 %v2978
    %3957 = vmatpush.bf16.msra.mxu0 %v2977
    %3958 = vmatpush.bf16.msra.mxu0 %v2976
    %3959 = vmatmul.bf16.gmra.mxu0 %v959
    %v3960 = vpop.f32.mrf.mxu0
    %v3961 = vadd.f32 %v3948, %v3960
    %v3962 = vpop.f32.mrf.mxu0
    %3963 = vdwg.mxu0
    %3964 = vmatpush.bf16.msra.mxu0 %v2991
    %3965 = vmatpush.bf16.msra.mxu0 %v2990
    %3966 = vmatpush.bf16.msra.mxu0 %v2989
    %3967 = vmatpush.bf16.msra.mxu0 %v2988
    %3968 = vmatpush.bf16.msra.mxu0 %v2987
    %3969 = vmatpush.bf16.msra.mxu0 %v2986
    %3970 = vmatpush.bf16.msra.mxu0 %v2985
    %3971 = vmatpush.bf16.msra.mxu0 %v2984
    %3972 = vmatmul.bf16.gmra.mxu0 %v960
    %v3973 = vpop.f32.mrf.mxu0
    %v3974 = vadd.f32 %v3961, %v3973
    %v3975 = vpop.f32.mrf.mxu0
    %3976 = vdwg.mxu0
    %3977 = vmatpush.bf16.msra.mxu0 %v2999
    %3978 = vmatpush.bf16.msra.mxu0 %v2998
    %3979 = vmatpush.bf16.msra.mxu0 %v2997
    %3980 = vmatpush.bf16.msra.mxu0 %v2996
    %3981 = vmatpush.bf16.msra.mxu0 %v2995
    %3982 = vmatpush.bf16.msra.mxu0 %v2994
    %3983 = vmatpush.bf16.msra.mxu0 %v2993
    %3984 = vmatpush.bf16.msra.mxu0 %v2992
    %3985 = vmatmul.bf16.gmra.mxu0 %v961
    %v3986 = vpop.f32.mrf.mxu0
    %v3987 = vadd.f32 %v3974, %v3986
    %v3988 = vpop.f32.mrf.mxu0
    %3989 = vdwg.mxu0
    %3990 = vmatpush.bf16.msra.mxu0 %v3007
    %3991 = vmatpush.bf16.msra.mxu0 %v3006
    %3992 = vmatpush.bf16.msra.mxu0 %v3005
    %3993 = vmatpush.bf16.msra.mxu0 %v3004
    %3994 = vmatpush.bf16.msra.mxu0 %v3003
    %3995 = vmatpush.bf16.msra.mxu0 %v3002
    %3996 = vmatpush.bf16.msra.mxu0 %v3001
    %3997 = vmatpush.bf16.msra.mxu0 %v3000
    %3998 = vmatmul.bf16.gmra.mxu0 %v962
    %v3999 = vpop.f32.mrf.mxu0
    %v4000 = vadd.f32 %v3987, %v3999
    %v4001 = vpop.f32.mrf.mxu0
    %4002 = vdwg.mxu0
    %4003 = vmatpush.bf16.msra.mxu0 %v3015
    %4004 = vmatpush.bf16.msra.mxu0 %v3014
    %4005 = vmatpush.bf16.msra.mxu0 %v3013
    %4006 = vmatpush.bf16.msra.mxu0 %v3012
    %4007 = vmatpush.bf16.msra.mxu0 %v3011
    %4008 = vmatpush.bf16.msra.mxu0 %v3010
    %4009 = vmatpush.bf16.msra.mxu0 %v3009
    %4010 = vmatpush.bf16.msra.mxu0 %v3008
    %4011 = vmatmul.bf16.gmra.mxu0 %v963
    %v4012 = vpop.f32.mrf.mxu0
    %v4013 = vadd.f32 %v4000, %v4012
    %v4014 = vpop.f32.mrf.mxu0
    %4015 = vdwg.mxu0
    %4016 = vmatpush.bf16.msra.mxu0 %v3023
    %4017 = vmatpush.bf16.msra.mxu0 %v3022
    %4018 = vmatpush.bf16.msra.mxu0 %v3021
    %4019 = vmatpush.bf16.msra.mxu0 %v3020
    %4020 = vmatpush.bf16.msra.mxu0 %v3019
    %4021 = vmatpush.bf16.msra.mxu0 %v3018
    %4022 = vmatpush.bf16.msra.mxu0 %v3017
    %4023 = vmatpush.bf16.msra.mxu0 %v3016
    %4024 = vmatmul.bf16.gmra.mxu0 %v964
    %v4025 = vpop.f32.mrf.mxu0
    %v4026 = vadd.f32 %v4013, %v4025
    %v4027 = vpop.f32.mrf.mxu0
    %4028 = vdwg.mxu0
    %4029 = vmatpush.bf16.msra.mxu0 %v3031
    %4030 = vmatpush.bf16.msra.mxu0 %v3030
    %4031 = vmatpush.bf16.msra.mxu0 %v3029
    %4032 = vmatpush.bf16.msra.mxu0 %v3028
    %4033 = vmatpush.bf16.msra.mxu0 %v3027
    %4034 = vmatpush.bf16.msra.mxu0 %v3026
    %4035 = vmatpush.bf16.msra.mxu0 %v3025
    %4036 = vmatpush.bf16.msra.mxu0 %v3024
    %4037 = vmatmul.bf16.gmra.mxu0 %v969
    %v4038 = vpop.f32.mrf.mxu0
    %v4039 = vadd.f32 %v4026, %v4038
    %v4040 = vpop.f32.mrf.mxu0
    %4041 = vdwg.mxu0
    %4042 = vmatpush.bf16.msra.mxu0 %v3039
    %4043 = vmatpush.bf16.msra.mxu0 %v3038
    %4044 = vmatpush.bf16.msra.mxu0 %v3037
    %4045 = vmatpush.bf16.msra.mxu0 %v3036
    %4046 = vmatpush.bf16.msra.mxu0 %v3035
    %4047 = vmatpush.bf16.msra.mxu0 %v3034
    %4048 = vmatpush.bf16.msra.mxu0 %v3033
    %4049 = vmatpush.bf16.msra.mxu0 %v3032
    %4050 = vmatmul.bf16.gmra.mxu0 %v970
    %v4051 = vpop.f32.mrf.mxu0
    %v4052 = vadd.f32 %v4039, %v4051
    %v4053 = vpop.f32.mrf.mxu0
    %4054 = vdwg.mxu0
    %4055 = vmatpush.bf16.msra.mxu0 %v3047
    %4056 = vmatpush.bf16.msra.mxu0 %v3046
    %4057 = vmatpush.bf16.msra.mxu0 %v3045
    %4058 = vmatpush.bf16.msra.mxu0 %v3044
    %4059 = vmatpush.bf16.msra.mxu0 %v3043
    %4060 = vmatpush.bf16.msra.mxu0 %v3042
    %4061 = vmatpush.bf16.msra.mxu0 %v3041
    %4062 = vmatpush.bf16.msra.mxu0 %v3040
    %4063 = vmatmul.bf16.gmra.mxu0 %v971
    %v4064 = vpop.f32.mrf.mxu0
    %v4065 = vadd.f32 %v4052, %v4064
    %v4066 = vpop.f32.mrf.mxu0
    %4067 = vdwg.mxu0
    %4068 = vmatpush.bf16.msra.mxu0 %v3055
    %4069 = vmatpush.bf16.msra.mxu0 %v3054
    %4070 = vmatpush.bf16.msra.mxu0 %v3053
    %4071 = vmatpush.bf16.msra.mxu0 %v3052
    %4072 = vmatpush.bf16.msra.mxu0 %v3051
    %4073 = vmatpush.bf16.msra.mxu0 %v3050
    %4074 = vmatpush.bf16.msra.mxu0 %v3049
    %4075 = vmatpush.bf16.msra.mxu0 %v3048
    %4076 = vmatmul.bf16.gmra.mxu0 %v972
    %v4077 = vpop.f32.mrf.mxu0
    %v4078 = vadd.f32 %v4065, %v4077
    %v4079 = vpop.f32.mrf.mxu0
    %4080 = vdwg.mxu0
    %4081 = vmatpush.bf16.msra.mxu0 %v3063
    %4082 = vmatpush.bf16.msra.mxu0 %v3062
    %4083 = vmatpush.bf16.msra.mxu0 %v3061
    %4084 = vmatpush.bf16.msra.mxu0 %v3060
    %4085 = vmatpush.bf16.msra.mxu0 %v3059
    %4086 = vmatpush.bf16.msra.mxu0 %v3058
    %4087 = vmatpush.bf16.msra.mxu0 %v3057
    %4088 = vmatpush.bf16.msra.mxu0 %v3056
    %4089 = vmatmul.bf16.gmra.mxu0 %v973
    %v4090 = vpop.f32.mrf.mxu0
    %v4091 = vadd.f32 %v4078, %v4090
    %v4092 = vpop.f32.mrf.mxu0
    %4093 = vdwg.mxu0
    %4094 = vmatpush.bf16.msra.mxu0 %v3071
    %4095 = vmatpush.bf16.msra.mxu0 %v3070
    %4096 = vmatpush.bf16.msra.mxu0 %v3069
    %4097 = vmatpush.bf16.msra.mxu0 %v3068
    %4098 = vmatpush.bf16.msra.mxu0 %v3067
    %4099 = vmatpush.bf16.msra.mxu0 %v3066
    %4100 = vmatpush.bf16.msra.mxu0 %v3065
    %4101 = vmatpush.bf16.msra.mxu0 %v3064
    %4102 = vmatmul.bf16.gmra.mxu0 %v974
    %v4103 = vpop.f32.mrf.mxu0
    %v4104 = vadd.f32 %v4091, %v4103
    %v4105 = vpop.f32.mrf.mxu0
    %4106 = vdwg.mxu0
    %4107 = vmatpush.bf16.msra.mxu0 %v3079
    %4108 = vmatpush.bf16.msra.mxu0 %v3078
    %4109 = vmatpush.bf16.msra.mxu0 %v3077
    %4110 = vmatpush.bf16.msra.mxu0 %v3076
    %4111 = vmatpush.bf16.msra.mxu0 %v3075
    %4112 = vmatpush.bf16.msra.mxu0 %v3074
    %4113 = vmatpush.bf16.msra.mxu0 %v3073
    %4114 = vmatpush.bf16.msra.mxu0 %v3072
    %4115 = vmatmul.bf16.gmra.mxu0 %v975
    %v4116 = vpop.f32.mrf.mxu0
    %v4117 = vadd.f32 %v4104, %v4116
    %v4118 = vpop.f32.mrf.mxu0
    %4119 = vdwg.mxu0
    %4120 = vmatpush.bf16.msra.mxu0 %v3087
    %4121 = vmatpush.bf16.msra.mxu0 %v3086
    %4122 = vmatpush.bf16.msra.mxu0 %v3085
    %4123 = vmatpush.bf16.msra.mxu0 %v3084
    %4124 = vmatpush.bf16.msra.mxu0 %v3083
    %4125 = vmatpush.bf16.msra.mxu0 %v3082
    %4126 = vmatpush.bf16.msra.mxu0 %v3081
    %4127 = vmatpush.bf16.msra.mxu0 %v3080
    %4128 = vmatmul.bf16.gmra.mxu0 %v976
    %v4129 = vpop.f32.mrf.mxu0
    %v4130 = vadd.f32 %v4117, %v4129
    %v4131 = vpop.f32.mrf.mxu0
    %4132 = vdwg.mxu0
    %4133 = vmatpush.bf16.msra.mxu0 %v3095
    %4134 = vmatpush.bf16.msra.mxu0 %v3094
    %4135 = vmatpush.bf16.msra.mxu0 %v3093
    %4136 = vmatpush.bf16.msra.mxu0 %v3092
    %4137 = vmatpush.bf16.msra.mxu0 %v3091
    %4138 = vmatpush.bf16.msra.mxu0 %v3090
    %4139 = vmatpush.bf16.msra.mxu0 %v3089
    %4140 = vmatpush.bf16.msra.mxu0 %v3088
    %4141 = vmatmul.bf16.gmra.mxu0 %v981
    %v4142 = vpop.f32.mrf.mxu0
    %v4143 = vadd.f32 %v4130, %v4142
    %v4144 = vpop.f32.mrf.mxu0
    %4145 = vdwg.mxu0
    %4146 = vmatpush.bf16.msra.mxu0 %v3103
    %4147 = vmatpush.bf16.msra.mxu0 %v3102
    %4148 = vmatpush.bf16.msra.mxu0 %v3101
    %4149 = vmatpush.bf16.msra.mxu0 %v3100
    %4150 = vmatpush.bf16.msra.mxu0 %v3099
    %4151 = vmatpush.bf16.msra.mxu0 %v3098
    %4152 = vmatpush.bf16.msra.mxu0 %v3097
    %4153 = vmatpush.bf16.msra.mxu0 %v3096
    %4154 = vmatmul.bf16.gmra.mxu0 %v982
    %v4155 = vpop.f32.mrf.mxu0
    %v4156 = vadd.f32 %v4143, %v4155
    %v4157 = vpop.f32.mrf.mxu0
    %4158 = vdwg.mxu0
    %4159 = vmatpush.bf16.msra.mxu0 %v3111
    %4160 = vmatpush.bf16.msra.mxu0 %v3110
    %4161 = vmatpush.bf16.msra.mxu0 %v3109
    %4162 = vmatpush.bf16.msra.mxu0 %v3108
    %4163 = vmatpush.bf16.msra.mxu0 %v3107
    %4164 = vmatpush.bf16.msra.mxu0 %v3106
    %4165 = vmatpush.bf16.msra.mxu0 %v3105
    %4166 = vmatpush.bf16.msra.mxu0 %v3104
    %4167 = vmatmul.bf16.gmra.mxu0 %v983
    %v4168 = vpop.f32.mrf.mxu0
    %v4169 = vadd.f32 %v4156, %v4168
    %v4170 = vpop.f32.mrf.mxu0
    %4171 = vdwg.mxu0
    %4172 = vmatpush.bf16.msra.mxu0 %v3119
    %4173 = vmatpush.bf16.msra.mxu0 %v3118
    %4174 = vmatpush.bf16.msra.mxu0 %v3117
    %4175 = vmatpush.bf16.msra.mxu0 %v3116
    %4176 = vmatpush.bf16.msra.mxu0 %v3115
    %4177 = vmatpush.bf16.msra.mxu0 %v3114
    %4178 = vmatpush.bf16.msra.mxu0 %v3113
    %4179 = vmatpush.bf16.msra.mxu0 %v3112
    %4180 = vmatmul.bf16.gmra.mxu0 %v984
    %v4181 = vpop.f32.mrf.mxu0
    %v4182 = vadd.f32 %v4169, %v4181
    %v4183 = vpop.f32.mrf.mxu0
    %4184 = vdwg.mxu0
    %4185 = vmatpush.bf16.msra.mxu0 %v3127
    %4186 = vmatpush.bf16.msra.mxu0 %v3126
    %4187 = vmatpush.bf16.msra.mxu0 %v3125
    %4188 = vmatpush.bf16.msra.mxu0 %v3124
    %4189 = vmatpush.bf16.msra.mxu0 %v3123
    %4190 = vmatpush.bf16.msra.mxu0 %v3122
    %4191 = vmatpush.bf16.msra.mxu0 %v3121
    %4192 = vmatpush.bf16.msra.mxu0 %v3120
    %4193 = vmatmul.bf16.gmra.mxu0 %v985
    %v4194 = vpop.f32.mrf.mxu0
    %v4195 = vadd.f32 %v4182, %v4194
    %v4196 = vpop.f32.mrf.mxu0
    %4197 = vdwg.mxu0
    %4198 = vmatpush.bf16.msra.mxu0 %v3135
    %4199 = vmatpush.bf16.msra.mxu0 %v3134
    %4200 = vmatpush.bf16.msra.mxu0 %v3133
    %4201 = vmatpush.bf16.msra.mxu0 %v3132
    %4202 = vmatpush.bf16.msra.mxu0 %v3131
    %4203 = vmatpush.bf16.msra.mxu0 %v3130
    %4204 = vmatpush.bf16.msra.mxu0 %v3129
    %4205 = vmatpush.bf16.msra.mxu0 %v3128
    %4206 = vmatmul.bf16.gmra.mxu0 %v986
    %v4207 = vpop.f32.mrf.mxu0
    %v4208 = vadd.f32 %v4195, %v4207
    %v4209 = vpop.f32.mrf.mxu0
    %4210 = vdwg.mxu0
    %4211 = vmatpush.bf16.msra.mxu0 %v3143
    %4212 = vmatpush.bf16.msra.mxu0 %v3142
    %4213 = vmatpush.bf16.msra.mxu0 %v3141
    %4214 = vmatpush.bf16.msra.mxu0 %v3140
    %4215 = vmatpush.bf16.msra.mxu0 %v3139
    %4216 = vmatpush.bf16.msra.mxu0 %v3138
    %4217 = vmatpush.bf16.msra.mxu0 %v3137
    %4218 = vmatpush.bf16.msra.mxu0 %v3136
    %4219 = vmatmul.bf16.gmra.mxu0 %v987
    %v4220 = vpop.f32.mrf.mxu0
    %v4221 = vadd.f32 %v4208, %v4220
    %v4222 = vpop.f32.mrf.mxu0
    %4223 = vdwg.mxu0
    %4224 = vmatpush.bf16.msra.mxu0 %v3151
    %4225 = vmatpush.bf16.msra.mxu0 %v3150
    %4226 = vmatpush.bf16.msra.mxu0 %v3149
    %4227 = vmatpush.bf16.msra.mxu0 %v3148
    %4228 = vmatpush.bf16.msra.mxu0 %v3147
    %4229 = vmatpush.bf16.msra.mxu0 %v3146
    %4230 = vmatpush.bf16.msra.mxu0 %v3145
    %4231 = vmatpush.bf16.msra.mxu0 %v3144
    %4232 = vmatmul.bf16.gmra.mxu0 %v988
    %v4233 = vpop.f32.mrf.mxu0
    %v4234 = vadd.f32 %v4221, %v4233
    %v4235 = vpop.f32.mrf.mxu0
    %4236 = vdwg.mxu0
    %4237 = vmatpush.bf16.msra.mxu0 %v3159
    %4238 = vmatpush.bf16.msra.mxu0 %v3158
    %4239 = vmatpush.bf16.msra.mxu0 %v3157
    %4240 = vmatpush.bf16.msra.mxu0 %v3156
    %4241 = vmatpush.bf16.msra.mxu0 %v3155
    %4242 = vmatpush.bf16.msra.mxu0 %v3154
    %4243 = vmatpush.bf16.msra.mxu0 %v3153
    %4244 = vmatpush.bf16.msra.mxu0 %v3152
    %4245 = vmatmul.bf16.gmra.mxu0 %v993
    %v4246 = vpop.f32.mrf.mxu0
    %v4247 = vadd.f32 %v4234, %v4246
    %v4248 = vpop.f32.mrf.mxu0
    %4249 = vdwg.mxu0
    %4250 = vmatpush.bf16.msra.mxu0 %v3167
    %4251 = vmatpush.bf16.msra.mxu0 %v3166
    %4252 = vmatpush.bf16.msra.mxu0 %v3165
    %4253 = vmatpush.bf16.msra.mxu0 %v3164
    %4254 = vmatpush.bf16.msra.mxu0 %v3163
    %4255 = vmatpush.bf16.msra.mxu0 %v3162
    %4256 = vmatpush.bf16.msra.mxu0 %v3161
    %4257 = vmatpush.bf16.msra.mxu0 %v3160
    %4258 = vmatmul.bf16.gmra.mxu0 %v994
    %v4259 = vpop.f32.mrf.mxu0
    %v4260 = vadd.f32 %v4247, %v4259
    %v4261 = vpop.f32.mrf.mxu0
    %4262 = vdwg.mxu0
    %4263 = vmatpush.bf16.msra.mxu0 %v3175
    %4264 = vmatpush.bf16.msra.mxu0 %v3174
    %4265 = vmatpush.bf16.msra.mxu0 %v3173
    %4266 = vmatpush.bf16.msra.mxu0 %v3172
    %4267 = vmatpush.bf16.msra.mxu0 %v3171
    %4268 = vmatpush.bf16.msra.mxu0 %v3170
    %4269 = vmatpush.bf16.msra.mxu0 %v3169
    %4270 = vmatpush.bf16.msra.mxu0 %v3168
    %4271 = vmatmul.bf16.gmra.mxu0 %v995
    %v4272 = vpop.f32.mrf.mxu0
    %v4273 = vadd.f32 %v4260, %v4272
    %v4274 = vpop.f32.mrf.mxu0
    %4275 = vdwg.mxu0
    %4276 = vmatpush.bf16.msra.mxu0 %v3183
    %4277 = vmatpush.bf16.msra.mxu0 %v3182
    %4278 = vmatpush.bf16.msra.mxu0 %v3181
    %4279 = vmatpush.bf16.msra.mxu0 %v3180
    %4280 = vmatpush.bf16.msra.mxu0 %v3179
    %4281 = vmatpush.bf16.msra.mxu0 %v3178
    %4282 = vmatpush.bf16.msra.mxu0 %v3177
    %4283 = vmatpush.bf16.msra.mxu0 %v3176
    %4284 = vmatmul.bf16.gmra.mxu0 %v996
    %v4285 = vpop.f32.mrf.mxu0
    %v4286 = vadd.f32 %v4273, %v4285
    %v4287 = vpop.f32.mrf.mxu0
    %4288 = vdwg.mxu0
    %4289 = vmatpush.bf16.msra.mxu0 %v3191
    %4290 = vmatpush.bf16.msra.mxu0 %v3190
    %4291 = vmatpush.bf16.msra.mxu0 %v3189
    %4292 = vmatpush.bf16.msra.mxu0 %v3188
    %4293 = vmatpush.bf16.msra.mxu0 %v3187
    %4294 = vmatpush.bf16.msra.mxu0 %v3186
    %4295 = vmatpush.bf16.msra.mxu0 %v3185
    %4296 = vmatpush.bf16.msra.mxu0 %v3184
    %4297 = vmatmul.bf16.gmra.mxu0 %v997
    %v4298 = vpop.f32.mrf.mxu0
    %v4299 = vadd.f32 %v4286, %v4298
    %v4300 = vpop.f32.mrf.mxu0
    %4301 = vdwg.mxu0
    %4302 = vmatpush.bf16.msra.mxu0 %v3199
    %4303 = vmatpush.bf16.msra.mxu0 %v3198
    %4304 = vmatpush.bf16.msra.mxu0 %v3197
    %4305 = vmatpush.bf16.msra.mxu0 %v3196
    %4306 = vmatpush.bf16.msra.mxu0 %v3195
    %4307 = vmatpush.bf16.msra.mxu0 %v3194
    %4308 = vmatpush.bf16.msra.mxu0 %v3193
    %4309 = vmatpush.bf16.msra.mxu0 %v3192
    %4310 = vmatmul.bf16.gmra.mxu0 %v998
    %v4311 = vpop.f32.mrf.mxu0
    %v4312 = vadd.f32 %v4299, %v4311
    %v4313 = vpop.f32.mrf.mxu0
    %4314 = vdwg.mxu0
    %4315 = vmatpush.bf16.msra.mxu0 %v3207
    %4316 = vmatpush.bf16.msra.mxu0 %v3206
    %4317 = vmatpush.bf16.msra.mxu0 %v3205
    %4318 = vmatpush.bf16.msra.mxu0 %v3204
    %4319 = vmatpush.bf16.msra.mxu0 %v3203
    %4320 = vmatpush.bf16.msra.mxu0 %v3202
    %4321 = vmatpush.bf16.msra.mxu0 %v3201
    %4322 = vmatpush.bf16.msra.mxu0 %v3200
    %4323 = vmatmul.bf16.gmra.mxu0 %v999
    %v4324 = vpop.f32.mrf.mxu0
    %v4325 = vadd.f32 %v4312, %v4324
    %v4326 = vpop.f32.mrf.mxu0
    %4327 = vdwg.mxu0
    %4328 = vmatpush.bf16.msra.mxu0 %v3215
    %4329 = vmatpush.bf16.msra.mxu0 %v3214
    %4330 = vmatpush.bf16.msra.mxu0 %v3213
    %4331 = vmatpush.bf16.msra.mxu0 %v3212
    %4332 = vmatpush.bf16.msra.mxu0 %v3211
    %4333 = vmatpush.bf16.msra.mxu0 %v3210
    %4334 = vmatpush.bf16.msra.mxu0 %v3209
    %4335 = vmatpush.bf16.msra.mxu0 %v3208
    %4336 = vmatmul.bf16.gmra.mxu0 %v1000
    %v4337 = vpop.f32.mrf.mxu0
    %v4338 = vadd.f32 %v4325, %v4337
    %v4339 = vpop.f32.mrf.mxu0
    %4340 = vdwg.mxu0
    %4341 = vmatpush.bf16.msra.mxu0 %v3223
    %4342 = vmatpush.bf16.msra.mxu0 %v3222
    %4343 = vmatpush.bf16.msra.mxu0 %v3221
    %4344 = vmatpush.bf16.msra.mxu0 %v3220
    %4345 = vmatpush.bf16.msra.mxu0 %v3219
    %4346 = vmatpush.bf16.msra.mxu0 %v3218
    %4347 = vmatpush.bf16.msra.mxu0 %v3217
    %4348 = vmatpush.bf16.msra.mxu0 %v3216
    %4349 = vmatmul.bf16.gmra.mxu0 %v1005
    %v4350 = vpop.f32.mrf.mxu0
    %v4351 = vadd.f32 %v4338, %v4350
    %v4352 = vpop.f32.mrf.mxu0
    %4353 = vdwg.mxu0
    %4354 = vmatpush.bf16.msra.mxu0 %v3231
    %4355 = vmatpush.bf16.msra.mxu0 %v3230
    %4356 = vmatpush.bf16.msra.mxu0 %v3229
    %4357 = vmatpush.bf16.msra.mxu0 %v3228
    %4358 = vmatpush.bf16.msra.mxu0 %v3227
    %4359 = vmatpush.bf16.msra.mxu0 %v3226
    %4360 = vmatpush.bf16.msra.mxu0 %v3225
    %4361 = vmatpush.bf16.msra.mxu0 %v3224
    %4362 = vmatmul.bf16.gmra.mxu0 %v1006
    %v4363 = vpop.f32.mrf.mxu0
    %v4364 = vadd.f32 %v4351, %v4363
    %v4365 = vpop.f32.mrf.mxu0
    %4366 = vdwg.mxu0
    %4367 = vmatpush.bf16.msra.mxu0 %v3239
    %4368 = vmatpush.bf16.msra.mxu0 %v3238
    %4369 = vmatpush.bf16.msra.mxu0 %v3237
    %4370 = vmatpush.bf16.msra.mxu0 %v3236
    %4371 = vmatpush.bf16.msra.mxu0 %v3235
    %4372 = vmatpush.bf16.msra.mxu0 %v3234
    %4373 = vmatpush.bf16.msra.mxu0 %v3233
    %4374 = vmatpush.bf16.msra.mxu0 %v3232
    %4375 = vmatmul.bf16.gmra.mxu0 %v1007
    %v4376 = vpop.f32.mrf.mxu0
    %v4377 = vadd.f32 %v4364, %v4376
    %v4378 = vpop.f32.mrf.mxu0
    %4379 = vdwg.mxu0
    %4380 = vmatpush.bf16.msra.mxu0 %v3247
    %4381 = vmatpush.bf16.msra.mxu0 %v3246
    %4382 = vmatpush.bf16.msra.mxu0 %v3245
    %4383 = vmatpush.bf16.msra.mxu0 %v3244
    %4384 = vmatpush.bf16.msra.mxu0 %v3243
    %4385 = vmatpush.bf16.msra.mxu0 %v3242
    %4386 = vmatpush.bf16.msra.mxu0 %v3241
    %4387 = vmatpush.bf16.msra.mxu0 %v3240
    %4388 = vmatmul.bf16.gmra.mxu0 %v1008
    %v4389 = vpop.f32.mrf.mxu0
    %v4390 = vadd.f32 %v4377, %v4389
    %v4391 = vpop.f32.mrf.mxu0
    %4392 = vdwg.mxu0
    %4393 = vmatpush.bf16.msra.mxu0 %v3255
    %4394 = vmatpush.bf16.msra.mxu0 %v3254
    %4395 = vmatpush.bf16.msra.mxu0 %v3253
    %4396 = vmatpush.bf16.msra.mxu0 %v3252
    %4397 = vmatpush.bf16.msra.mxu0 %v3251
    %4398 = vmatpush.bf16.msra.mxu0 %v3250
    %4399 = vmatpush.bf16.msra.mxu0 %v3249
    %4400 = vmatpush.bf16.msra.mxu0 %v3248
    %4401 = vmatmul.bf16.gmra.mxu0 %v1009
    %v4402 = vpop.f32.mrf.mxu0
    %v4403 = vadd.f32 %v4390, %v4402
    %v4404 = vpop.f32.mrf.mxu0
    %4405 = vdwg.mxu0
    %4406 = vmatpush.bf16.msra.mxu0 %v3263
    %4407 = vmatpush.bf16.msra.mxu0 %v3262
    %4408 = vmatpush.bf16.msra.mxu0 %v3261
    %4409 = vmatpush.bf16.msra.mxu0 %v3260
    %4410 = vmatpush.bf16.msra.mxu0 %v3259
    %4411 = vmatpush.bf16.msra.mxu0 %v3258
    %4412 = vmatpush.bf16.msra.mxu0 %v3257
    %4413 = vmatpush.bf16.msra.mxu0 %v3256
    %4414 = vmatmul.bf16.gmra.mxu0 %v1010
    %v4415 = vpop.f32.mrf.mxu0
    %v4416 = vadd.f32 %v4403, %v4415
    %v4417 = vpop.f32.mrf.mxu0
    %4418 = vdwg.mxu0
    %4419 = vmatpush.bf16.msra.mxu0 %v3271
    %4420 = vmatpush.bf16.msra.mxu0 %v3270
    %4421 = vmatpush.bf16.msra.mxu0 %v3269
    %4422 = vmatpush.bf16.msra.mxu0 %v3268
    %4423 = vmatpush.bf16.msra.mxu0 %v3267
    %4424 = vmatpush.bf16.msra.mxu0 %v3266
    %4425 = vmatpush.bf16.msra.mxu0 %v3265
    %4426 = vmatpush.bf16.msra.mxu0 %v3264
    %4427 = vmatmul.bf16.gmra.mxu0 %v1011
    %v4428 = vpop.f32.mrf.mxu0
    %v4429 = vadd.f32 %v4416, %v4428
    %v4430 = vpop.f32.mrf.mxu0
    %4431 = vdwg.mxu0
    %4432 = vmatpush.bf16.msra.mxu0 0
    %4433 = vmatpush.bf16.msra.mxu0 0
    %4434 = vmatpush.bf16.msra.mxu0 0
    %4435 = vmatpush.bf16.msra.mxu0 0
    %4436 = vmatpush.bf16.msra.mxu0 0
    %4437 = vmatpush.bf16.msra.mxu0 0
    %4438 = vmatpush.bf16.msra.mxu0 0
    %4439 = vmatpush.bf16.msra.mxu0 %v3272
    %4440 = vmatmul.bf16.gmra.mxu0 %v3715
    %v4441 = vpop.f32.mrf.mxu0
    %v4442 = vadd.f32 %v4429, %v4441
    %v4443 = vpop.f32.mrf.mxu0
    %4444 = vdwg.mxu0
    %v4445 = vmax.f32 %v4442, 0.0
    %v4446 = vld [vmem:[%s3] sm:$0xf]
    %v4447 = vmul.f32 %v4445, 0.5
    %v4448 = vmul.f32 %v4447, 1.442695
    %v4449 = vpow.pop %v4448
    %4451 = vrot.lane.b32.xlu0 %v4449, 112
    %v4452 = vpop.permute.xlu0 %4451
    %v4454 = vmul.f32 %v4446, %v4452
    %v4455 = vadd.f32 %v4445, %v4454
    %v4456 = vpack.c.bf16 %v4455, %v4455
    %v4457 = vld [vmem:[%s4] sm:$0xff]
    %v4458 = vld [vmem:[%s4 + $0x8] sm:$0xff]
    %v4459 = vld [vmem:[%s4 + $0x10] sm:$0xff]
    %v4460 = vld [vmem:[%s4 + $0x18] sm:$0xff]
    %v4461 = vld [vmem:[%s4 + $0x20] sm:$0xff]
    %v4462 = vld [vmem:[%s4 + $0x28] sm:$0xff]
    %v4463 = vld [vmem:[%s4 + $0x30] sm:$0xff]
    %v4464 = vld [vmem:[%s4 + $0x38] sm:$0xff]
    %v4465 = vld [vmem:[%s4 + $0x40] sm:$0xff]
    %v4466 = vld [vmem:[%s4 + $0x48] sm:$0xff]
    %v4467 = vld [vmem:[%s4 + $0x50] sm:$0xff]
    %v4468 = vld [vmem:[%s4 + $0x58] sm:$0xff]
    %v4469 = vld [vmem:[%s4 + $0x60] sm:$0xff]
    %v4470 = vld [vmem:[%s4 + $0x68] sm:$0xff]
    %v4471 = vld [vmem:[%s4 + $0x70] sm:$0xff]
    %v4472 = vld [vmem:[%s4 + $0x78] sm:$0xff]
    %v4473 = vld [vmem:[%s4 + $0x80] sm:$0xff]
    %v4474 = vld [vmem:[%s4 + $0x88] sm:$0xff]
    %v4475 = vld [vmem:[%s4 + $0x90] sm:$0xff]
    %v4476 = vld [vmem:[%s4 + $0x98] sm:$0xff]
    %v4477 = vld [vmem:[%s4 + $0xa0] sm:$0xff]
    %v4478 = vld [vmem:[%s4 + $0xa8] sm:$0xff]
    %v4479 = vld [vmem:[%s4 + $0xb0] sm:$0xff]
    %v4480 = vld [vmem:[%s4 + $0xb8] sm:$0xff]
    %v4481 = vld [vmem:[%s4 + $0xc0] sm:$0xff]
    %v4482 = vld [vmem:[%s4 + $0xc8] sm:$0xff]
    %v4483 = vld [vmem:[%s4 + $0xd0] sm:$0xff]
    %v4484 = vld [vmem:[%s4 + $0xd8] sm:$0xff]
    %v4485 = vld [vmem:[%s4 + $0xe0] sm:$0xff]
    %v4486 = vld [vmem:[%s4 + $0xe8] sm:$0xff]
    %v4487 = vld [vmem:[%s4 + $0xf0] sm:$0xff]
    %v4488 = vld [vmem:[%s4 + $0xf8] sm:$0xff]
    %v4489 = vld [vmem:[%s4 + $0x100] sm:$0xff]
    %v4490 = vld [vmem:[%s4 + $0x108] sm:$0xff]
    %v4491 = vld [vmem:[%s4 + $0x110] sm:$0xff]
    %v4492 = vld [vmem:[%s4 + $0x118] sm:$0xff]
    %v4493 = vld [vmem:[%s4 + $0x120] sm:$0xff]
    %v4494 = vld [vmem:[%s4 + $0x128] sm:$0xff]
    %v4495 = vld [vmem:[%s4 + $0x130] sm:$0xff]
    %v4496 = vld [vmem:[%s4 + $0x138] sm:$0xff]
    %v4497 = vld [vmem:[%s4 + $0x140] sm:$0xff]
    %v4498 = vld [vmem:[%s4 + $0x148] sm:$0xff]
    %v4499 = vld [vmem:[%s4 + $0x150] sm:$0xff]
    %v4500 = vld [vmem:[%s4 + $0x158] sm:$0xff]
    %v4501 = vld [vmem:[%s4 + $0x160] sm:$0xff]
    %v4502 = vld [vmem:[%s4 + $0x168] sm:$0xff]
    %v4503 = vld [vmem:[%s4 + $0x170] sm:$0xff]
    %v4504 = vld [vmem:[%s4 + $0x178] sm:$0xff]
    %v4505 = vld [vmem:[%s4 + $0x180] sm:$0xff]
    %v4506 = vld [vmem:[%s4 + $0x188] sm:$0xff]
    %v4507 = vld [vmem:[%s4 + $0x190] sm:$0xff]
    %v4508 = vld [vmem:[%s4 + $0x198] sm:$0xff]
    %v4509 = vld [vmem:[%s4 + $0x1a0] sm:$0xff]
    %v4510 = vld [vmem:[%s4 + $0x1a8] sm:$0xff]
    %v4511 = vld [vmem:[%s4 + $0x1b0] sm:$0xff]
    %v4512 = vld [vmem:[%s4 + $0x1b8] sm:$0xff]
    %v4513 = vld [vmem:[%s5] sm:$0xff]
    %v4514 = vld [vmem:[%s5 + $0x8] sm:$0xff]
    %v4515 = vld [vmem:[%s5 + $0x10] sm:$0xff]
    %v4516 = vld [vmem:[%s5 + $0x18] sm:$0xff]
    %v4517 = vld [vmem:[%s5 + $0x20] sm:$0xff]
    %v4518 = vld [vmem:[%s5 + $0x28] sm:$0xff]
    %v4519 = vld [vmem:[%s5 + $0x30] sm:$0xff]
    %v4527 = vperm.slane %v4513, 0
    %v4528 = vperm.slane %v4513, 1
    %v4529 = vperm.slane %v4513, 2
    %v4530 = vperm.slane %v4513, 3
    %v4531 = vperm.slane %v4513, 4
    %v4532 = vperm.slane %v4513, 5
    %v4533 = vperm.slane %v4513, 6
    %v4534 = vperm.slane %v4513, 7
    %v4535 = vperm.slane %v4514, 0
    %v4536 = vperm.slane %v4514, 1
    %v4537 = vperm.slane %v4514, 2
    %v4538 = vperm.slane %v4514, 3
    %v4539 = vperm.slane %v4514, 4
    %v4540 = vperm.slane %v4514, 5
    %v4541 = vperm.slane %v4514, 6
    %v4542 = vperm.slane %v4514, 7
    %v4543 = vperm.slane %v4515, 0
    %v4544 = vperm.slane %v4515, 1
    %v4545 = vperm.slane %v4515, 2
    %v4546 = vperm.slane %v4515, 3
    %v4547 = vperm.slane %v4515, 4
    %v4548 = vperm.slane %v4515, 5
    %v4549 = vperm.slane %v4515, 6
    %v4550 = vperm.slane %v4515, 7
    %v4551 = vperm.slane %v4516, 0
    %v4552 = vperm.slane %v4516, 1
    %v4553 = vperm.slane %v4516, 2
    %v4554 = vperm.slane %v4516, 3
    %v4555 = vperm.slane %v4516, 4
    %v4556 = vperm.slane %v4516, 5
    %v4557 = vperm.slane %v4516, 6
    %v4558 = vperm.slane %v4516, 7
    %v4559 = vperm.slane %v4517, 0
    %v4560 = vperm.slane %v4517, 1
    %v4561 = vperm.slane %v4517, 2
    %v4562 = vperm.slane %v4517, 3
    %v4563 = vperm.slane %v4517, 4
    %v4564 = vperm.slane %v4517, 5
    %v4565 = vperm.slane %v4517, 6
    %v4566 = vperm.slane %v4517, 7
    %v4567 = vperm.slane %v4518, 0
    %v4568 = vperm.slane %v4518, 1
    %v4569 = vperm.slane %v4518, 2
    %v4570 = vperm.slane %v4518, 3
    %v4571 = vperm.slane %v4518, 4
    %v4572 = vperm.slane %v4518, 5
    %v4573 = vperm.slane %v4518, 6
    %v4574 = vperm.slane %v4518, 7
    %v4575 = vperm.slane %v4519, 0
    %v4576 = vperm.slane %v4519, 1
    %v4577 = vperm.slane %v4519, 2
    %v4578 = vperm.slane %v4519, 3
    %v4579 = vperm.slane %v4519, 4
    %v4580 = vperm.slane %v4519, 5
    %v4581 = vperm.slane %v4519, 6
    %v4582 = vperm.slane %v4519, 7
    %v4695 = vunpack.c.l.b16 %v4457
    %v4696 = vunpack.c.h.b16 %v4457
    %v4697 = vunpack.c.l.b16 %v4458
    %v4698 = vunpack.c.h.b16 %v4458
    %v4699 = vunpack.c.l.b16 %v4459
    %v4700 = vunpack.c.h.b16 %v4459
    %v4701 = vunpack.c.l.b16 %v4460
    %v4702 = vunpack.c.h.b16 %v4460
    %v4703 = vunpack.c.l.b16 %v4461
    %v4704 = vunpack.c.h.b16 %v4461
    %v4705 = vunpack.c.l.b16 %v4462
    %v4706 = vunpack.c.h.b16 %v4462
    %v4707 = vunpack.c.l.b16 %v4463
    %v4708 = vunpack.c.h.b16 %v4463
    %v4709 = vunpack.c.l.b16 %v4464
    %v4710 = vunpack.c.h.b16 %v4464
    %v4711 = vunpack.c.l.b16 %v4465
    %v4712 = vunpack.c.h.b16 %v4465
    %v4713 = vunpack.c.l.b16 %v4466
    %v4714 = vunpack.c.h.b16 %v4466
    %v4715 = vunpack.c.l.b16 %v4467
    %v4716 = vunpack.c.h.b16 %v4467
    %v4717 = vunpack.c.l.b16 %v4468
    %v4718 = vunpack.c.h.b16 %v4468
    %v4719 = vunpack.c.l.b16 %v4469
    %v4720 = vunpack.c.h.b16 %v4469
    %v4721 = vunpack.c.l.b16 %v4470
    %v4722 = vunpack.c.h.b16 %v4470
    %v4723 = vunpack.c.l.b16 %v4471
    %v4724 = vunpack.c.h.b16 %v4471
    %v4725 = vunpack.c.l.b16 %v4472
    %v4726 = vunpack.c.h.b16 %v4472
    %v4727 = vunpack.c.l.b16 %v4473
    %v4728 = vunpack.c.h.b16 %v4473
    %v4729 = vunpack.c.l.b16 %v4474
    %v4730 = vunpack.c.h.b16 %v4474
    %v4731 = vunpack.c.l.b16 %v4475
    %v4732 = vunpack.c.h.b16 %v4475
    %v4733 = vunpack.c.l.b16 %v4476
    %v4734 = vunpack.c.h.b16 %v4476
    %v4735 = vunpack.c.l.b16 %v4477
    %v4736 = vunpack.c.h.b16 %v4477
    %v4737 = vunpack.c.l.b16 %v4478
    %v4738 = vunpack.c.h.b16 %v4478
    %v4739 = vunpack.c.l.b16 %v4479
    %v4740 = vunpack.c.h.b16 %v4479
    %v4741 = vunpack.c.l.b16 %v4480
    %v4742 = vunpack.c.h.b16 %v4480
    %v4743 = vunpack.c.l.b16 %v4481
    %v4744 = vunpack.c.h.b16 %v4481
    %v4745 = vunpack.c.l.b16 %v4482
    %v4746 = vunpack.c.h.b16 %v4482
    %v4747 = vunpack.c.l.b16 %v4483
    %v4748 = vunpack.c.h.b16 %v4483
    %v4749 = vunpack.c.l.b16 %v4484
    %v4750 = vunpack.c.h.b16 %v4484
    %v4751 = vunpack.c.l.b16 %v4485
    %v4752 = vunpack.c.h.b16 %v4485
    %v4753 = vunpack.c.l.b16 %v4486
    %v4754 = vunpack.c.h.b16 %v4486
    %v4755 = vunpack.c.l.b16 %v4487
    %v4756 = vunpack.c.h.b16 %v4487
    %v4757 = vunpack.c.l.b16 %v4488
    %v4758 = vunpack.c.h.b16 %v4488
    %v4759 = vunpack.c.l.b16 %v4489
    %v4760 = vunpack.c.h.b16 %v4489
    %v4761 = vunpack.c.l.b16 %v4490
    %v4762 = vunpack.c.h.b16 %v4490
    %v4763 = vunpack.c.l.b16 %v4491
    %v4764 = vunpack.c.h.b16 %v4491
    %v4765 = vunpack.c.l.b16 %v4492
    %v4766 = vunpack.c.h.b16 %v4492
    %v4767 = vunpack.c.l.b16 %v4493
    %v4768 = vunpack.c.h.b16 %v4493
    %v4769 = vunpack.c.l.b16 %v4494
    %v4770 = vunpack.c.h.b16 %v4494
    %v4771 = vunpack.c.l.b16 %v4495
    %v4772 = vunpack.c.h.b16 %v4495
    %v4773 = vunpack.c.l.b16 %v4496
    %v4774 = vunpack.c.h.b16 %v4496
    %v4775 = vunpack.c.l.b16 %v4497
    %v4776 = vunpack.c.h.b16 %v4497
    %v4777 = vunpack.c.l.b16 %v4498
    %v4778 = vunpack.c.h.b16 %v4498
    %v4779 = vunpack.c.l.b16 %v4499
    %v4780 = vunpack.c.h.b16 %v4499
    %v4781 = vunpack.c.l.b16 %v4500
    %v4782 = vunpack.c.h.b16 %v4500
    %v4783 = vunpack.c.l.b16 %v4501
    %v4784 = vunpack.c.h.b16 %v4501
    %v4785 = vunpack.c.l.b16 %v4502
    %v4786 = vunpack.c.h.b16 %v4502
    %v4787 = vunpack.c.l.b16 %v4503
    %v4788 = vunpack.c.h.b16 %v4503
    %v4789 = vunpack.c.l.b16 %v4504
    %v4790 = vunpack.c.h.b16 %v4504
    %v4791 = vunpack.c.l.b16 %v4505
    %v4792 = vunpack.c.h.b16 %v4505
    %v4793 = vunpack.c.l.b16 %v4506
    %v4794 = vunpack.c.h.b16 %v4506
    %v4795 = vunpack.c.l.b16 %v4507
    %v4796 = vunpack.c.h.b16 %v4507
    %v4797 = vunpack.c.l.b16 %v4508
    %v4798 = vunpack.c.h.b16 %v4508
    %v4799 = vunpack.c.l.b16 %v4509
    %v4800 = vunpack.c.h.b16 %v4509
    %v4801 = vunpack.c.l.b16 %v4510
    %v4802 = vunpack.c.h.b16 %v4510
    %v4803 = vunpack.c.l.b16 %v4511
    %v4804 = vunpack.c.h.b16 %v4511
    %v4805 = vunpack.c.l.b16 %v4512
    %v4806 = vunpack.c.h.b16 %v4512
    %v4807 = vpack.c.b16 %v4751, %v4695
    %v4808 = vpack.c.b16 %v4752, %v4696
    %v4809 = vpack.c.b16 %v4753, %v4697
    %v4810 = vpack.c.b16 %v4754, %v4698
    %v4811 = vpack.c.b16 %v4755, %v4699
    %v4812 = vpack.c.b16 %v4756, %v4700
    %v4813 = vpack.c.b16 %v4757, %v4701
    %v4814 = vpack.c.b16 %v4758, %v4702
    %v4815 = vpack.c.b16 %v4759, %v4703
    %v4816 = vpack.c.b16 %v4760, %v4704
    %v4817 = vpack.c.b16 %v4761, %v4705
    %v4818 = vpack.c.b16 %v4762, %v4706
    %v4819 = vpack.c.b16 %v4763, %v4707
    %v4820 = vpack.c.b16 %v4764, %v4708
    %v4821 = vpack.c.b16 %v4765, %v4709
    %v4822 = vpack.c.b16 %v4766, %v4710
    %v4823 = vpack.c.b16 %v4767, %v4711
    %v4824 = vpack.c.b16 %v4768, %v4712
    %v4825 = vpack.c.b16 %v4769, %v4713
    %v4826 = vpack.c.b16 %v4770, %v4714
    %v4827 = vpack.c.b16 %v4771, %v4715
    %v4828 = vpack.c.b16 %v4772, %v4716
    %v4829 = vpack.c.b16 %v4773, %v4717
    %v4830 = vpack.c.b16 %v4774, %v4718
    %v4831 = vpack.c.b16 %v4775, %v4719
    %v4832 = vpack.c.b16 %v4776, %v4720
    %v4833 = vpack.c.b16 %v4777, %v4721
    %v4834 = vpack.c.b16 %v4778, %v4722
    %v4835 = vpack.c.b16 %v4779, %v4723
    %v4836 = vpack.c.b16 %v4780, %v4724
    %v4837 = vpack.c.b16 %v4781, %v4725
    %v4838 = vpack.c.b16 %v4782, %v4726
    %v4839 = vpack.c.b16 %v4783, %v4727
    %v4840 = vpack.c.b16 %v4784, %v4728
    %v4841 = vpack.c.b16 %v4785, %v4729
    %v4842 = vpack.c.b16 %v4786, %v4730
    %v4843 = vpack.c.b16 %v4787, %v4731
    %v4844 = vpack.c.b16 %v4788, %v4732
    %v4845 = vpack.c.b16 %v4789, %v4733
    %v4846 = vpack.c.b16 %v4790, %v4734
    %v4847 = vpack.c.b16 %v4791, %v4735
    %v4848 = vpack.c.b16 %v4792, %v4736
    %v4849 = vpack.c.b16 %v4793, %v4737
    %v4850 = vpack.c.b16 %v4794, %v4738
    %v4851 = vpack.c.b16 %v4795, %v4739
    %v4852 = vpack.c.b16 %v4796, %v4740
    %v4853 = vpack.c.b16 %v4797, %v4741
    %v4854 = vpack.c.b16 %v4798, %v4742
    %v4855 = vpack.c.b16 %v4799, %v4743
    %v4856 = vpack.c.b16 %v4800, %v4744
    %v4857 = vpack.c.b16 %v4801, %v4745
    %v4858 = vpack.c.b16 %v4802, %v4746
    %v4859 = vpack.c.b16 %v4803, %v4747
    %v4860 = vpack.c.b16 %v4804, %v4748
    %v4861 = vpack.c.b16 %v4805, %v4749
    %v4862 = vpack.c.b16 %v4806, %v4750
    %v4920 = vsel %vm3714, %v4456, 0
    %4922 = vmatpush.bf16.msra.mxu0 0
    %4923 = vmatpush.bf16.msra.mxu0 0
    %4924 = vmatpush.bf16.msra.mxu0 0
    %4925 = vmatpush.bf16.msra.mxu0 0
    %4926 = vmatpush.bf16.msra.mxu0 0
    %4927 = vmatpush.bf16.msra.mxu0 0
    %4928 = vmatpush.bf16.msra.mxu0 0
    %4929 = vmatpush.bf16.msra.mxu0 %v4807
    %4930 = vmatmul.bf16.gmra.mxu0 %v4920
    %v4931 = vpop.f32.mrf.mxu0
    %v4932 = vadd.f32 %v4527, %v4931
    %v4933 = vpop.f32.mrf.mxu0
    %4934 = vdwg.mxu0
    %4935 = vmatpush.bf16.msra.mxu0 0
    %4936 = vmatpush.bf16.msra.mxu0 0
    %4937 = vmatpush.bf16.msra.mxu0 0
    %4938 = vmatpush.bf16.msra.mxu0 0
    %4939 = vmatpush.bf16.msra.mxu0 0
    %4940 = vmatpush.bf16.msra.mxu0 0
    %4941 = vmatpush.bf16.msra.mxu0 0
    %4942 = vmatpush.bf16.msra.mxu0 %v4808
    %4943 = vmatmul.bf16.gmra.mxu0 %v4920
    %v4944 = vpop.f32.mrf.mxu0
    %v4945 = vadd.f32 %v4528, %v4944
    %v4946 = vpop.f32.mrf.mxu0
    %4947 = vdwg.mxu0
    %4948 = vmatpush.bf16.msra.mxu0 0
    %4949 = vmatpush.bf16.msra.mxu0 0
    %4950 = vmatpush.bf16.msra.mxu0 0
    %4951 = vmatpush.bf16.msra.mxu0 0
    %4952 = vmatpush.bf16.msra.mxu0 0
    %4953 = vmatpush.bf16.msra.mxu0 0
    %4954 = vmatpush.bf16.msra.mxu0 0
    %4955 = vmatpush.bf16.msra.mxu0 %v4809
    %4956 = vmatmul.bf16.gmra.mxu0 %v4920
    %v4957 = vpop.f32.mrf.mxu0
    %v4958 = vadd.f32 %v4529, %v4957
    %v4959 = vpop.f32.mrf.mxu0
    %4960 = vdwg.mxu0
    %4961 = vmatpush.bf16.msra.mxu0 0
    %4962 = vmatpush.bf16.msra.mxu0 0
    %4963 = vmatpush.bf16.msra.mxu0 0
    %4964 = vmatpush.bf16.msra.mxu0 0
    %4965 = vmatpush.bf16.msra.mxu0 0
    %4966 = vmatpush.bf16.msra.mxu0 0
    %4967 = vmatpush.bf16.msra.mxu0 0
    %4968 = vmatpush.bf16.msra.mxu0 %v4810
    %4969 = vmatmul.bf16.gmra.mxu0 %v4920
    %v4970 = vpop.f32.mrf.mxu0
    %v4971 = vadd.f32 %v4530, %v4970
    %v4972 = vpop.f32.mrf.mxu0
    %4973 = vdwg.mxu0
    %4974 = vmatpush.bf16.msra.mxu0 0
    %4975 = vmatpush.bf16.msra.mxu0 0
    %4976 = vmatpush.bf16.msra.mxu0 0
    %4977 = vmatpush.bf16.msra.mxu0 0
    %4978 = vmatpush.bf16.msra.mxu0 0
    %4979 = vmatpush.bf16.msra.mxu0 0
    %4980 = vmatpush.bf16.msra.mxu0 0
    %4981 = vmatpush.bf16.msra.mxu0 %v4811
    %4982 = vmatmul.bf16.gmra.mxu0 %v4920
    %v4983 = vpop.f32.mrf.mxu0
    %v4984 = vadd.f32 %v4531, %v4983
    %v4985 = vpop.f32.mrf.mxu0
    %4986 = vdwg.mxu0
    %4987 = vmatpush.bf16.msra.mxu0 0
    %4988 = vmatpush.bf16.msra.mxu0 0
    %4989 = vmatpush.bf16.msra.mxu0 0
    %4990 = vmatpush.bf16.msra.mxu0 0
    %4991 = vmatpush.bf16.msra.mxu0 0
    %4992 = vmatpush.bf16.msra.mxu0 0
    %4993 = vmatpush.bf16.msra.mxu0 0
    %4994 = vmatpush.bf16.msra.mxu0 %v4812
    %4995 = vmatmul.bf16.gmra.mxu0 %v4920
    %v4996 = vpop.f32.mrf.mxu0
    %v4997 = vadd.f32 %v4532, %v4996
    %v4998 = vpop.f32.mrf.mxu0
    %4999 = vdwg.mxu0
    %5000 = vmatpush.bf16.msra.mxu0 0
    %5001 = vmatpush.bf16.msra.mxu0 0
    %5002 = vmatpush.bf16.msra.mxu0 0
    %5003 = vmatpush.bf16.msra.mxu0 0
    %5004 = vmatpush.bf16.msra.mxu0 0
    %5005 = vmatpush.bf16.msra.mxu0 0
    %5006 = vmatpush.bf16.msra.mxu0 0
    %5007 = vmatpush.bf16.msra.mxu0 %v4813
    %5008 = vmatmul.bf16.gmra.mxu0 %v4920
    %v5009 = vpop.f32.mrf.mxu0
    %v5010 = vadd.f32 %v4533, %v5009
    %v5011 = vpop.f32.mrf.mxu0
    %5012 = vdwg.mxu0
    %5013 = vmatpush.bf16.msra.mxu0 0
    %5014 = vmatpush.bf16.msra.mxu0 0
    %5015 = vmatpush.bf16.msra.mxu0 0
    %5016 = vmatpush.bf16.msra.mxu0 0
    %5017 = vmatpush.bf16.msra.mxu0 0
    %5018 = vmatpush.bf16.msra.mxu0 0
    %5019 = vmatpush.bf16.msra.mxu0 0
    %5020 = vmatpush.bf16.msra.mxu0 %v4814
    %5021 = vmatmul.bf16.gmra.mxu0 %v4920
    %v5022 = vpop.f32.mrf.mxu0
    %v5023 = vadd.f32 %v4534, %v5022
    %v5024 = vpop.f32.mrf.mxu0
    %5025 = vdwg.mxu0
    %5026 = vmatpush.bf16.msra.mxu0 0
    %5027 = vmatpush.bf16.msra.mxu0 0
    %5028 = vmatpush.bf16.msra.mxu0 0
    %5029 = vmatpush.bf16.msra.mxu0 0
    %5030 = vmatpush.bf16.msra.mxu0 0
    %5031 = vmatpush.bf16.msra.mxu0 0
    %5032 = vmatpush.bf16.msra.mxu0 0
    %5033 = vmatpush.bf16.msra.mxu0 %v4815
    %5034 = vmatmul.bf16.gmra.mxu0 %v4920
    %v5035 = vpop.f32.mrf.mxu0
    %v5036 = vadd.f32 %v4535, %v5035
    %v5037 = vpop.f32.mrf.mxu0
    %5038 = vdwg.mxu0
    %5039 = vmatpush.bf16.msra.mxu0 0
    %5040 = vmatpush.bf16.msra.mxu0 0
    %5041 = vmatpush.bf16.msra.mxu0 0
    %5042 = vmatpush.bf16.msra.mxu0 0
    %5043 = vmatpush.bf16.msra.mxu0 0
    %5044 = vmatpush.bf16.msra.mxu0 0
    %5045 = vmatpush.bf16.msra.mxu0 0
    %5046 = vmatpush.bf16.msra.mxu0 %v4816
    %5047 = vmatmul.bf16.gmra.mxu0 %v4920
    %v5048 = vpop.f32.mrf.mxu0
    %v5049 = vadd.f32 %v4536, %v5048
    %v5050 = vpop.f32.mrf.mxu0
    %5051 = vdwg.mxu0
    %5052 = vmatpush.bf16.msra.mxu0 0
    %5053 = vmatpush.bf16.msra.mxu0 0
    %5054 = vmatpush.bf16.msra.mxu0 0
    %5055 = vmatpush.bf16.msra.mxu0 0
    %5056 = vmatpush.bf16.msra.mxu0 0
    %5057 = vmatpush.bf16.msra.mxu0 0
    %5058 = vmatpush.bf16.msra.mxu0 0
    %5059 = vmatpush.bf16.msra.mxu0 %v4817
    %5060 = vmatmul.bf16.gmra.mxu0 %v4920
    %v5061 = vpop.f32.mrf.mxu0
    %v5062 = vadd.f32 %v4537, %v5061
    %v5063 = vpop.f32.mrf.mxu0
    %5064 = vdwg.mxu0
    %5065 = vmatpush.bf16.msra.mxu0 0
    %5066 = vmatpush.bf16.msra.mxu0 0
    %5067 = vmatpush.bf16.msra.mxu0 0
    %5068 = vmatpush.bf16.msra.mxu0 0
    %5069 = vmatpush.bf16.msra.mxu0 0
    %5070 = vmatpush.bf16.msra.mxu0 0
    %5071 = vmatpush.bf16.msra.mxu0 0
    %5072 = vmatpush.bf16.msra.mxu0 %v4818
    %5073 = vmatmul.bf16.gmra.mxu0 %v4920
    %v5074 = vpop.f32.mrf.mxu0
    %v5075 = vadd.f32 %v4538, %v5074
    %v5076 = vpop.f32.mrf.mxu0
    %5077 = vdwg.mxu0
    %5078 = vmatpush.bf16.msra.mxu0 0
    %5079 = vmatpush.bf16.msra.mxu0 0
    %5080 = vmatpush.bf16.msra.mxu0 0
    %5081 = vmatpush.bf16.msra.mxu0 0
    %5082 = vmatpush.bf16.msra.mxu0 0
    %5083 = vmatpush.bf16.msra.mxu0 0
    %5084 = vmatpush.bf16.msra.mxu0 0
    %5085 = vmatpush.bf16.msra.mxu0 %v4819
    %5086 = vmatmul.bf16.gmra.mxu0 %v4920
    %v5087 = vpop.f32.mrf.mxu0
    %v5088 = vadd.f32 %v4539, %v5087
    %v5089 = vpop.f32.mrf.mxu0
    %5090 = vdwg.mxu0
    %5091 = vmatpush.bf16.msra.mxu0 0
    %5092 = vmatpush.bf16.msra.mxu0 0
    %5093 = vmatpush.bf16.msra.mxu0 0
    %5094 = vmatpush.bf16.msra.mxu0 0
    %5095 = vmatpush.bf16.msra.mxu0 0
    %5096 = vmatpush.bf16.msra.mxu0 0
    %5097 = vmatpush.bf16.msra.mxu0 0
    %5098 = vmatpush.bf16.msra.mxu0 %v4820
    %5099 = vmatmul.bf16.gmra.mxu0 %v4920
    %v5100 = vpop.f32.mrf.mxu0
    %v5101 = vadd.f32 %v4540, %v5100
    %v5102 = vpop.f32.mrf.mxu0
    %5103 = vdwg.mxu0
    %5104 = vmatpush.bf16.msra.mxu0 0
    %5105 = vmatpush.bf16.msra.mxu0 0
    %5106 = vmatpush.bf16.msra.mxu0 0
    %5107 = vmatpush.bf16.msra.mxu0 0
    %5108 = vmatpush.bf16.msra.mxu0 0
    %5109 = vmatpush.bf16.msra.mxu0 0
    %5110 = vmatpush.bf16.msra.mxu0 0
    %5111 = vmatpush.bf16.msra.mxu0 %v4821
    %5112 = vmatmul.bf16.gmra.mxu0 %v4920
    %v5113 = vpop.f32.mrf.mxu0
    %v5114 = vadd.f32 %v4541, %v5113
    %v5115 = vpop.f32.mrf.mxu0
    %5116 = vdwg.mxu0
    %5117 = vmatpush.bf16.msra.mxu0 0
    %5118 = vmatpush.bf16.msra.mxu0 0
    %5119 = vmatpush.bf16.msra.mxu0 0
    %5120 = vmatpush.bf16.msra.mxu0 0
    %5121 = vmatpush.bf16.msra.mxu0 0
    %5122 = vmatpush.bf16.msra.mxu0 0
    %5123 = vmatpush.bf16.msra.mxu0 0
    %5124 = vmatpush.bf16.msra.mxu0 %v4822
    %5125 = vmatmul.bf16.gmra.mxu0 %v4920
    %v5126 = vpop.f32.mrf.mxu0
    %v5127 = vadd.f32 %v4542, %v5126
    %v5128 = vpop.f32.mrf.mxu0
    %5129 = vdwg.mxu0
    %5130 = vmatpush.bf16.msra.mxu0 0
    %5131 = vmatpush.bf16.msra.mxu0 0
    %5132 = vmatpush.bf16.msra.mxu0 0
    %5133 = vmatpush.bf16.msra.mxu0 0
    %5134 = vmatpush.bf16.msra.mxu0 0
    %5135 = vmatpush.bf16.msra.mxu0 0
    %5136 = vmatpush.bf16.msra.mxu0 0
    %5137 = vmatpush.bf16.msra.mxu0 %v4823
    %5138 = vmatmul.bf16.gmra.mxu0 %v4920
    %v5139 = vpop.f32.mrf.mxu0
    %v5140 = vadd.f32 %v4543, %v5139
    %v5141 = vpop.f32.mrf.mxu0
    %5142 = vdwg.mxu0
    %5143 = vmatpush.bf16.msra.mxu0 0
    %5144 = vmatpush.bf16.msra.mxu0 0
    %5145 = vmatpush.bf16.msra.mxu0 0
    %5146 = vmatpush.bf16.msra.mxu0 0
    %5147 = vmatpush.bf16.msra.mxu0 0
    %5148 = vmatpush.bf16.msra.mxu0 0
    %5149 = vmatpush.bf16.msra.mxu0 0
    %5150 = vmatpush.bf16.msra.mxu0 %v4824
    %5151 = vmatmul.bf16.gmra.mxu0 %v4920
    %v5152 = vpop.f32.mrf.mxu0
    %v5153 = vadd.f32 %v4544, %v5152
    %v5154 = vpop.f32.mrf.mxu0
    %5155 = vdwg.mxu0
    %5156 = vmatpush.bf16.msra.mxu0 0
    %5157 = vmatpush.bf16.msra.mxu0 0
    %5158 = vmatpush.bf16.msra.mxu0 0
    %5159 = vmatpush.bf16.msra.mxu0 0
    %5160 = vmatpush.bf16.msra.mxu0 0
    %5161 = vmatpush.bf16.msra.mxu0 0
    %5162 = vmatpush.bf16.msra.mxu0 0
    %5163 = vmatpush.bf16.msra.mxu0 %v4825
    %5164 = vmatmul.bf16.gmra.mxu0 %v4920
    %v5165 = vpop.f32.mrf.mxu0
    %v5166 = vadd.f32 %v4545, %v5165
    %v5167 = vpop.f32.mrf.mxu0
    %5168 = vdwg.mxu0
    %5169 = vmatpush.bf16.msra.mxu0 0
    %5170 = vmatpush.bf16.msra.mxu0 0
    %5171 = vmatpush.bf16.msra.mxu0 0
    %5172 = vmatpush.bf16.msra.mxu0 0
    %5173 = vmatpush.bf16.msra.mxu0 0
    %5174 = vmatpush.bf16.msra.mxu0 0
    %5175 = vmatpush.bf16.msra.mxu0 0
    %5176 = vmatpush.bf16.msra.mxu0 %v4826
    %5177 = vmatmul.bf16.gmra.mxu0 %v4920
    %v5178 = vpop.f32.mrf.mxu0
    %v5179 = vadd.f32 %v4546, %v5178
    %v5180 = vpop.f32.mrf.mxu0
    %5181 = vdwg.mxu0
    %5182 = vmatpush.bf16.msra.mxu0 0
    %5183 = vmatpush.bf16.msra.mxu0 0
    %5184 = vmatpush.bf16.msra.mxu0 0
    %5185 = vmatpush.bf16.msra.mxu0 0
    %5186 = vmatpush.bf16.msra.mxu0 0
    %5187 = vmatpush.bf16.msra.mxu0 0
    %5188 = vmatpush.bf16.msra.mxu0 0
    %5189 = vmatpush.bf16.msra.mxu0 %v4827
    %5190 = vmatmul.bf16.gmra.mxu0 %v4920
    %v5191 = vpop.f32.mrf.mxu0
    %v5192 = vadd.f32 %v4547, %v5191
    %v5193 = vpop.f32.mrf.mxu0
    %5194 = vdwg.mxu0
    %5195 = vmatpush.bf16.msra.mxu0 0
    %5196 = vmatpush.bf16.msra.mxu0 0
    %5197 = vmatpush.bf16.msra.mxu0 0
    %5198 = vmatpush.bf16.msra.mxu0 0
    %5199 = vmatpush.bf16.msra.mxu0 0
    %5200 = vmatpush.bf16.msra.mxu0 0
    %5201 = vmatpush.bf16.msra.mxu0 0
    %5202 = vmatpush.bf16.msra.mxu0 %v4828
    %5203 = vmatmul.bf16.gmra.mxu0 %v4920
    %v5204 = vpop.f32.mrf.mxu0
    %v5205 = vadd.f32 %v4548, %v5204
    %v5206 = vpop.f32.mrf.mxu0
    %5207 = vdwg.mxu0
    %5208 = vmatpush.bf16.msra.mxu0 0
    %5209 = vmatpush.bf16.msra.mxu0 0
    %5210 = vmatpush.bf16.msra.mxu0 0
    %5211 = vmatpush.bf16.msra.mxu0 0
    %5212 = vmatpush.bf16.msra.mxu0 0
    %5213 = vmatpush.bf16.msra.mxu0 0
    %5214 = vmatpush.bf16.msra.mxu0 0
    %5215 = vmatpush.bf16.msra.mxu0 %v4829
    %5216 = vmatmul.bf16.gmra.mxu0 %v4920
    %v5217 = vpop.f32.mrf.mxu0
    %v5218 = vadd.f32 %v4549, %v5217
    %v5219 = vpop.f32.mrf.mxu0
    %5220 = vdwg.mxu0
    %5221 = vmatpush.bf16.msra.mxu0 0
    %5222 = vmatpush.bf16.msra.mxu0 0
    %5223 = vmatpush.bf16.msra.mxu0 0
    %5224 = vmatpush.bf16.msra.mxu0 0
    %5225 = vmatpush.bf16.msra.mxu0 0
    %5226 = vmatpush.bf16.msra.mxu0 0
    %5227 = vmatpush.bf16.msra.mxu0 0
    %5228 = vmatpush.bf16.msra.mxu0 %v4830
    %5229 = vmatmul.bf16.gmra.mxu0 %v4920
    %v5230 = vpop.f32.mrf.mxu0
    %v5231 = vadd.f32 %v4550, %v5230
    %v5232 = vpop.f32.mrf.mxu0
    %5233 = vdwg.mxu0
    %5234 = vmatpush.bf16.msra.mxu0 0
    %5235 = vmatpush.bf16.msra.mxu0 0
    %5236 = vmatpush.bf16.msra.mxu0 0
    %5237 = vmatpush.bf16.msra.mxu0 0
    %5238 = vmatpush.bf16.msra.mxu0 0
    %5239 = vmatpush.bf16.msra.mxu0 0
    %5240 = vmatpush.bf16.msra.mxu0 0
    %5241 = vmatpush.bf16.msra.mxu0 %v4831
    %5242 = vmatmul.bf16.gmra.mxu0 %v4920
    %v5243 = vpop.f32.mrf.mxu0
    %v5244 = vadd.f32 %v4551, %v5243
    %v5245 = vpop.f32.mrf.mxu0
    %5246 = vdwg.mxu0
    %5247 = vmatpush.bf16.msra.mxu0 0
    %5248 = vmatpush.bf16.msra.mxu0 0
    %5249 = vmatpush.bf16.msra.mxu0 0
    %5250 = vmatpush.bf16.msra.mxu0 0
    %5251 = vmatpush.bf16.msra.mxu0 0
    %5252 = vmatpush.bf16.msra.mxu0 0
    %5253 = vmatpush.bf16.msra.mxu0 0
    %5254 = vmatpush.bf16.msra.mxu0 %v4832
    %5255 = vmatmul.bf16.gmra.mxu0 %v4920
    %v5256 = vpop.f32.mrf.mxu0
    %v5257 = vadd.f32 %v4552, %v5256
    %v5258 = vpop.f32.mrf.mxu0
    %5259 = vdwg.mxu0
    %5260 = vmatpush.bf16.msra.mxu0 0
    %5261 = vmatpush.bf16.msra.mxu0 0
    %5262 = vmatpush.bf16.msra.mxu0 0
    %5263 = vmatpush.bf16.msra.mxu0 0
    %5264 = vmatpush.bf16.msra.mxu0 0
    %5265 = vmatpush.bf16.msra.mxu0 0
    %5266 = vmatpush.bf16.msra.mxu0 0
    %5267 = vmatpush.bf16.msra.mxu0 %v4833
    %5268 = vmatmul.bf16.gmra.mxu0 %v4920
    %v5269 = vpop.f32.mrf.mxu0
    %v5270 = vadd.f32 %v4553, %v5269
    %v5271 = vpop.f32.mrf.mxu0
    %5272 = vdwg.mxu0
    %5273 = vmatpush.bf16.msra.mxu0 0
    %5274 = vmatpush.bf16.msra.mxu0 0
    %5275 = vmatpush.bf16.msra.mxu0 0
    %5276 = vmatpush.bf16.msra.mxu0 0
    %5277 = vmatpush.bf16.msra.mxu0 0
    %5278 = vmatpush.bf16.msra.mxu0 0
    %5279 = vmatpush.bf16.msra.mxu0 0
    %5280 = vmatpush.bf16.msra.mxu0 %v4834
    %5281 = vmatmul.bf16.gmra.mxu0 %v4920
    %v5282 = vpop.f32.mrf.mxu0
    %v5283 = vadd.f32 %v4554, %v5282
    %v5284 = vpop.f32.mrf.mxu0
    %5285 = vdwg.mxu0
    %5286 = vmatpush.bf16.msra.mxu0 0
    %5287 = vmatpush.bf16.msra.mxu0 0
    %5288 = vmatpush.bf16.msra.mxu0 0
    %5289 = vmatpush.bf16.msra.mxu0 0
    %5290 = vmatpush.bf16.msra.mxu0 0
    %5291 = vmatpush.bf16.msra.mxu0 0
    %5292 = vmatpush.bf16.msra.mxu0 0
    %5293 = vmatpush.bf16.msra.mxu0 %v4835
    %5294 = vmatmul.bf16.gmra.mxu0 %v4920
    %v5295 = vpop.f32.mrf.mxu0
    %v5296 = vadd.f32 %v4555, %v5295
    %v5297 = vpop.f32.mrf.mxu0
    %5298 = vdwg.mxu0
    %5299 = vmatpush.bf16.msra.mxu0 0
    %5300 = vmatpush.bf16.msra.mxu0 0
    %5301 = vmatpush.bf16.msra.mxu0 0
    %5302 = vmatpush.bf16.msra.mxu0 0
    %5303 = vmatpush.bf16.msra.mxu0 0
    %5304 = vmatpush.bf16.msra.mxu0 0
    %5305 = vmatpush.bf16.msra.mxu0 0
    %5306 = vmatpush.bf16.msra.mxu0 %v4836
    %5307 = vmatmul.bf16.gmra.mxu0 %v4920
    %v5308 = vpop.f32.mrf.mxu0
    %v5309 = vadd.f32 %v4556, %v5308
    %v5310 = vpop.f32.mrf.mxu0
    %5311 = vdwg.mxu0
    %5312 = vmatpush.bf16.msra.mxu0 0
    %5313 = vmatpush.bf16.msra.mxu0 0
    %5314 = vmatpush.bf16.msra.mxu0 0
    %5315 = vmatpush.bf16.msra.mxu0 0
    %5316 = vmatpush.bf16.msra.mxu0 0
    %5317 = vmatpush.bf16.msra.mxu0 0
    %5318 = vmatpush.bf16.msra.mxu0 0
    %5319 = vmatpush.bf16.msra.mxu0 %v4837
    %5320 = vmatmul.bf16.gmra.mxu0 %v4920
    %v5321 = vpop.f32.mrf.mxu0
    %v5322 = vadd.f32 %v4557, %v5321
    %v5323 = vpop.f32.mrf.mxu0
    %5324 = vdwg.mxu0
    %5325 = vmatpush.bf16.msra.mxu0 0
    %5326 = vmatpush.bf16.msra.mxu0 0
    %5327 = vmatpush.bf16.msra.mxu0 0
    %5328 = vmatpush.bf16.msra.mxu0 0
    %5329 = vmatpush.bf16.msra.mxu0 0
    %5330 = vmatpush.bf16.msra.mxu0 0
    %5331 = vmatpush.bf16.msra.mxu0 0
    %5332 = vmatpush.bf16.msra.mxu0 %v4838
    %5333 = vmatmul.bf16.gmra.mxu0 %v4920
    %v5334 = vpop.f32.mrf.mxu0
    %v5335 = vadd.f32 %v4558, %v5334
    %v5336 = vpop.f32.mrf.mxu0
    %5337 = vdwg.mxu0
    %5338 = vmatpush.bf16.msra.mxu0 0
    %5339 = vmatpush.bf16.msra.mxu0 0
    %5340 = vmatpush.bf16.msra.mxu0 0
    %5341 = vmatpush.bf16.msra.mxu0 0
    %5342 = vmatpush.bf16.msra.mxu0 0
    %5343 = vmatpush.bf16.msra.mxu0 0
    %5344 = vmatpush.bf16.msra.mxu0 0
    %5345 = vmatpush.bf16.msra.mxu0 %v4839
    %5346 = vmatmul.bf16.gmra.mxu0 %v4920
    %v5347 = vpop.f32.mrf.mxu0
    %v5348 = vadd.f32 %v4559, %v5347
    %v5349 = vpop.f32.mrf.mxu0
    %5350 = vdwg.mxu0
    %5351 = vmatpush.bf16.msra.mxu0 0
    %5352 = vmatpush.bf16.msra.mxu0 0
    %5353 = vmatpush.bf16.msra.mxu0 0
    %5354 = vmatpush.bf16.msra.mxu0 0
    %5355 = vmatpush.bf16.msra.mxu0 0
    %5356 = vmatpush.bf16.msra.mxu0 0
    %5357 = vmatpush.bf16.msra.mxu0 0
    %5358 = vmatpush.bf16.msra.mxu0 %v4840
    %5359 = vmatmul.bf16.gmra.mxu0 %v4920
    %v5360 = vpop.f32.mrf.mxu0
    %v5361 = vadd.f32 %v4560, %v5360
    %v5362 = vpop.f32.mrf.mxu0
    %5363 = vdwg.mxu0
    %5364 = vmatpush.bf16.msra.mxu0 0
    %5365 = vmatpush.bf16.msra.mxu0 0
    %5366 = vmatpush.bf16.msra.mxu0 0
    %5367 = vmatpush.bf16.msra.mxu0 0
    %5368 = vmatpush.bf16.msra.mxu0 0
    %5369 = vmatpush.bf16.msra.mxu0 0
    %5370 = vmatpush.bf16.msra.mxu0 0
    %5371 = vmatpush.bf16.msra.mxu0 %v4841
    %5372 = vmatmul.bf16.gmra.mxu0 %v4920
    %v5373 = vpop.f32.mrf.mxu0
    %v5374 = vadd.f32 %v4561, %v5373
    %v5375 = vpop.f32.mrf.mxu0
    %5376 = vdwg.mxu0
    %5377 = vmatpush.bf16.msra.mxu0 0
    %5378 = vmatpush.bf16.msra.mxu0 0
    %5379 = vmatpush.bf16.msra.mxu0 0
    %5380 = vmatpush.bf16.msra.mxu0 0
    %5381 = vmatpush.bf16.msra.mxu0 0
    %5382 = vmatpush.bf16.msra.mxu0 0
    %5383 = vmatpush.bf16.msra.mxu0 0
    %5384 = vmatpush.bf16.msra.mxu0 %v4842
    %5385 = vmatmul.bf16.gmra.mxu0 %v4920
    %v5386 = vpop.f32.mrf.mxu0
    %v5387 = vadd.f32 %v4562, %v5386
    %v5388 = vpop.f32.mrf.mxu0
    %5389 = vdwg.mxu0
    %5390 = vmatpush.bf16.msra.mxu0 0
    %5391 = vmatpush.bf16.msra.mxu0 0
    %5392 = vmatpush.bf16.msra.mxu0 0
    %5393 = vmatpush.bf16.msra.mxu0 0
    %5394 = vmatpush.bf16.msra.mxu0 0
    %5395 = vmatpush.bf16.msra.mxu0 0
    %5396 = vmatpush.bf16.msra.mxu0 0
    %5397 = vmatpush.bf16.msra.mxu0 %v4843
    %5398 = vmatmul.bf16.gmra.mxu0 %v4920
    %v5399 = vpop.f32.mrf.mxu0
    %v5400 = vadd.f32 %v4563, %v5399
    %v5401 = vpop.f32.mrf.mxu0
    %5402 = vdwg.mxu0
    %5403 = vmatpush.bf16.msra.mxu0 0
    %5404 = vmatpush.bf16.msra.mxu0 0
    %5405 = vmatpush.bf16.msra.mxu0 0
    %5406 = vmatpush.bf16.msra.mxu0 0
    %5407 = vmatpush.bf16.msra.mxu0 0
    %5408 = vmatpush.bf16.msra.mxu0 0
    %5409 = vmatpush.bf16.msra.mxu0 0
    %5410 = vmatpush.bf16.msra.mxu0 %v4844
    %5411 = vmatmul.bf16.gmra.mxu0 %v4920
    %v5412 = vpop.f32.mrf.mxu0
    %v5413 = vadd.f32 %v4564, %v5412
    %v5414 = vpop.f32.mrf.mxu0
    %5415 = vdwg.mxu0
    %5416 = vmatpush.bf16.msra.mxu0 0
    %5417 = vmatpush.bf16.msra.mxu0 0
    %5418 = vmatpush.bf16.msra.mxu0 0
    %5419 = vmatpush.bf16.msra.mxu0 0
    %5420 = vmatpush.bf16.msra.mxu0 0
    %5421 = vmatpush.bf16.msra.mxu0 0
    %5422 = vmatpush.bf16.msra.mxu0 0
    %5423 = vmatpush.bf16.msra.mxu0 %v4845
    %5424 = vmatmul.bf16.gmra.mxu0 %v4920
    %v5425 = vpop.f32.mrf.mxu0
    %v5426 = vadd.f32 %v4565, %v5425
    %v5427 = vpop.f32.mrf.mxu0
    %5428 = vdwg.mxu0
    %5429 = vmatpush.bf16.msra.mxu0 0
    %5430 = vmatpush.bf16.msra.mxu0 0
    %5431 = vmatpush.bf16.msra.mxu0 0
    %5432 = vmatpush.bf16.msra.mxu0 0
    %5433 = vmatpush.bf16.msra.mxu0 0
    %5434 = vmatpush.bf16.msra.mxu0 0
    %5435 = vmatpush.bf16.msra.mxu0 0
    %5436 = vmatpush.bf16.msra.mxu0 %v4846
    %5437 = vmatmul.bf16.gmra.mxu0 %v4920
    %v5438 = vpop.f32.mrf.mxu0
    %v5439 = vadd.f32 %v4566, %v5438
    %v5440 = vpop.f32.mrf.mxu0
    %5441 = vdwg.mxu0
    %5442 = vmatpush.bf16.msra.mxu0 0
    %5443 = vmatpush.bf16.msra.mxu0 0
    %5444 = vmatpush.bf16.msra.mxu0 0
    %5445 = vmatpush.bf16.msra.mxu0 0
    %5446 = vmatpush.bf16.msra.mxu0 0
    %5447 = vmatpush.bf16.msra.mxu0 0
    %5448 = vmatpush.bf16.msra.mxu0 0
    %5449 = vmatpush.bf16.msra.mxu0 %v4847
    %5450 = vmatmul.bf16.gmra.mxu0 %v4920
    %v5451 = vpop.f32.mrf.mxu0
    %v5452 = vadd.f32 %v4567, %v5451
    %v5453 = vpop.f32.mrf.mxu0
    %5454 = vdwg.mxu0
    %5455 = vmatpush.bf16.msra.mxu0 0
    %5456 = vmatpush.bf16.msra.mxu0 0
    %5457 = vmatpush.bf16.msra.mxu0 0
    %5458 = vmatpush.bf16.msra.mxu0 0
    %5459 = vmatpush.bf16.msra.mxu0 0
    %5460 = vmatpush.bf16.msra.mxu0 0
    %5461 = vmatpush.bf16.msra.mxu0 0
    %5462 = vmatpush.bf16.msra.mxu0 %v4848
    %5463 = vmatmul.bf16.gmra.mxu0 %v4920
    %v5464 = vpop.f32.mrf.mxu0
    %v5465 = vadd.f32 %v4568, %v5464
    %v5466 = vpop.f32.mrf.mxu0
    %5467 = vdwg.mxu0
    %5468 = vmatpush.bf16.msra.mxu0 0
    %5469 = vmatpush.bf16.msra.mxu0 0
    %5470 = vmatpush.bf16.msra.mxu0 0
    %5471 = vmatpush.bf16.msra.mxu0 0
    %5472 = vmatpush.bf16.msra.mxu0 0
    %5473 = vmatpush.bf16.msra.mxu0 0
    %5474 = vmatpush.bf16.msra.mxu0 0
    %5475 = vmatpush.bf16.msra.mxu0 %v4849
    %5476 = vmatmul.bf16.gmra.mxu0 %v4920
    %v5477 = vpop.f32.mrf.mxu0
    %v5478 = vadd.f32 %v4569, %v5477
    %v5479 = vpop.f32.mrf.mxu0
    %5480 = vdwg.mxu0
    %5481 = vmatpush.bf16.msra.mxu0 0
    %5482 = vmatpush.bf16.msra.mxu0 0
    %5483 = vmatpush.bf16.msra.mxu0 0
    %5484 = vmatpush.bf16.msra.mxu0 0
    %5485 = vmatpush.bf16.msra.mxu0 0
    %5486 = vmatpush.bf16.msra.mxu0 0
    %5487 = vmatpush.bf16.msra.mxu0 0
    %5488 = vmatpush.bf16.msra.mxu0 %v4850
    %5489 = vmatmul.bf16.gmra.mxu0 %v4920
    %v5490 = vpop.f32.mrf.mxu0
    %v5491 = vadd.f32 %v4570, %v5490
    %v5492 = vpop.f32.mrf.mxu0
    %5493 = vdwg.mxu0
    %5494 = vmatpush.bf16.msra.mxu0 0
    %5495 = vmatpush.bf16.msra.mxu0 0
    %5496 = vmatpush.bf16.msra.mxu0 0
    %5497 = vmatpush.bf16.msra.mxu0 0
    %5498 = vmatpush.bf16.msra.mxu0 0
    %5499 = vmatpush.bf16.msra.mxu0 0
    %5500 = vmatpush.bf16.msra.mxu0 0
    %5501 = vmatpush.bf16.msra.mxu0 %v4851
    %5502 = vmatmul.bf16.gmra.mxu0 %v4920
    %v5503 = vpop.f32.mrf.mxu0
    %v5504 = vadd.f32 %v4571, %v5503
    %v5505 = vpop.f32.mrf.mxu0
    %5506 = vdwg.mxu0
    %5507 = vmatpush.bf16.msra.mxu0 0
    %5508 = vmatpush.bf16.msra.mxu0 0
    %5509 = vmatpush.bf16.msra.mxu0 0
    %5510 = vmatpush.bf16.msra.mxu0 0
    %5511 = vmatpush.bf16.msra.mxu0 0
    %5512 = vmatpush.bf16.msra.mxu0 0
    %5513 = vmatpush.bf16.msra.mxu0 0
    %5514 = vmatpush.bf16.msra.mxu0 %v4852
    %5515 = vmatmul.bf16.gmra.mxu0 %v4920
    %v5516 = vpop.f32.mrf.mxu0
    %v5517 = vadd.f32 %v4572, %v5516
    %v5518 = vpop.f32.mrf.mxu0
    %5519 = vdwg.mxu0
    %5520 = vmatpush.bf16.msra.mxu0 0
    %5521 = vmatpush.bf16.msra.mxu0 0
    %5522 = vmatpush.bf16.msra.mxu0 0
    %5523 = vmatpush.bf16.msra.mxu0 0
    %5524 = vmatpush.bf16.msra.mxu0 0
    %5525 = vmatpush.bf16.msra.mxu0 0
    %5526 = vmatpush.bf16.msra.mxu0 0
    %5527 = vmatpush.bf16.msra.mxu0 %v4853
    %5528 = vmatmul.bf16.gmra.mxu0 %v4920
    %v5529 = vpop.f32.mrf.mxu0
    %v5530 = vadd.f32 %v4573, %v5529
    %v5531 = vpop.f32.mrf.mxu0
    %5532 = vdwg.mxu0
    %5533 = vmatpush.bf16.msra.mxu0 0
    %5534 = vmatpush.bf16.msra.mxu0 0
    %5535 = vmatpush.bf16.msra.mxu0 0
    %5536 = vmatpush.bf16.msra.mxu0 0
    %5537 = vmatpush.bf16.msra.mxu0 0
    %5538 = vmatpush.bf16.msra.mxu0 0
    %5539 = vmatpush.bf16.msra.mxu0 0
    %5540 = vmatpush.bf16.msra.mxu0 %v4854
    %5541 = vmatmul.bf16.gmra.mxu0 %v4920
    %v5542 = vpop.f32.mrf.mxu0
    %v5543 = vadd.f32 %v4574, %v5542
    %v5544 = vpop.f32.mrf.mxu0
    %5545 = vdwg.mxu0
    %5546 = vmatpush.bf16.msra.mxu0 0
    %5547 = vmatpush.bf16.msra.mxu0 0
    %5548 = vmatpush.bf16.msra.mxu0 0
    %5549 = vmatpush.bf16.msra.mxu0 0
    %5550 = vmatpush.bf16.msra.mxu0 0
    %5551 = vmatpush.bf16.msra.mxu0 0
    %5552 = vmatpush.bf16.msra.mxu0 0
    %5553 = vmatpush.bf16.msra.mxu0 %v4855
    %5554 = vmatmul.bf16.gmra.mxu0 %v4920
    %v5555 = vpop.f32.mrf.mxu0
    %v5556 = vadd.f32 %v4575, %v5555
    %v5557 = vpop.f32.mrf.mxu0
    %5558 = vdwg.mxu0
    %5559 = vmatpush.bf16.msra.mxu0 0
    %5560 = vmatpush.bf16.msra.mxu0 0
    %5561 = vmatpush.bf16.msra.mxu0 0
    %5562 = vmatpush.bf16.msra.mxu0 0
    %5563 = vmatpush.bf16.msra.mxu0 0
    %5564 = vmatpush.bf16.msra.mxu0 0
    %5565 = vmatpush.bf16.msra.mxu0 0
    %5566 = vmatpush.bf16.msra.mxu0 %v4856
    %5567 = vmatmul.bf16.gmra.mxu0 %v4920
    %v5568 = vpop.f32.mrf.mxu0
    %v5569 = vadd.f32 %v4576, %v5568
    %v5570 = vpop.f32.mrf.mxu0
    %5571 = vdwg.mxu0
    %5572 = vmatpush.bf16.msra.mxu0 0
    %5573 = vmatpush.bf16.msra.mxu0 0
    %5574 = vmatpush.bf16.msra.mxu0 0
    %5575 = vmatpush.bf16.msra.mxu0 0
    %5576 = vmatpush.bf16.msra.mxu0 0
    %5577 = vmatpush.bf16.msra.mxu0 0
    %5578 = vmatpush.bf16.msra.mxu0 0
    %5579 = vmatpush.bf16.msra.mxu0 %v4857
    %5580 = vmatmul.bf16.gmra.mxu0 %v4920
    %v5581 = vpop.f32.mrf.mxu0
    %v5582 = vadd.f32 %v4577, %v5581
    %v5583 = vpop.f32.mrf.mxu0
    %5584 = vdwg.mxu0
    %5585 = vmatpush.bf16.msra.mxu0 0
    %5586 = vmatpush.bf16.msra.mxu0 0
    %5587 = vmatpush.bf16.msra.mxu0 0
    %5588 = vmatpush.bf16.msra.mxu0 0
    %5589 = vmatpush.bf16.msra.mxu0 0
    %5590 = vmatpush.bf16.msra.mxu0 0
    %5591 = vmatpush.bf16.msra.mxu0 0
    %5592 = vmatpush.bf16.msra.mxu0 %v4858
    %5593 = vmatmul.bf16.gmra.mxu0 %v4920
    %v5594 = vpop.f32.mrf.mxu0
    %v5595 = vadd.f32 %v4578, %v5594
    %v5596 = vpop.f32.mrf.mxu0
    %5597 = vdwg.mxu0
    %5598 = vmatpush.bf16.msra.mxu0 0
    %5599 = vmatpush.bf16.msra.mxu0 0
    %5600 = vmatpush.bf16.msra.mxu0 0
    %5601 = vmatpush.bf16.msra.mxu0 0
    %5602 = vmatpush.bf16.msra.mxu0 0
    %5603 = vmatpush.bf16.msra.mxu0 0
    %5604 = vmatpush.bf16.msra.mxu0 0
    %5605 = vmatpush.bf16.msra.mxu0 %v4859
    %5606 = vmatmul.bf16.gmra.mxu0 %v4920
    %v5607 = vpop.f32.mrf.mxu0
    %v5608 = vadd.f32 %v4579, %v5607
    %v5609 = vpop.f32.mrf.mxu0
    %5610 = vdwg.mxu0
    %5611 = vmatpush.bf16.msra.mxu0 0
    %5612 = vmatpush.bf16.msra.mxu0 0
    %5613 = vmatpush.bf16.msra.mxu0 0
    %5614 = vmatpush.bf16.msra.mxu0 0
    %5615 = vmatpush.bf16.msra.mxu0 0
    %5616 = vmatpush.bf16.msra.mxu0 0
    %5617 = vmatpush.bf16.msra.mxu0 0
    %5618 = vmatpush.bf16.msra.mxu0 %v4860
    %5619 = vmatmul.bf16.gmra.mxu0 %v4920
    %v5620 = vpop.f32.mrf.mxu0
    %v5621 = vadd.f32 %v4580, %v5620
    %v5622 = vpop.f32.mrf.mxu0
    %5623 = vdwg.mxu0
    %5624 = vmatpush.bf16.msra.mxu0 0
    %5625 = vmatpush.bf16.msra.mxu0 0
    %5626 = vmatpush.bf16.msra.mxu0 0
    %5627 = vmatpush.bf16.msra.mxu0 0
    %5628 = vmatpush.bf16.msra.mxu0 0
    %5629 = vmatpush.bf16.msra.mxu0 0
    %5630 = vmatpush.bf16.msra.mxu0 0
    %5631 = vmatpush.bf16.msra.mxu0 %v4861
    %5632 = vmatmul.bf16.gmra.mxu0 %v4920
    %v5633 = vpop.f32.mrf.mxu0
    %v5634 = vadd.f32 %v4581, %v5633
    %v5635 = vpop.f32.mrf.mxu0
    %5636 = vdwg.mxu0
    %5637 = vmatpush.bf16.msra.mxu0 0
    %5638 = vmatpush.bf16.msra.mxu0 0
    %5639 = vmatpush.bf16.msra.mxu0 0
    %5640 = vmatpush.bf16.msra.mxu0 0
    %5641 = vmatpush.bf16.msra.mxu0 0
    %5642 = vmatpush.bf16.msra.mxu0 0
    %5643 = vmatpush.bf16.msra.mxu0 0
    %5644 = vmatpush.bf16.msra.mxu0 %v4862
    %5645 = vmatmul.bf16.gmra.mxu0 %v4920
    %v5646 = vpop.f32.mrf.mxu0
    %v5647 = vadd.f32 %v4582, %v5646
    %v5648 = vpop.f32.mrf.mxu0
    %5649 = vdwg.mxu0
    %v5650 = vpack.c.bf16 %v4945, %v4932
    %v5651 = vpack.c.bf16 %v4971, %v4958
    %v5652 = vpack.c.bf16 %v4997, %v4984
    %v5653 = vpack.c.bf16 %v5023, %v5010
    %v5654 = vpack.c.bf16 %v5049, %v5036
    %v5655 = vpack.c.bf16 %v5075, %v5062
    %v5656 = vpack.c.bf16 %v5101, %v5088
    %v5657 = vpack.c.bf16 %v5127, %v5114
    %v5658 = vpack.c.bf16 %v5153, %v5140
    %v5659 = vpack.c.bf16 %v5179, %v5166
    %v5660 = vpack.c.bf16 %v5205, %v5192
    %v5661 = vpack.c.bf16 %v5231, %v5218
    %v5662 = vpack.c.bf16 %v5257, %v5244
    %v5663 = vpack.c.bf16 %v5283, %v5270
    %v5664 = vpack.c.bf16 %v5309, %v5296
    %v5665 = vpack.c.bf16 %v5335, %v5322
    %v5666 = vpack.c.bf16 %v5361, %v5348
    %v5667 = vpack.c.bf16 %v5387, %v5374
    %v5668 = vpack.c.bf16 %v5413, %v5400
    %v5669 = vpack.c.bf16 %v5439, %v5426
    %v5670 = vpack.c.bf16 %v5465, %v5452
    %v5671 = vpack.c.bf16 %v5491, %v5478
    %v5672 = vpack.c.bf16 %v5517, %v5504
    %v5673 = vpack.c.bf16 %v5543, %v5530
    %v5674 = vpack.c.bf16 %v5569, %v5556
    %v5675 = vpack.c.bf16 %v5595, %v5582
    %v5676 = vpack.c.bf16 %v5621, %v5608
    %v5677 = vpack.c.bf16 %v5647, %v5634
    %v5678 = vxor.u32 %v5650, 2147516416
    %v5679 = vxor.u32 %v5651, 2147516416
    %v5680 = vxor.u32 %v5652, 2147516416
    %v5681 = vxor.u32 %v5653, 2147516416
    %v5682 = vxor.u32 %v5654, 2147516416
    %v5683 = vxor.u32 %v5655, 2147516416
    %v5684 = vxor.u32 %v5656, 2147516416
    %v5685 = vxor.u32 %v5657, 2147516416
    %v5686 = vxor.u32 %v5658, 2147516416
    %v5687 = vxor.u32 %v5659, 2147516416
    %v5688 = vxor.u32 %v5660, 2147516416
    %v5689 = vxor.u32 %v5661, 2147516416
    %v5690 = vxor.u32 %v5662, 2147516416
    %v5691 = vxor.u32 %v5663, 2147516416
    %v5692 = vxor.u32 %v5664, 2147516416
    %v5693 = vxor.u32 %v5665, 2147516416
    %v5694 = vxor.u32 %v5666, 2147516416
    %v5695 = vxor.u32 %v5667, 2147516416
    %v5696 = vxor.u32 %v5668, 2147516416
    %v5697 = vxor.u32 %v5669, 2147516416
    %v5698 = vxor.u32 %v5670, 2147516416
    %v5699 = vxor.u32 %v5671, 2147516416
    %v5700 = vxor.u32 %v5672, 2147516416
    %v5701 = vxor.u32 %v5673, 2147516416
    %v5702 = vxor.u32 %v5674, 2147516416
    %v5703 = vxor.u32 %v5675, 2147516416
    %v5704 = vxor.u32 %v5676, 2147516416
    %v5705 = vxor.u32 %v5677, 2147516416
    %v5706 = vunpack.c.l.bf16 %v5678
    %v5707 = vunpack.c.h.bf16 %v5678
    %v5708 = vunpack.c.l.bf16 %v5679
    %v5709 = vunpack.c.h.bf16 %v5679
    %v5710 = vunpack.c.l.bf16 %v5680
    %v5711 = vunpack.c.h.bf16 %v5680
    %v5712 = vunpack.c.l.bf16 %v5681
    %v5713 = vunpack.c.h.bf16 %v5681
    %v5714 = vunpack.c.l.bf16 %v5682
    %v5715 = vunpack.c.h.bf16 %v5682
    %v5716 = vunpack.c.l.bf16 %v5683
    %v5717 = vunpack.c.h.bf16 %v5683
    %v5718 = vunpack.c.l.bf16 %v5684
    %v5719 = vunpack.c.h.bf16 %v5684
    %v5720 = vunpack.c.l.bf16 %v5685
    %v5721 = vunpack.c.h.bf16 %v5685
    %v5722 = vunpack.c.l.bf16 %v5686
    %v5723 = vunpack.c.h.bf16 %v5686
    %v5724 = vunpack.c.l.bf16 %v5687
    %v5725 = vunpack.c.h.bf16 %v5687
    %v5726 = vunpack.c.l.bf16 %v5688
    %v5727 = vunpack.c.h.bf16 %v5688
    %v5728 = vunpack.c.l.bf16 %v5689
    %v5729 = vunpack.c.h.bf16 %v5689
    %v5730 = vunpack.c.l.bf16 %v5690
    %v5731 = vunpack.c.h.bf16 %v5690
    %v5732 = vunpack.c.l.bf16 %v5691
    %v5733 = vunpack.c.h.bf16 %v5691
    %v5734 = vunpack.c.l.bf16 %v5692
    %v5735 = vunpack.c.h.bf16 %v5692
    %v5736 = vunpack.c.l.bf16 %v5693
    %v5737 = vunpack.c.h.bf16 %v5693
    %v5738 = vunpack.c.l.bf16 %v5694
    %v5739 = vunpack.c.h.bf16 %v5694
    %v5740 = vunpack.c.l.bf16 %v5695
    %v5741 = vunpack.c.h.bf16 %v5695
    %v5742 = vunpack.c.l.bf16 %v5696
    %v5743 = vunpack.c.h.bf16 %v5696
    %v5744 = vunpack.c.l.bf16 %v5697
    %v5745 = vunpack.c.h.bf16 %v5697
    %v5746 = vunpack.c.l.bf16 %v5698
    %v5747 = vunpack.c.h.bf16 %v5698
    %v5748 = vunpack.c.l.bf16 %v5699
    %v5749 = vunpack.c.h.bf16 %v5699
    %v5750 = vunpack.c.l.bf16 %v5700
    %v5751 = vunpack.c.h.bf16 %v5700
    %v5752 = vunpack.c.l.bf16 %v5701
    %v5753 = vunpack.c.h.bf16 %v5701
    %v5754 = vunpack.c.l.bf16 %v5702
    %v5755 = vunpack.c.h.bf16 %v5702
    %v5756 = vunpack.c.l.bf16 %v5703
    %v5757 = vunpack.c.h.bf16 %v5703
    %v5758 = vunpack.c.l.bf16 %v5704
    %v5759 = vunpack.c.h.bf16 %v5704
    %v5760 = vunpack.c.l.bf16 %v5705
    %v5761 = vunpack.c.h.bf16 %v5705
    %v5762 = vmul.f32 %v5706, 1.442695
    %v5763 = vpow.pop %v5762
    %v5764 = vmul.f32 %v5707, 1.442695
    %v5765 = vpow.pop %v5764
    %v5766 = vmul.f32 %v5708, 1.442695
    %v5767 = vpow.pop %v5766
    %v5768 = vmul.f32 %v5709, 1.442695
    %v5769 = vpow.pop %v5768
    %v5770 = vmul.f32 %v5710, 1.442695
    %v5771 = vpow.pop %v5770
    %v5772 = vmul.f32 %v5711, 1.442695
    %v5773 = vpow.pop %v5772
    %v5774 = vmul.f32 %v5712, 1.442695
    %v5775 = vpow.pop %v5774
    %v5776 = vmul.f32 %v5713, 1.442695
    %v5777 = vpow.pop %v5776
    %v5778 = vmul.f32 %v5714, 1.442695
    %v5779 = vpow.pop %v5778
    %v5780 = vmul.f32 %v5715, 1.442695
    %v5781 = vpow.pop %v5780
    %v5782 = vmul.f32 %v5716, 1.442695
    %v5783 = vpow.pop %v5782
    %v5784 = vmul.f32 %v5717, 1.442695
    %v5785 = vpow.pop %v5784
    %v5786 = vmul.f32 %v5718, 1.442695
    %v5787 = vpow.pop %v5786
    %v5788 = vmul.f32 %v5719, 1.442695
    %v5789 = vpow.pop %v5788
    %v5790 = vmul.f32 %v5720, 1.442695
    %v5791 = vpow.pop %v5790
    %v5792 = vmul.f32 %v5721, 1.442695
    %v5793 = vpow.pop %v5792
    %v5794 = vmul.f32 %v5722, 1.442695
    %v5795 = vpow.pop %v5794
    %v5796 = vmul.f32 %v5723, 1.442695
    %v5797 = vpow.pop %v5796
    %v5798 = vmul.f32 %v5724, 1.442695
    %v5799 = vpow.pop %v5798
    %v5800 = vmul.f32 %v5725, 1.442695
    %v5801 = vpow.pop %v5800
    %v5802 = vmul.f32 %v5726, 1.442695
    %v5803 = vpow.pop %v5802
    %v5804 = vmul.f32 %v5727, 1.442695
    %v5805 = vpow.pop %v5804
    %v5806 = vmul.f32 %v5728, 1.442695
    %v5807 = vpow.pop %v5806
    %v5808 = vmul.f32 %v5729, 1.442695
    %v5809 = vpow.pop %v5808
    %v5810 = vmul.f32 %v5730, 1.442695
    %v5811 = vpow.pop %v5810
    %v5812 = vmul.f32 %v5731, 1.442695
    %v5813 = vpow.pop %v5812
    %v5814 = vmul.f32 %v5732, 1.442695
    %v5815 = vpow.pop %v5814
    %v5816 = vmul.f32 %v5733, 1.442695
    %v5817 = vpow.pop %v5816
    %v5818 = vmul.f32 %v5734, 1.442695
    %v5819 = vpow.pop %v5818
    %v5820 = vmul.f32 %v5735, 1.442695
    %v5821 = vpow.pop %v5820
    %v5822 = vmul.f32 %v5736, 1.442695
    %v5823 = vpow.pop %v5822
    %v5824 = vmul.f32 %v5737, 1.442695
    %v5825 = vpow.pop %v5824
    %v5826 = vmul.f32 %v5738, 1.442695
    %v5827 = vpow.pop %v5826
    %v5828 = vmul.f32 %v5739, 1.442695
    %v5829 = vpow.pop %v5828
    %v5830 = vmul.f32 %v5740, 1.442695
    %v5831 = vpow.pop %v5830
    %v5832 = vmul.f32 %v5741, 1.442695
    %v5833 = vpow.pop %v5832
    %v5834 = vmul.f32 %v5742, 1.442695
    %v5835 = vpow.pop %v5834
    %v5836 = vmul.f32 %v5743, 1.442695
    %v5837 = vpow.pop %v5836
    %v5838 = vmul.f32 %v5744, 1.442695
    %v5839 = vpow.pop %v5838
    %v5840 = vmul.f32 %v5745, 1.442695
    %v5841 = vpow.pop %v5840
    %v5842 = vmul.f32 %v5746, 1.442695
    %v5843 = vpow.pop %v5842
    %v5844 = vmul.f32 %v5747, 1.442695
    %v5845 = vpow.pop %v5844
    %v5846 = vmul.f32 %v5748, 1.442695
    %v5847 = vpow.pop %v5846
    %v5848 = vmul.f32 %v5749, 1.442695
    %v5849 = vpow.pop %v5848
    %v5850 = vmul.f32 %v5750, 1.442695
    %v5851 = vpow.pop %v5850
    %v5852 = vmul.f32 %v5751, 1.442695
    %v5853 = vpow.pop %v5852
    %v5854 = vmul.f32 %v5752, 1.442695
    %v5855 = vpow.pop %v5854
    %v5856 = vmul.f32 %v5753, 1.442695
    %v5857 = vpow.pop %v5856
    %v5858 = vmul.f32 %v5754, 1.442695
    %v5859 = vpow.pop %v5858
    %v5860 = vmul.f32 %v5755, 1.442695
    %v5861 = vpow.pop %v5860
    %v5862 = vmul.f32 %v5756, 1.442695
    %v5863 = vpow.pop %v5862
    %v5864 = vmul.f32 %v5757, 1.442695
    %v5865 = vpow.pop %v5864
    %v5866 = vmul.f32 %v5758, 1.442695
    %v5867 = vpow.pop %v5866
    %v5868 = vmul.f32 %v5759, 1.442695
    %v5869 = vpow.pop %v5868
    %v5870 = vmul.f32 %v5760, 1.442695
    %v5871 = vpow.pop %v5870
    %v5872 = vmul.f32 %v5761, 1.442695
    %v5873 = vpow.pop %v5872
    %v5874 = vpack.c.bf16 %v5765, %v5763
    %v5875 = vpack.c.bf16 %v5769, %v5767
    %v5876 = vpack.c.bf16 %v5773, %v5771
    %v5877 = vpack.c.bf16 %v5777, %v5775
    %v5878 = vpack.c.bf16 %v5781, %v5779
    %v5879 = vpack.c.bf16 %v5785, %v5783
    %v5880 = vpack.c.bf16 %v5789, %v5787
    %v5881 = vpack.c.bf16 %v5793, %v5791
    %v5882 = vpack.c.bf16 %v5797, %v5795
    %v5883 = vpack.c.bf16 %v5801, %v5799
    %v5884 = vpack.c.bf16 %v5805, %v5803
    %v5885 = vpack.c.bf16 %v5809, %v5807
    %v5886 = vpack.c.bf16 %v5813, %v5811
    %v5887 = vpack.c.bf16 %v5817, %v5815
    %v5888 = vpack.c.bf16 %v5821, %v5819
    %v5889 = vpack.c.bf16 %v5825, %v5823
    %v5890 = vpack.c.bf16 %v5829, %v5827
    %v5891 = vpack.c.bf16 %v5833, %v5831
    %v5892 = vpack.c.bf16 %v5837, %v5835
    %v5893 = vpack.c.bf16 %v5841, %v5839
    %v5894 = vpack.c.bf16 %v5845, %v5843
    %v5895 = vpack.c.bf16 %v5849, %v5847
    %v5896 = vpack.c.bf16 %v5853, %v5851
    %v5897 = vpack.c.bf16 %v5857, %v5855
    %v5898 = vpack.c.bf16 %v5861, %v5859
    %v5899 = vpack.c.bf16 %v5865, %v5863
    %v5900 = vpack.c.bf16 %v5869, %v5867
    %v5901 = vpack.c.bf16 %v5873, %v5871
    %v5902 = vunpack.c.l.bf16 %v5874
    %v5903 = vunpack.c.h.bf16 %v5874
    %v5904 = vunpack.c.l.bf16 %v5875
    %v5905 = vunpack.c.h.bf16 %v5875
    %v5906 = vunpack.c.l.bf16 %v5876
    %v5907 = vunpack.c.h.bf16 %v5876
    %v5908 = vunpack.c.l.bf16 %v5877
    %v5909 = vunpack.c.h.bf16 %v5877
    %v5910 = vunpack.c.l.bf16 %v5878
    %v5911 = vunpack.c.h.bf16 %v5878
    %v5912 = vunpack.c.l.bf16 %v5879
    %v5913 = vunpack.c.h.bf16 %v5879
    %v5914 = vunpack.c.l.bf16 %v5880
    %v5915 = vunpack.c.h.bf16 %v5880
    %v5916 = vunpack.c.l.bf16 %v5881
    %v5917 = vunpack.c.h.bf16 %v5881
    %v5918 = vunpack.c.l.bf16 %v5882
    %v5919 = vunpack.c.h.bf16 %v5882
    %v5920 = vunpack.c.l.bf16 %v5883
    %v5921 = vunpack.c.h.bf16 %v5883
    %v5922 = vunpack.c.l.bf16 %v5884
    %v5923 = vunpack.c.h.bf16 %v5884
    %v5924 = vunpack.c.l.bf16 %v5885
    %v5925 = vunpack.c.h.bf16 %v5885
    %v5926 = vunpack.c.l.bf16 %v5886
    %v5927 = vunpack.c.h.bf16 %v5886
    %v5928 = vunpack.c.l.bf16 %v5887
    %v5929 = vunpack.c.h.bf16 %v5887
    %v5930 = vunpack.c.l.bf16 %v5888
    %v5931 = vunpack.c.h.bf16 %v5888
    %v5932 = vunpack.c.l.bf16 %v5889
    %v5933 = vunpack.c.h.bf16 %v5889
    %v5934 = vunpack.c.l.bf16 %v5890
    %v5935 = vunpack.c.h.bf16 %v5890
    %v5936 = vunpack.c.l.bf16 %v5891
    %v5937 = vunpack.c.h.bf16 %v5891
    %v5938 = vunpack.c.l.bf16 %v5892
    %v5939 = vunpack.c.h.bf16 %v5892
    %v5940 = vunpack.c.l.bf16 %v5893
    %v5941 = vunpack.c.h.bf16 %v5893
    %v5942 = vunpack.c.l.bf16 %v5894
    %v5943 = vunpack.c.h.bf16 %v5894
    %v5944 = vunpack.c.l.bf16 %v5895
    %v5945 = vunpack.c.h.bf16 %v5895
    %v5946 = vunpack.c.l.bf16 %v5896
    %v5947 = vunpack.c.h.bf16 %v5896
    %v5948 = vunpack.c.l.bf16 %v5897
    %v5949 = vunpack.c.h.bf16 %v5897
    %v5950 = vunpack.c.l.bf16 %v5898
    %v5951 = vunpack.c.h.bf16 %v5898
    %v5952 = vunpack.c.l.bf16 %v5899
    %v5953 = vunpack.c.h.bf16 %v5899
    %v5954 = vunpack.c.l.bf16 %v5900
    %v5955 = vunpack.c.h.bf16 %v5900
    %v5956 = vunpack.c.l.bf16 %v5901
    %v5957 = vunpack.c.h.bf16 %v5901
    %v5958 = vadd.f32 %v5902, 1.0
    %v5959 = vadd.f32 %v5903, 1.0
    %v5960 = vadd.f32 %v5904, 1.0
    %v5961 = vadd.f32 %v5905, 1.0
    %v5962 = vadd.f32 %v5906, 1.0
    %v5963 = vadd.f32 %v5907, 1.0
    %v5964 = vadd.f32 %v5908, 1.0
    %v5965 = vadd.f32 %v5909, 1.0
    %v5966 = vadd.f32 %v5910, 1.0
    %v5967 = vadd.f32 %v5911, 1.0
    %v5968 = vadd.f32 %v5912, 1.0
    %v5969 = vadd.f32 %v5913, 1.0
    %v5970 = vadd.f32 %v5914, 1.0
    %v5971 = vadd.f32 %v5915, 1.0
    %v5972 = vadd.f32 %v5916, 1.0
    %v5973 = vadd.f32 %v5917, 1.0
    %v5974 = vadd.f32 %v5918, 1.0
    %v5975 = vadd.f32 %v5919, 1.0
    %v5976 = vadd.f32 %v5920, 1.0
    %v5977 = vadd.f32 %v5921, 1.0
    %v5978 = vadd.f32 %v5922, 1.0
    %v5979 = vadd.f32 %v5923, 1.0
    %v5980 = vadd.f32 %v5924, 1.0
    %v5981 = vadd.f32 %v5925, 1.0
    %v5982 = vadd.f32 %v5926, 1.0
    %v5983 = vadd.f32 %v5927, 1.0
    %v5984 = vadd.f32 %v5928, 1.0
    %v5985 = vadd.f32 %v5929, 1.0
    %v5986 = vadd.f32 %v5930, 1.0
    %v5987 = vadd.f32 %v5931, 1.0
    %v5988 = vadd.f32 %v5932, 1.0
    %v5989 = vadd.f32 %v5933, 1.0
    %v5990 = vadd.f32 %v5934, 1.0
    %v5991 = vadd.f32 %v5935, 1.0
    %v5992 = vadd.f32 %v5936, 1.0
    %v5993 = vadd.f32 %v5937, 1.0
    %v5994 = vadd.f32 %v5938, 1.0
    %v5995 = vadd.f32 %v5939, 1.0
    %v5996 = vadd.f32 %v5940, 1.0
    %v5997 = vadd.f32 %v5941, 1.0
    %v5998 = vadd.f32 %v5942, 1.0
    %v5999 = vadd.f32 %v5943, 1.0
    %v6000 = vadd.f32 %v5944, 1.0
    %v6001 = vadd.f32 %v5945, 1.0
    %v6002 = vadd.f32 %v5946, 1.0
    %v6003 = vadd.f32 %v5947, 1.0
    %v6004 = vadd.f32 %v5948, 1.0
    %v6005 = vadd.f32 %v5949, 1.0
    %v6006 = vadd.f32 %v5950, 1.0
    %v6007 = vadd.f32 %v5951, 1.0
    %v6008 = vadd.f32 %v5952, 1.0
    %v6009 = vadd.f32 %v5953, 1.0
    %v6010 = vadd.f32 %v5954, 1.0
    %v6011 = vadd.f32 %v5955, 1.0
    %v6012 = vadd.f32 %v5956, 1.0
    %v6013 = vadd.f32 %v5957, 1.0
    %v6014 = vpack.c.bf16 %v5959, %v5958
    %v6015 = vpack.c.bf16 %v5961, %v5960
    %v6016 = vpack.c.bf16 %v5963, %v5962
    %v6017 = vpack.c.bf16 %v5965, %v5964
    %v6018 = vpack.c.bf16 %v5967, %v5966
    %v6019 = vpack.c.bf16 %v5969, %v5968
    %v6020 = vpack.c.bf16 %v5971, %v5970
    %v6021 = vpack.c.bf16 %v5973, %v5972
    %v6022 = vpack.c.bf16 %v5975, %v5974
    %v6023 = vpack.c.bf16 %v5977, %v5976
    %v6024 = vpack.c.bf16 %v5979, %v5978
    %v6025 = vpack.c.bf16 %v5981, %v5980
    %v6026 = vpack.c.bf16 %v5983, %v5982
    %v6027 = vpack.c.bf16 %v5985, %v5984
    %v6028 = vpack.c.bf16 %v5987, %v5986
    %v6029 = vpack.c.bf16 %v5989, %v5988
    %v6030 = vpack.c.bf16 %v5991, %v5990
    %v6031 = vpack.c.bf16 %v5993, %v5992
    %v6032 = vpack.c.bf16 %v5995, %v5994
    %v6033 = vpack.c.bf16 %v5997, %v5996
    %v6034 = vpack.c.bf16 %v5999, %v5998
    %v6035 = vpack.c.bf16 %v6001, %v6000
    %v6036 = vpack.c.bf16 %v6003, %v6002
    %v6037 = vpack.c.bf16 %v6005, %v6004
    %v6038 = vpack.c.bf16 %v6007, %v6006
    %v6039 = vpack.c.bf16 %v6009, %v6008
    %v6040 = vpack.c.bf16 %v6011, %v6010
    %v6041 = vpack.c.bf16 %v6013, %v6012
    %v6042 = vunpack.c.h.bf16 1065369472
    %v6043 = vunpack.c.l.bf16 1065369472
    %v6044 = vunpack.c.h.bf16 %v6014
    %v6045 = vunpack.c.l.bf16 %v6014
    %v6046 = vrcp.pop %v6044
    %v6047 = vmul.f32 %v6042, %v6046
    %v6048 = vrcp.pop %v6045
    %v6049 = vmul.f32 %v6043, %v6048
    %v6050 = vpack.c.bf16 %v6047, %v6049
    %v6051 = vunpack.c.h.bf16 %v6015
    %v6052 = vunpack.c.l.bf16 %v6015
    %v6053 = vrcp.pop %v6051
    %v6054 = vmul.f32 %v6042, %v6053
    %v6055 = vrcp.pop %v6052
    %v6056 = vmul.f32 %v6043, %v6055
    %v6057 = vpack.c.bf16 %v6054, %v6056
    %v6058 = vunpack.c.h.bf16 %v6016
    %v6059 = vunpack.c.l.bf16 %v6016
    %v6060 = vrcp.pop %v6058
    %v6061 = vmul.f32 %v6042, %v6060
    %v6062 = vrcp.pop %v6059
    %v6063 = vmul.f32 %v6043, %v6062
    %v6064 = vpack.c.bf16 %v6061, %v6063
    %v6065 = vunpack.c.h.bf16 %v6017
    %v6066 = vunpack.c.l.bf16 %v6017
    %v6067 = vrcp.pop %v6065
    %v6068 = vmul.f32 %v6042, %v6067
    %v6069 = vrcp.pop %v6066
    %v6070 = vmul.f32 %v6043, %v6069
    %v6071 = vpack.c.bf16 %v6068, %v6070
    %v6072 = vunpack.c.h.bf16 %v6018
    %v6073 = vunpack.c.l.bf16 %v6018
    %v6074 = vrcp.pop %v6072
    %v6075 = vmul.f32 %v6042, %v6074
    %v6076 = vrcp.pop %v6073
    %v6077 = vmul.f32 %v6043, %v6076
    %v6078 = vpack.c.bf16 %v6075, %v6077
    %v6079 = vunpack.c.h.bf16 %v6019
    %v6080 = vunpack.c.l.bf16 %v6019
    %v6081 = vrcp.pop %v6079
    %v6082 = vmul.f32 %v6042, %v6081
    %v6083 = vrcp.pop %v6080
    %v6084 = vmul.f32 %v6043, %v6083
    %v6085 = vpack.c.bf16 %v6082, %v6084
    %v6086 = vunpack.c.h.bf16 %v6020
    %v6087 = vunpack.c.l.bf16 %v6020
    %v6088 = vrcp.pop %v6086
    %v6089 = vmul.f32 %v6042, %v6088
    %v6090 = vrcp.pop %v6087
    %v6091 = vmul.f32 %v6043, %v6090
    %v6092 = vpack.c.bf16 %v6089, %v6091
    %v6093 = vunpack.c.h.bf16 %v6021
    %v6094 = vunpack.c.l.bf16 %v6021
    %v6095 = vrcp.pop %v6093
    %v6096 = vmul.f32 %v6042, %v6095
    %v6097 = vrcp.pop %v6094
    %v6098 = vmul.f32 %v6043, %v6097
    %v6099 = vpack.c.bf16 %v6096, %v6098
    %v6100 = vunpack.c.h.bf16 %v6022
    %v6101 = vunpack.c.l.bf16 %v6022
    %v6102 = vrcp.pop %v6100
    %v6103 = vmul.f32 %v6042, %v6102
    %v6104 = vrcp.pop %v6101
    %v6105 = vmul.f32 %v6043, %v6104
    %v6106 = vpack.c.bf16 %v6103, %v6105
    %v6107 = vunpack.c.h.bf16 %v6023
    %v6108 = vunpack.c.l.bf16 %v6023
    %v6109 = vrcp.pop %v6107
    %v6110 = vmul.f32 %v6042, %v6109
    %v6111 = vrcp.pop %v6108
    %v6112 = vmul.f32 %v6043, %v6111
    %v6113 = vpack.c.bf16 %v6110, %v6112
    %v6114 = vunpack.c.h.bf16 %v6024
    %v6115 = vunpack.c.l.bf16 %v6024
    %v6116 = vrcp.pop %v6114
    %v6117 = vmul.f32 %v6042, %v6116
    %v6118 = vrcp.pop %v6115
    %v6119 = vmul.f32 %v6043, %v6118
    %v6120 = vpack.c.bf16 %v6117, %v6119
    %v6121 = vunpack.c.h.bf16 %v6025
    %v6122 = vunpack.c.l.bf16 %v6025
    %v6123 = vrcp.pop %v6121
    %v6124 = vmul.f32 %v6042, %v6123
    %v6125 = vrcp.pop %v6122
    %v6126 = vmul.f32 %v6043, %v6125
    %v6127 = vpack.c.bf16 %v6124, %v6126
    %v6128 = vunpack.c.h.bf16 %v6026
    %v6129 = vunpack.c.l.bf16 %v6026
    %v6130 = vrcp.pop %v6128
    %v6131 = vmul.f32 %v6042, %v6130
    %v6132 = vrcp.pop %v6129
    %v6133 = vmul.f32 %v6043, %v6132
    %v6134 = vpack.c.bf16 %v6131, %v6133
    %v6135 = vunpack.c.h.bf16 %v6027
    %v6136 = vunpack.c.l.bf16 %v6027
    %v6137 = vrcp.pop %v6135
    %v6138 = vmul.f32 %v6042, %v6137
    %v6139 = vrcp.pop %v6136
    %v6140 = vmul.f32 %v6043, %v6139
    %v6141 = vpack.c.bf16 %v6138, %v6140
    %v6142 = vunpack.c.h.bf16 %v6028
    %v6143 = vunpack.c.l.bf16 %v6028
    %v6144 = vrcp.pop %v6142
    %v6145 = vmul.f32 %v6042, %v6144
    %v6146 = vrcp.pop %v6143
    %v6147 = vmul.f32 %v6043, %v6146
    %v6148 = vpack.c.bf16 %v6145, %v6147
    %v6149 = vunpack.c.h.bf16 %v6029
    %v6150 = vunpack.c.l.bf16 %v6029
    %v6151 = vrcp.pop %v6149
    %v6152 = vmul.f32 %v6042, %v6151
    %v6153 = vrcp.pop %v6150
    %v6154 = vmul.f32 %v6043, %v6153
    %v6155 = vpack.c.bf16 %v6152, %v6154
    %v6156 = vunpack.c.h.bf16 %v6030
    %v6157 = vunpack.c.l.bf16 %v6030
    %v6158 = vrcp.pop %v6156
    %v6159 = vmul.f32 %v6042, %v6158
    %v6160 = vrcp.pop %v6157
    %v6161 = vmul.f32 %v6043, %v6160
    %v6162 = vpack.c.bf16 %v6159, %v6161
    %v6163 = vunpack.c.h.bf16 %v6031
    %v6164 = vunpack.c.l.bf16 %v6031
    %v6165 = vrcp.pop %v6163
    %v6166 = vmul.f32 %v6042, %v6165
    %v6167 = vrcp.pop %v6164
    %v6168 = vmul.f32 %v6043, %v6167
    %v6169 = vpack.c.bf16 %v6166, %v6168
    %v6170 = vunpack.c.h.bf16 %v6032
    %v6171 = vunpack.c.l.bf16 %v6032
    %v6172 = vrcp.pop %v6170
    %v6173 = vmul.f32 %v6042, %v6172
    %v6174 = vrcp.pop %v6171
    %v6175 = vmul.f32 %v6043, %v6174
    %v6176 = vpack.c.bf16 %v6173, %v6175
    %v6177 = vunpack.c.h.bf16 %v6033
    %v6178 = vunpack.c.l.bf16 %v6033
    %v6179 = vrcp.pop %v6177
    %v6180 = vmul.f32 %v6042, %v6179
    %v6181 = vrcp.pop %v6178
    %v6182 = vmul.f32 %v6043, %v6181
    %v6183 = vpack.c.bf16 %v6180, %v6182
    %v6184 = vunpack.c.h.bf16 %v6034
    %v6185 = vunpack.c.l.bf16 %v6034
    %v6186 = vrcp.pop %v6184
    %v6187 = vmul.f32 %v6042, %v6186
    %v6188 = vrcp.pop %v6185
    %v6189 = vmul.f32 %v6043, %v6188
    %v6190 = vpack.c.bf16 %v6187, %v6189
    %v6191 = vunpack.c.h.bf16 %v6035
    %v6192 = vunpack.c.l.bf16 %v6035
    %v6193 = vrcp.pop %v6191
    %v6194 = vmul.f32 %v6042, %v6193
    %v6195 = vrcp.pop %v6192
    %v6196 = vmul.f32 %v6043, %v6195
    %v6197 = vpack.c.bf16 %v6194, %v6196
    %v6198 = vunpack.c.h.bf16 %v6036
    %v6199 = vunpack.c.l.bf16 %v6036
    %v6200 = vrcp.pop %v6198
    %v6201 = vmul.f32 %v6042, %v6200
    %v6202 = vrcp.pop %v6199
    %v6203 = vmul.f32 %v6043, %v6202
    %v6204 = vpack.c.bf16 %v6201, %v6203
    %v6205 = vunpack.c.h.bf16 %v6037
    %v6206 = vunpack.c.l.bf16 %v6037
    %v6207 = vrcp.pop %v6205
    %v6208 = vmul.f32 %v6042, %v6207
    %v6209 = vrcp.pop %v6206
    %v6210 = vmul.f32 %v6043, %v6209
    %v6211 = vpack.c.bf16 %v6208, %v6210
    %v6212 = vunpack.c.h.bf16 %v6038
    %v6213 = vunpack.c.l.bf16 %v6038
    %v6214 = vrcp.pop %v6212
    %v6215 = vmul.f32 %v6042, %v6214
    %v6216 = vrcp.pop %v6213
    %v6217 = vmul.f32 %v6043, %v6216
    %v6218 = vpack.c.bf16 %v6215, %v6217
    %v6219 = vunpack.c.h.bf16 %v6039
    %v6220 = vunpack.c.l.bf16 %v6039
    %v6221 = vrcp.pop %v6219
    %v6222 = vmul.f32 %v6042, %v6221
    %v6223 = vrcp.pop %v6220
    %v6224 = vmul.f32 %v6043, %v6223
    %v6225 = vpack.c.bf16 %v6222, %v6224
    %v6226 = vunpack.c.h.bf16 %v6040
    %v6227 = vunpack.c.l.bf16 %v6040
    %v6228 = vrcp.pop %v6226
    %v6229 = vmul.f32 %v6042, %v6228
    %v6230 = vrcp.pop %v6227
    %v6231 = vmul.f32 %v6043, %v6230
    %v6232 = vpack.c.bf16 %v6229, %v6231
    %v6233 = vunpack.c.h.bf16 %v6041
    %v6234 = vunpack.c.l.bf16 %v6041
    %v6235 = vrcp.pop %v6233
    %v6236 = vmul.f32 %v6042, %v6235
    %v6237 = vrcp.pop %v6234
    %v6238 = vmul.f32 %v6043, %v6237
    %v6239 = vpack.c.bf16 %v6236, %v6238
    %v6268 = vrot.slane %v6050, 2
    %v6269 = vrot.slane %v6057, 4
    %v6270 = vrot.slane %v6057, 6
    %v6271 = vrot.slane %v6064, 2
    %v6272 = vrot.slane %v6071, 4
    %v6273 = vrot.slane %v6071, 6
    %v6274 = vrot.slane %v6078, 2
    %v6275 = vrot.slane %v6085, 4
    %v6276 = vrot.slane %v6085, 6
    %v6277 = vrot.slane %v6092, 2
    %v6278 = vrot.slane %v6099, 4
    %v6279 = vrot.slane %v6099, 6
    %v6280 = vrot.slane %v6106, 2
    %v6281 = vrot.slane %v6113, 4
    %v6282 = vrot.slane %v6113, 6
    %v6283 = vrot.slane %v6120, 2
    %v6284 = vrot.slane %v6127, 4
    %v6285 = vrot.slane %v6127, 6
    %v6286 = vrot.slane %v6134, 2
    %v6287 = vrot.slane %v6141, 4
    %v6288 = vrot.slane %v6141, 6
    %v6289 = vrot.slane %v6148, 2
    %v6290 = vrot.slane %v6155, 4
    %v6291 = vrot.slane %v6155, 6
    %v6292 = vrot.slane %v6162, 2
    %v6293 = vrot.slane %v6169, 4
    %v6294 = vrot.slane %v6169, 6
    %v6295 = vrot.slane %v6176, 2
    %v6296 = vrot.slane %v6183, 4
    %v6297 = vrot.slane %v6183, 6
    %v6298 = vrot.slane %v6190, 2
    %v6299 = vrot.slane %v6197, 4
    %v6300 = vrot.slane %v6197, 6
    %v6301 = vrot.slane %v6204, 2
    %v6302 = vrot.slane %v6211, 4
    %v6303 = vrot.slane %v6211, 6
    %v6304 = vrot.slane %v6218, 2
    %v6305 = vrot.slane %v6225, 4
    %v6306 = vrot.slane %v6225, 6
    %v6307 = vrot.slane %v6232, 2
    %v6308 = vrot.slane %v6239, 4
    %v6309 = vrot.slane %v6239, 6
    %vm6310 = vcmask 1041408
    %v6313 = vsel %vm6310, %v6050, %v6268
    %vm6314 = vcmask 1045508
    %v6317 = vsel %vm6314, %v6269, %v6270
    %vm6318 = vcmask 1043456
    %v6319 = vsel %vm6318, %v6313, %v6317
    %v6322 = vsel %vm6310, %v6064, %v6271
    %v6325 = vsel %vm6314, %v6272, %v6273
    %v6326 = vsel %vm6318, %v6322, %v6325
    %v6329 = vsel %vm6310, %v6078, %v6274
    %v6332 = vsel %vm6314, %v6275, %v6276
    %v6333 = vsel %vm6318, %v6329, %v6332
    %v6336 = vsel %vm6310, %v6092, %v6277
    %v6339 = vsel %vm6314, %v6278, %v6279
    %v6340 = vsel %vm6318, %v6336, %v6339
    %v6343 = vsel %vm6310, %v6106, %v6280
    %v6346 = vsel %vm6314, %v6281, %v6282
    %v6347 = vsel %vm6318, %v6343, %v6346
    %v6350 = vsel %vm6310, %v6120, %v6283
    %v6353 = vsel %vm6314, %v6284, %v6285
    %v6354 = vsel %vm6318, %v6350, %v6353
    %v6357 = vsel %vm6310, %v6134, %v6286
    %v6360 = vsel %vm6314, %v6287, %v6288
    %v6361 = vsel %vm6318, %v6357, %v6360
    %v6364 = vsel %vm6310, %v6148, %v6289
    %v6367 = vsel %vm6314, %v6290, %v6291
    %v6368 = vsel %vm6318, %v6364, %v6367
    %v6371 = vsel %vm6310, %v6162, %v6292
    %v6374 = vsel %vm6314, %v6293, %v6294
    %v6375 = vsel %vm6318, %v6371, %v6374
    %v6378 = vsel %vm6310, %v6176, %v6295
    %v6381 = vsel %vm6314, %v6296, %v6297
    %v6382 = vsel %vm6318, %v6378, %v6381
    %v6385 = vsel %vm6310, %v6190, %v6298
    %v6388 = vsel %vm6314, %v6299, %v6300
    %v6389 = vsel %vm6318, %v6385, %v6388
    %v6392 = vsel %vm6310, %v6204, %v6301
    %v6395 = vsel %vm6314, %v6302, %v6303
    %v6396 = vsel %vm6318, %v6392, %v6395
    %v6399 = vsel %vm6310, %v6218, %v6304
    %v6402 = vsel %vm6314, %v6305, %v6306
    %v6403 = vsel %vm6318, %v6399, %v6402
    %v6406 = vsel %vm6310, %v6232, %v6307
    %v6409 = vsel %vm6314, %v6308, %v6309
    %v6410 = vsel %vm6318, %v6406, %v6409
    %6425 = vst [vmem:[#allocation2] sm:$0xff] %v6319
    %6426 = vst [vmem:[#allocation2 + $0x8] sm:$0xff] %v6326
    %6427 = vst [vmem:[#allocation2 + $0x10] sm:$0xff] %v6333
    %6428 = vst [vmem:[#allocation2 + $0x18] sm:$0xff] %v6340
    %6429 = vst [vmem:[#allocation2 + $0x20] sm:$0xff] %v6347
    %6430 = vst [vmem:[#allocation2 + $0x28] sm:$0xff] %v6354
    %6431 = vst [vmem:[#allocation2 + $0x30] sm:$0xff] %v6361
    %6432 = vst [vmem:[#allocation2 + $0x38] sm:$0xff] %v6368
    %6433 = vst [vmem:[#allocation2 + $0x40] sm:$0xff] %v6375
    %6434 = vst [vmem:[#allocation2 + $0x48] sm:$0xff] %v6382
    %6435 = vst [vmem:[#allocation2 + $0x50] sm:$0xff] %v6389
    %6436 = vst [vmem:[#allocation2 + $0x58] sm:$0xff] %v6396
    %6437 = vst [vmem:[#allocation2 + $0x60] sm:$0xff] %v6403
    %vm6438 = vcmask 1043458
    %vm6439 = vmor %vm6438, %vm6310
    %vm6440 = vmor %vm6314, %vm6439
    %vm6441 = vcmask 130054
    %vm6442 = vmor %vm6441, %vm6440
    %6443 = vst.msk [vmem:[#allocation2 + $0x68] sm:$0xff] %vm6442, %v6410
    %vm6444 = vcmask 125952
    %6445 = vst.msk [vmem:[%s6] sm:$0xf] %vm6444, %v4455
    %s6446 = scalar_lea.vmem %s6, 4
    %6447 = vst.msk [vmem:[%s6446] sm:$0xf] %vm6444, %v4445
    %6449 = vrot.lane.b32.xlu0 %v4445, 112
    %v6450 = vpop.permute.xlu0 %6449
    %s6452 = scalar_lea.vmem %s6, 8
    %6453 = vst.msk [vmem:[%s6452] sm:$0xf] %vm6444, %v6450
    // Predicated region
    $region26: #{linear1_vae_forward.1} parent=1 // pred_check
      _
    $region27: #{linear1_vae_forward.1} parent=1 // pred_check_branch
      %6455 = sbr.rel (0) target = $region29
    $region28: #{linear1_vae_forward.1} parent=1 // pred_region
      _
    $region29: #{linear1_vae_forward.1} parent=1 // pred_fallthru
      _
    // Predicated region
    $region30: #{linear1_vae_forward.1} parent=1 // pred_check
      _
    $region31: #{linear1_vae_forward.1} parent=1 // pred_check_branch
      %6457 = sbr.rel (0) target = $region33
    $region32: #{linear1_vae_forward.1} parent=1 // pred_region
      %6459 = vsyncadd [#allocation3], 0
      %s6461 = sshll.u32 [#allocation2], 4
      %s6462 = int_to_ptr.vmem [resolvable:$true] %s6461
      %s6463 = sshll.u32 %s7, 4
      %s6464 = int_to_ptr.hbm [resolvable:$true] %s6463
      %6466 = dma.vmem_to_hbm [thread:$0]  %s6462, 1792, %s6464, [#allocation3]
    $region33: #{linear1_vae_forward.1} parent=1 // pred_fallthru
      _
    // Predicated region
    $region34: #{linear1_vae_forward.1} parent=1 // pred_check
      _
    $region35: #{linear1_vae_forward.1} parent=1 // pred_check_branch
      %6468 = sbr.rel (0) target = $region37
    $region36: #{linear1_vae_forward.1} parent=1 // pred_region
      _
    $region37: #{linear1_vae_forward.1} parent=1 // pred_fallthru
      _
    // Predicated region
    $region38: #{linear1_vae_forward.1} parent=1 // pred_check
      _
    $region39: #{linear1_vae_forward.1} parent=1 // pred_check_branch
      %6470 = sbr.rel (0) target = $region41
    $region40: #{linear1_vae_forward.1} parent=1 // pred_region
      %6472 = dma.done [#allocation3], 1792
    $region41: #{linear1_vae_forward.1} parent=1 // pred_fallthru
      _
    %6473 = vsyncpa [#allocation3], 1

</llo_original>
